<compile_context>
chip_gen: v7x
topology: tpu7x:2x2x1
jax: 0.10.0
libtpu: 0.0.40
codegen_flags: <defaults>
</compile_context>

<pallas_src>
import math

import jax
import jax.numpy as jnp
from jax import lax
from jax.experimental import pallas as pl
from jax.experimental.pallas import tpu as pltpu


_UNROLL = 8   # cap on in-kernel time-loop unrolling (full unroll at toy L)


# ------------------------------ fused kernel ------------------------------- #

def _lstm_forward_kernel(xu_ref, pe_ref, wemb_ref, wih_ref, whh_ref, b_ref,
                         wpred_ref, bpred_ref, out_ref,
                         seq_sc, xw_sc, h_sc, c_sc):
    # xu_ref:   [L*BT, K]    bf16  time-major embedding inputs for this tile
    # pe_ref:   [L, IN]      f32   positional embedding (one row per timestep)
    # wemb_ref: [K, IN]      bf16  fused conv+timeF embedding weight
    # wih_ref:  [E, IN, G4]  bf16  per-layer input weights (packed i|f|g|o)
    # whh_ref:  [E, IN, G4]  bf16  per-layer recurrent weights (rows >= H zero)
    # b_ref:    [E, 1, G4]   f32   per-layer b_ih + b_hh
    # wpred_ref:[IN, P]      bf16  prediction head weight (rows >= H zero)
    # bpred_ref:[1, P]       f32
    # out_ref:  [BT, P]      f32
    e_layers = wih_ref.shape[0]
    bt, in_dim = h_sc.shape
    hid = c_sc.shape[1]
    seq_len = seq_sc.shape[0] // bt
    unroll = min(seq_len, _UNROLL)

    # --- DataEmbedding: Conv1d(circular,k=3) + timeF linear as one bf16 matmul
    seq_sc[...] = jnp.dot(xu_ref[...], wemb_ref[...],
                          preferred_element_type=jnp.float32)

    # ... plus the positional embedding, broadcast over the bt sublanes of each
    # timestep (no bt-fold host replication; one vreg add per timestep).
    def add_pe(t, carry):
        r = pl.multiple_of(t * bt, bt)
        seq_sc[pl.ds(r, bt), :] = seq_sc[pl.ds(r, bt), :] + pe_ref[pl.ds(t, 1), :]
        return carry

    lax.fori_loop(0, seq_len, add_pe, 0, unroll=unroll)
    # nn.Dropout: inference mode -> identity.

    # --- stacked LSTM; the sequence stays in VMEM scratch between layers
    for layer in range(e_layers):
        # Hoisted input projection (+ fused bias): one big bf16 MXU matmul per
        # layer, off the sequential critical path.
        # TODO(synk): at production L*bt this buffer scales 4x the sequence
        # buffer; chunk the projection over time (ring buffer) or store bf16
        # before it hits v7x's 64 MiB VMEM.
        xw_sc[...] = (
            jnp.dot(seq_sc[...].astype(jnp.bfloat16), wih_ref[layer],
                    preferred_element_type=jnp.float32)
            + b_ref[layer]
        )
        # Recurrent weight read once per layer: loop-invariant, so Mosaic can
        # keep it weight-stationary (vregs / MXU staging) across the steps.
        w_hh = whh_ref[layer]
        h_sc[...] = jnp.zeros_like(h_sc)
        c_sc[...] = jnp.zeros_like(c_sc)
        write_seq = layer < e_layers - 1   # last layer: only final h is used

        def step(t, carry, _w_hh=w_hh, _write_seq=write_seq):
            r = pl.multiple_of(t * bt, bt)          # 8-aligned sublane offset
            gates = xw_sc[pl.ds(r, bt), :] + jnp.dot(
                h_sc[...].astype(jnp.bfloat16), _w_hh,
                preferred_element_type=jnp.float32)
            # PyTorch packed gate order i, f, g, o (static lane slices).
            i_g = jax.nn.sigmoid(gates[:, 0 * hid:1 * hid])
            f_g = jax.nn.sigmoid(gates[:, 1 * hid:2 * hid])
            g_g = jnp.tanh(gates[:, 2 * hid:3 * hid])
            o_g = jax.nn.sigmoid(gates[:, 3 * hid:4 * hid])
            c_new = f_g * c_sc[...] + i_g * g_g
            h_new = o_g * jnp.tanh(c_new)
            c_sc[...] = c_new
            if in_dim == hid:
                h_sc[...] = h_new
            else:
                h_sc[:, 0:hid] = h_new          # pad lanes stay zero
            if _write_seq:
                # Safe in-place: xw is precomputed, and rows [t*bt,(t+1)*bt)
                # are never read again within this layer.
                if in_dim == hid:
                    seq_sc[pl.ds(r, bt), :] = h_new
                else:
                    seq_sc[pl.ds(r, bt), 0:hid] = h_new
            return carry

        lax.fori_loop(0, seq_len, step, 0, unroll=unroll)

    # --- predict head on the final hidden state only (Dropout = identity)
    # TODO(synk): pad pred_len to a 128-lane multiple for an unmasked store
    # once the head widens beyond toy sizes.
    out_ref[...] = (
        jnp.dot(h_sc[...].astype(jnp.bfloat16), wpred_ref[...],
                preferred_element_type=jnp.float32)
        + bpred_ref[...]
    )


# --------------------------- host-side plumbing ---------------------------- #

def _round_up(x, m):
    return (x + m - 1) // m * m


def positional_embedding(seq_len, d_model):
    position = jnp.arange(seq_len, dtype=jnp.float32)[:, None]
    div_term = jnp.exp(
        jnp.arange(0, d_model, 2, dtype=jnp.float32) * (-(math.log(10000.0) / d_model))
    )
    pe = jnp.zeros((seq_len, d_model), jnp.float32)
    pe = pe.at[:, 0::2].set(jnp.sin(position * div_term))
    pe = pe.at[:, 1::2].set(jnp.cos(position * div_term))
    return pe


def init_params(key, c_in, d_model, mark_dim, hidden, e_layers, pred_len):
    n_keys = 2 + 4 * e_layers + 2
    keys = iter(jax.random.split(key, n_keys))
    params = {}
    # TokenEmbedding: Conv1d(c_in, d_model, kernel=3, circular, bias=False)
    params["conv_w"] = 0.1 * jax.random.normal(next(keys), (d_model, c_in, 3), jnp.float32)
    # TimeFeatureEmbedding (embed='timeF', freq='h' -> 4 features), bias=False
    params["time_w"] = 0.1 * jax.random.normal(next(keys), (d_model, mark_dim), jnp.float32)
    k = 1.0 / math.sqrt(hidden)
    layers = []
    in_dim = d_model
    for _ in range(e_layers):
        layers.append({
            "w_ih": jax.random.uniform(next(keys), (4 * hidden, in_dim), jnp.float32, -k, k),
            "w_hh": jax.random.uniform(next(keys), (4 * hidden, hidden), jnp.float32, -k, k),
            "b_ih": jax.random.uniform(next(keys), (4 * hidden,), jnp.float32, -k, k),
            "b_hh": jax.random.uniform(next(keys), (4 * hidden,), jnp.float32, -k, k),
        })
        in_dim = hidden
    params["lstm"] = layers
    # predict head: Linear(rnn_hidden, pred_len)
    params["pred_w"] = jax.random.uniform(next(keys), (pred_len, hidden), jnp.float32, -k, k)
    params["pred_b"] = jax.random.uniform(next(keys), (pred_len,), jnp.float32, -k, k)
    return params


def lstm_model_forward(params, x_enc, x_mark_enc, x_dec=None, x_mark_dec=None):
    # x_dec / x_mark_dec are unused by the reference forward.
    B, L, c_in = x_enc.shape
    mark_dim = x_mark_enc.shape[-1]
    d_model = params["conv_w"].shape[0]
    H = params["lstm"][0]["w_hh"].shape[1]
    e_layers = len(params["lstm"])
    pred_len = params["pred_w"].shape[0]

    in_dim = _round_up(max(d_model, H), 8)    # feature lanes of seq / h scratch
    g4 = _round_up(4 * H, 128)                # packed-gate lane block (4H=128 here)
    bp = _round_up(B, 8)                      # batch padded to sublane multiple

    # Batch tiling: largest tile <= 256 rows (one MXU pass width on v6e/v7x)
    # that divides bp; at large batches this yields grid_b >= 2 so the
    # "parallel" axis shards across v7x's two TensorCores.  Toy B=2 -> 1 tile.
    bt = bp
    if bp > 256:
        for cand in range(256, 7, -8):
            if bp % cand == 0:
                bt = cand
                break
    grid_b = bp // bt
    k_in = 3 * c_in + mark_dim

    # ----- embedding operands: Conv1d(circular, k=3) rewritten as one matmul
    x_prev = jnp.roll(x_enc, 1, axis=1)       # x[l-1 mod L]
    x_next = jnp.roll(x_enc, -1, axis=1)      # x[l+1 mod L]
    xu = jnp.concatenate([x_prev, x_enc, x_next, x_mark_enc], axis=-1)  # [B,L,K]
    xu = jnp.pad(xu, ((0, bp - B), (0, 0), (0, 0)))
    # time-major within each batch tile, tiles contiguous along rows; bf16 feed
    xu = (xu.reshape(grid_b, bt, L, k_in)
            .transpose(0, 2, 1, 3)
            .reshape(grid_b * L * bt, k_in)
            .astype(jnp.bfloat16))

    conv_w = params["conv_w"]                                     # [D, C, 3]
    w_comb = jnp.concatenate(
        [conv_w[:, :, 0].T, conv_w[:, :, 1].T, conv_w[:, :, 2].T,
         params["time_w"].T],
        axis=0,
    )                                                             # [K, D]
    w_emb = (jnp.zeros((k_in, in_dim), jnp.float32)
             .at[:, :d_model].set(w_comb).astype(jnp.bfloat16))

    pe = positional_embedding(L, d_model)                         # [L, D]
    pe_p = jnp.zeros((L, in_dim), jnp.float32).at[:, :d_model].set(pe)

    # ----- LSTM weights: PyTorch native packed gate layout i|f|g|o, bf16
    wih_l, whh_l, b_l = [], [], []
    for layer in params["lstm"]:
        d_l = layer["w_ih"].shape[1]          # d_model for layer 0, else H
        wih = (jnp.zeros((in_dim, g4), jnp.float32)
               .at[:d_l, :4 * H].set(layer["w_ih"].T))
        whh = (jnp.zeros((in_dim, g4), jnp.float32)
               .at[:H, :4 * H].set(layer["w_hh"].T))
        b = (jnp.zeros((g4,), jnp.float32)
             .at[:4 * H].set(layer["b_ih"] + layer["b_hh"]))
        wih_l.append(wih); whh_l.append(whh); b_l.append(b)
    w_ih = jnp.stack(wih_l).astype(jnp.bfloat16)      # [E, IN, G4]
    w_hh = jnp.stack(whh_l).astype(jnp.bfloat16)      # [E, IN, G4]
    b_g = jnp.stack(b_l)[:, None, :]                  # [E, 1, G4] f32

    w_pred = (jnp.zeros((in_dim, pred_len), jnp.float32)
              .at[:H, :].set(params["pred_w"].T).astype(jnp.bfloat16))
    b_pred = params["pred_b"].reshape(1, pred_len)

    # VMEM budget: double-buffered inputs/output + scratch, with headroom.
    def nbytes(shape, dt):
        return math.prod(shape) * jnp.dtype(dt).itemsize

    footprint = (
        2 * (nbytes((L * bt, k_in), jnp.bfloat16)
             + nbytes((L, in_dim), jnp.float32)
             + nbytes((k_in, in_dim), jnp.bfloat16)
             + 2 * nbytes((e_layers, in_dim, g4), jnp.bfloat16)
             + nbytes((e_layers, 1, g4), jnp.float32)
             + nbytes((in_dim, pred_len), jnp.bfloat16)
             + nbytes((1, pred_len), jnp.float32)
             + nbytes((bt, pred_len), jnp.float32))
        + nbytes((L * bt, in_dim), jnp.float32)       # seq_sc
        + nbytes((L * bt, g4), jnp.float32)           # xw_sc
        + 2 * nbytes((bt, in_dim), jnp.float32)       # h_sc, c_sc
    )
    vmem_limit = int(min(100 << 20, max(32 << 20, 4 * footprint)))

    # Note: if grid_b > 1, the constant-index weight inputs could additionally
    # use pipeline_mode=pl.Buffered(1) to avoid wasted double-buffer VMEM.
    out = pl.pallas_call(
        _lstm_forward_kernel,
        out_shape=jax.ShapeDtypeStruct((bp, pred_len), jnp.float32),
        grid=(grid_b,),
        in_specs=[
            pl.BlockSpec((L * bt, k_in), lambda i: (i, 0)),
            pl.BlockSpec((L, in_dim), lambda i: (0, 0)),
            pl.BlockSpec((k_in, in_dim), lambda i: (0, 0)),
            pl.BlockSpec((e_layers, in_dim, g4), lambda i: (0, 0, 0)),
            pl.BlockSpec((e_layers, in_dim, g4), lambda i: (0, 0, 0)),
            pl.BlockSpec((e_layers, 1, g4), lambda i: (0, 0, 0)),
            pl.BlockSpec((in_dim, pred_len), lambda i: (0, 0)),
            pl.BlockSpec((1, pred_len), lambda i: (0, 0)),
        ],
        out_specs=pl.BlockSpec((bt, pred_len), lambda i: (i, 0)),
        scratch_shapes=[
            pltpu.VMEM((L * bt, in_dim), jnp.float32),    # sequence buffer
            pltpu.VMEM((L * bt, g4), jnp.float32),        # hoisted x@W_ih + b
            pltpu.VMEM((bt, in_dim), jnp.float32),        # h state
            pltpu.VMEM((bt, H), jnp.float32),             # c state
        ],
        compiler_params=pltpu.CompilerParams(
            dimension_semantics=("parallel",),
            vmem_limit_bytes=vmem_limit),
    )(xu, pe_p, w_emb, w_ih, w_hh, b_g, w_pred, b_pred)

    return out[:B, None, :]                                        # [B, 1, P]


# --------------------------- pure-JAX reference ---------------------------- #

def _reference_forward(params, x_enc, x_mark_enc, matmul_dtype=jnp.float32):
    # matmul_dtype=bfloat16 reproduces the kernel's mixed precision exactly
    # (bf16 dot inputs, f32 accumulation, f32 elementwise/gates).
    B, L, _ = x_enc.shape
    d_model = params["conv_w"].shape[0]

    def mm(a, b):
        return jnp.dot(a.astype(matmul_dtype), b.astype(matmul_dtype),
                       preferred_element_type=jnp.float32)

    x_prev = jnp.roll(x_enc, 1, axis=1)
    x_next = jnp.roll(x_enc, -1, axis=1)
    xu = jnp.concatenate([x_prev, x_enc, x_next, x_mark_enc], axis=-1)
    conv_w = params["conv_w"]
    w_comb = jnp.concatenate(
        [conv_w[:, :, 0].T, conv_w[:, :, 1].T, conv_w[:, :, 2].T,
         params["time_w"].T], axis=0)
    emb = mm(xu.reshape(B * L, -1), w_comb) + jnp.tile(
        positional_embedding(L, d_model), (B, 1))
    h_seq = emb.reshape(B, L, d_model)
    for layer in params["lstm"]:
        H = layer["w_hh"].shape[1]

        def step(carry, x_t, _layer=layer, _H=H):
            h, c = carry
            gates = (mm(x_t, _layer["w_ih"].T) + mm(h, _layer["w_hh"].T)
                     + _layer["b_ih"] + _layer["b_hh"])
            i = jax.nn.sigmoid(gates[:, 0 * _H:1 * _H])
            f = jax.nn.sigmoid(gates[:, 1 * _H:2 * _H])
            g = jnp.tanh(gates[:, 2 * _H:3 * _H])
            o = jax.nn.sigmoid(gates[:, 3 * _H:4 * _H])
            c = f * c + i * g
            h = o * jnp.tanh(c)
            return (h, c), h

        init = (jnp.zeros((B, H), jnp.float32), jnp.zeros((B, H), jnp.float32))
        _, hs = lax.scan(step, init, jnp.swapaxes(h_seq, 0, 1))
        h_seq = jnp.swapaxes(hs, 0, 1)
    h_last = h_seq[:, -1, :]
    out = mm(h_last, params["pred_w"].T) + params["pred_b"]
    return out[:, None, :]


# --------------------------------- main ------------------------------------ #

if __name__ == "__main__":
    B, L, c_in, mark_dim = 2, 8, 4, 4        # freq='h' -> 4 time features
    d_model, rnn_hidden, e_layers, pred_len = 32, 32, 2, 8

    key = jax.random.PRNGKey(0)
    k_in, k_mark, k_p = jax.random.split(key, 3)
    x_enc = jax.random.normal(k_in, (B, L, c_in), jnp.float32)
    x_mark_enc = jax.random.normal(k_mark, (B, L, mark_dim), jnp.float32)
    x_dec = jnp.zeros((B, L, c_in), jnp.float32)            # unused by forward
    x_mark_dec = jnp.zeros((B, L, mark_dim), jnp.float32)   # unused by forward

    params = init_params(k_p, c_in, d_model, mark_dim, rnn_hidden, e_layers, pred_len)

    out = lstm_model_forward(params, x_enc, x_mark_enc, x_dec, x_mark_dec)
    out = jax.block_until_ready(out)
    assert out.shape == (B, 1, pred_len), out.shape
    assert jnp.all(jnp.isfinite(out))

    # Tight check against a reference with the SAME mixed precision as the
    # kernel (bf16 dot inputs, f32 accumulation) -> catches layout/padding bugs.
    ref_mixed = _reference_forward(params, x_enc, x_mark_enc,
                                   matmul_dtype=jnp.bfloat16)
    err_mixed = float(jnp.max(jnp.abs(out - ref_mixed)))
    assert err_mixed < 2e-3, f"kernel/mixed-precision ref mismatch: {err_mixed}"

    # Loose sanity check against the all-f32 reference: bounds the total bf16
    # mixed-precision error of the kernel path.
    with jax.default_matmul_precision("float32"):
        ref_f32 = _reference_forward(params, x_enc, x_mark_enc)
    err_f32 = float(jnp.max(jnp.abs(out - ref_f32)))
    assert err_f32 < 1e-1, f"kernel/f32 ref mismatch: {err_f32}"

    print("KERNEL_OK")
</pallas_src>

<mosaic_0001>
module attributes {stable_mosaic.version = 11 : i64} {
  func.func @_lstm_forward_kernel(%arg0: i32, %arg1: memref<64x16xbf16, #tpu.memory_space<vmem>>, %arg2: memref<8x32xf32, #tpu.memory_space<vmem>>, %arg3: memref<16x32xbf16, #tpu.memory_space<vmem>>, %arg4: memref<2x32x128xbf16, #tpu.memory_space<vmem>>, %arg5: memref<2x32x128xbf16, #tpu.memory_space<vmem>>, %arg6: memref<2x1x128xf32, #tpu.memory_space<vmem>>, %arg7: memref<32x8xbf16, #tpu.memory_space<vmem>>, %arg8: memref<1x8xf32, #tpu.memory_space<vmem>>, %arg9: memref<8x8xf32, #tpu.memory_space<vmem>>, %arg10: memref<64x32xf32, #tpu.memory_space<vmem>>, %arg11: memref<64x128xf32, #tpu.memory_space<vmem>>, %arg12: memref<8x32xf32, #tpu.memory_space<vmem>>, %arg13: memref<8x32xf32, #tpu.memory_space<vmem>>) attributes {dimension_semantics = [#tpu.dimension_semantics<parallel>], iteration_bounds = array<i64: 1>, scalar_prefetch = 0 : i64, scratch_operands = 4 : i64, tpu.core_type = #tpu.core_type<tc>, window_params = [{transform_indices = @transform_0, window_bounds = array<i64: 64, 16>}, {pipeline_mode = #tpu.pipeline_mode<synchronous>, transform_indices = @transform_1, window_bounds = array<i64: 8, 32>}, {pipeline_mode = #tpu.pipeline_mode<synchronous>, transform_indices = @transform_2, window_bounds = array<i64: 16, 32>}, {pipeline_mode = #tpu.pipeline_mode<synchronous>, transform_indices = @transform_3, window_bounds = array<i64: 2, 32, 128>}, {pipeline_mode = #tpu.pipeline_mode<synchronous>, transform_indices = @transform_4, window_bounds = array<i64: 2, 32, 128>}, {pipeline_mode = #tpu.pipeline_mode<synchronous>, transform_indices = @transform_5, window_bounds = array<i64: 2, 1, 128>}, {pipeline_mode = #tpu.pipeline_mode<synchronous>, transform_indices = @transform_6, window_bounds = array<i64: 32, 8>}, {pipeline_mode = #tpu.pipeline_mode<synchronous>, transform_indices = @transform_7, window_bounds = array<i64: 1, 8>}, {transform_indices = @transform_8, window_bounds = array<i64: 8, 8>}]} {
    %c0 = arith.constant 0 : index
    %c0_0 = arith.constant 0 : index
    %0 = vector.load %arg1[%c0, %c0_0] : memref<64x16xbf16, #tpu.memory_space<vmem>>, vector<64x16xbf16>
    %c0_1 = arith.constant 0 : index
    %c0_2 = arith.constant 0 : index
    %1 = vector.load %arg3[%c0_1, %c0_2] : memref<16x32xbf16, #tpu.memory_space<vmem>>, vector<16x32xbf16>
    %cst = arith.constant dense<0.000000e+00> : vector<64x32xf32>
    %2 = tpu.matmul %0, %1, %cst {dimension_numbers = #tpu.dot_dimension_numbers<[1], [0], [0], [1], [0, 0, 1, 1], [], []>} : vector<64x16xbf16>, vector<16x32xbf16>, vector<64x32xf32> -> vector<64x32xf32>
    %c0_3 = arith.constant 0 : index
    %c0_4 = arith.constant 0 : index
    %3 = vector.load %arg10[%c0_3, %c0_4] : memref<64x32xf32, #tpu.memory_space<vmem>>, vector<64x32xf32>
    tpu.vector_store %arg10[%c0_3, %c0_4], %2 {strides = array<i32>} : memref<64x32xf32, #tpu.memory_space<vmem>>, vector<64x32xf32>,
    %c0_i32 = arith.constant 0 : i32
    %c8_i32 = arith.constant 8 : i32
    %4 = arith.muli %c0_i32, %c8_i32 : i32
    %5 = tpu.assume_multiple %4, 8 : i32
    %6 = arith.index_cast %5 : i32 to index
    %c0_5 = arith.constant 0 : index
    %7 = vector.load %arg10[%6, %c0_5] : memref<64x32xf32, #tpu.memory_space<vmem>>, vector<8x32xf32>
    %8 = arith.index_cast %c0_i32 : i32 to index
    %c0_6 = arith.constant 0 : index
    %9 = vector.load %arg2[%8, %c0_6] : memref<8x32xf32, #tpu.memory_space<vmem>>, vector<1x32xf32>
    %10 = vector.broadcast %9 : vector<1x32xf32> to vector<8x32xf32>
    %11 = arith.addf %7, %10 : vector<8x32xf32>
    %12 = arith.index_cast %5 : i32 to index
    %c0_7 = arith.constant 0 : index
    %13 = vector.load %arg10[%12, %c0_7] : memref<64x32xf32, #tpu.memory_space<vmem>>, vector<8x32xf32>
    tpu.vector_store %arg10[%12, %c0_7], %11 {strides = array<i32>} : memref<64x32xf32, #tpu.memory_space<vmem>>, vector<8x32xf32>,
    %c1_i32 = arith.constant 1 : i32
    %c8_i32_8 = arith.constant 8 : i32
    %14 = arith.muli %c1_i32, %c8_i32_8 : i32
    %15 = tpu.assume_multiple %14, 8 : i32
    %16 = arith.index_cast %15 : i32 to index
    %c0_9 = arith.constant 0 : index
    %17 = vector.load %arg10[%16, %c0_9] : memref<64x32xf32, #tpu.memory_space<vmem>>, vector<8x32xf32>
    %18 = arith.index_cast %c1_i32 : i32 to index
    %c0_10 = arith.constant 0 : index
    %19 = vector.load %arg2[%18, %c0_10] : memref<8x32xf32, #tpu.memory_space<vmem>>, vector<1x32xf32>
    %20 = vector.broadcast %19 : vector<1x32xf32> to vector<8x32xf32>
    %21 = arith.addf %17, %20 : vector<8x32xf32>
    %22 = arith.index_cast %15 : i32 to index
    %c0_11 = arith.constant 0 : index
    %23 = vector.load %arg10[%22, %c0_11] : memref<64x32xf32, #tpu.memory_space<vmem>>, vector<8x32xf32>
    tpu.vector_store %arg10[%22, %c0_11], %21 {strides = array<i32>} : memref<64x32xf32, #tpu.memory_space<vmem>>, vector<8x32xf32>,
    %c2_i32 = arith.constant 2 : i32
    %c8_i32_12 = arith.constant 8 : i32
    %24 = arith.muli %c2_i32, %c8_i32_12 : i32
    %25 = tpu.assume_multiple %24, 8 : i32
    %26 = arith.index_cast %25 : i32 to index
    %c0_13 = arith.constant 0 : index
    %27 = vector.load %arg10[%26, %c0_13] : memref<64x32xf32, #tpu.memory_space<vmem>>, vector<8x32xf32>
    %28 = arith.index_cast %c2_i32 : i32 to index
    %c0_14 = arith.constant 0 : index
    %29 = vector.load %arg2[%28, %c0_14] : memref<8x32xf32, #tpu.memory_space<vmem>>, vector<1x32xf32>
    %30 = vector.broadcast %29 : vector<1x32xf32> to vector<8x32xf32>
    %31 = arith.addf %27, %30 : vector<8x32xf32>
    %32 = arith.index_cast %25 : i32 to index
    %c0_15 = arith.constant 0 : index
    %33 = vector.load %arg10[%32, %c0_15] : memref<64x32xf32, #tpu.memory_space<vmem>>, vector<8x32xf32>
    tpu.vector_store %arg10[%32, %c0_15], %31 {strides = array<i32>} : memref<64x32xf32, #tpu.memory_space<vmem>>, vector<8x32xf32>,
    %c3_i32 = arith.constant 3 : i32
    %c8_i32_16 = arith.constant 8 : i32
    %34 = arith.muli %c3_i32, %c8_i32_16 : i32
    %35 = tpu.assume_multiple %34, 8 : i32
    %36 = arith.index_cast %35 : i32 to index
    %c0_17 = arith.constant 0 : index
    %37 = vector.load %arg10[%36, %c0_17] : memref<64x32xf32, #tpu.memory_space<vmem>>, vector<8x32xf32>
    %38 = arith.index_cast %c3_i32 : i32 to index
    %c0_18 = arith.constant 0 : index
    %39 = vector.load %arg2[%38, %c0_18] : memref<8x32xf32, #tpu.memory_space<vmem>>, vector<1x32xf32>
    %40 = vector.broadcast %39 : vector<1x32xf32> to vector<8x32xf32>
    %41 = arith.addf %37, %40 : vector<8x32xf32>
    %42 = arith.index_cast %35 : i32 to index
    %c0_19 = arith.constant 0 : index
    %43 = vector.load %arg10[%42, %c0_19] : memref<64x32xf32, #tpu.memory_space<vmem>>, vector<8x32xf32>
    tpu.vector_store %arg10[%42, %c0_19], %41 {strides = array<i32>} : memref<64x32xf32, #tpu.memory_space<vmem>>, vector<8x32xf32>,
    %c4_i32 = arith.constant 4 : i32
    %c8_i32_20 = arith.constant 8 : i32
    %44 = arith.muli %c4_i32, %c8_i32_20 : i32
    %45 = tpu.assume_multiple %44, 8 : i32
    %46 = arith.index_cast %45 : i32 to index
    %c0_21 = arith.constant 0 : index
    %47 = vector.load %arg10[%46, %c0_21] : memref<64x32xf32, #tpu.memory_space<vmem>>, vector<8x32xf32>
    %48 = arith.index_cast %c4_i32 : i32 to index
    %c0_22 = arith.constant 0 : index
    %49 = vector.load %arg2[%48, %c0_22] : memref<8x32xf32, #tpu.memory_space<vmem>>, vector<1x32xf32>
    %50 = vector.broadcast %49 : vector<1x32xf32> to vector<8x32xf32>
    %51 = arith.addf %47, %50 : vector<8x32xf32>
    %52 = arith.index_cast %45 : i32 to index
    %c0_23 = arith.constant 0 : index
    %53 = vector.load %arg10[%52, %c0_23] : memref<64x32xf32, #tpu.memory_space<vmem>>, vector<8x32xf32>
    tpu.vector_store %arg10[%52, %c0_23], %51 {strides = array<i32>} : memref<64x32xf32, #tpu.memory_space<vmem>>, vector<8x32xf32>,
    %c5_i32 = arith.constant 5 : i32
    %c8_i32_24 = arith.constant 8 : i32
    %54 = arith.muli %c5_i32, %c8_i32_24 : i32
    %55 = tpu.assume_multiple %54, 8 : i32
    %56 = arith.index_cast %55 : i32 to index
    %c0_25 = arith.constant 0 : index
    %57 = vector.load %arg10[%56, %c0_25] : memref<64x32xf32, #tpu.memory_space<vmem>>, vector<8x32xf32>
    %58 = arith.index_cast %c5_i32 : i32 to index
    %c0_26 = arith.constant 0 : index
    %59 = vector.load %arg2[%58, %c0_26] : memref<8x32xf32, #tpu.memory_space<vmem>>, vector<1x32xf32>
    %60 = vector.broadcast %59 : vector<1x32xf32> to vector<8x32xf32>
    %61 = arith.addf %57, %60 : vector<8x32xf32>
    %62 = arith.index_cast %55 : i32 to index
    %c0_27 = arith.constant 0 : index
    %63 = vector.load %arg10[%62, %c0_27] : memref<64x32xf32, #tpu.memory_space<vmem>>, vector<8x32xf32>
    tpu.vector_store %arg10[%62, %c0_27], %61 {strides = array<i32>} : memref<64x32xf32, #tpu.memory_space<vmem>>, vector<8x32xf32>,
    %c6_i32 = arith.constant 6 : i32
    %c8_i32_28 = arith.constant 8 : i32
    %64 = arith.muli %c6_i32, %c8_i32_28 : i32
    %65 = tpu.assume_multiple %64, 8 : i32
    %66 = arith.index_cast %65 : i32 to index
    %c0_29 = arith.constant 0 : index
    %67 = vector.load %arg10[%66, %c0_29] : memref<64x32xf32, #tpu.memory_space<vmem>>, vector<8x32xf32>
    %68 = arith.index_cast %c6_i32 : i32 to index
    %c0_30 = arith.constant 0 : index
    %69 = vector.load %arg2[%68, %c0_30] : memref<8x32xf32, #tpu.memory_space<vmem>>, vector<1x32xf32>
    %70 = vector.broadcast %69 : vector<1x32xf32> to vector<8x32xf32>
    %71 = arith.addf %67, %70 : vector<8x32xf32>
    %72 = arith.index_cast %65 : i32 to index
    %c0_31 = arith.constant 0 : index
    %73 = vector.load %arg10[%72, %c0_31] : memref<64x32xf32, #tpu.memory_space<vmem>>, vector<8x32xf32>
    tpu.vector_store %arg10[%72, %c0_31], %71 {strides = array<i32>} : memref<64x32xf32, #tpu.memory_space<vmem>>, vector<8x32xf32>,
    %c7_i32 = arith.constant 7 : i32
    %c8_i32_32 = arith.constant 8 : i32
    %74 = arith.muli %c7_i32, %c8_i32_32 : i32
    %75 = tpu.assume_multiple %74, 8 : i32
    %76 = arith.index_cast %75 : i32 to index
    %c0_33 = arith.constant 0 : index
    %77 = vector.load %arg10[%76, %c0_33] : memref<64x32xf32, #tpu.memory_space<vmem>>, vector<8x32xf32>
    %78 = arith.index_cast %c7_i32 : i32 to index
    %c0_34 = arith.constant 0 : index
    %79 = vector.load %arg2[%78, %c0_34] : memref<8x32xf32, #tpu.memory_space<vmem>>, vector<1x32xf32>
    %80 = vector.broadcast %79 : vector<1x32xf32> to vector<8x32xf32>
    %81 = arith.addf %77, %80 : vector<8x32xf32>
    %82 = arith.index_cast %75 : i32 to index
    %c0_35 = arith.constant 0 : index
    %83 = vector.load %arg10[%82, %c0_35] : memref<64x32xf32, #tpu.memory_space<vmem>>, vector<8x32xf32>
    tpu.vector_store %arg10[%82, %c0_35], %81 {strides = array<i32>} : memref<64x32xf32, #tpu.memory_space<vmem>>, vector<8x32xf32>,
    %c8_i32_36 = arith.constant 8 : i32
    %c0_37 = arith.constant 0 : index
    %c0_38 = arith.constant 0 : index
    %84 = vector.load %arg10[%c0_37, %c0_38] : memref<64x32xf32, #tpu.memory_space<vmem>>, vector<64x32xf32>
    %85 = arith.truncf %84 : vector<64x32xf32> to vector<64x32xbf16>
    %c0_39 = arith.constant 0 : index
    %c0_40 = arith.constant 0 : index
    %c0_41 = arith.constant 0 : index
    %86 = vector.load %arg4[%c0_39, %c0_40, %c0_41] : memref<2x32x128xbf16, #tpu.memory_space<vmem>>, vector<1x32x128xbf16>
    %87 = vector.shape_cast %86 : vector<1x32x128xbf16> to vector<32x128xbf16>
    %cst_42 = arith.constant dense<0.000000e+00> : vector<64x128xf32>
    %88 = tpu.matmul %85, %87, %cst_42 {dimension_numbers = #tpu.dot_dimension_numbers<[1], [0], [0], [1], [0, 0, 1, 1], [], []>} : vector<64x32xbf16>, vector<32x128xbf16>, vector<64x128xf32> -> vector<64x128xf32>
    %c0_43 = arith.constant 0 : index
    %c0_44 = arith.constant 0 : index
    %c0_45 = arith.constant 0 : index
    %89 = vector.load %arg6[%c0_43, %c0_44, %c0_45] : memref<2x1x128xf32, #tpu.memory_space<vmem>>, vector<1x1x128xf32>
    %90 = vector.shape_cast %89 : vector<1x1x128xf32> to vector<1x128xf32>
    %91 = vector.broadcast %90 : vector<1x128xf32> to vector<64x128xf32>
    %92 = arith.addf %88, %91 : vector<64x128xf32>
    %c0_46 = arith.constant 0 : index
    %c0_47 = arith.constant 0 : index
    %93 = vector.load %arg11[%c0_46, %c0_47] : memref<64x128xf32, #tpu.memory_space<vmem>>, vector<64x128xf32>
    tpu.vector_store %arg11[%c0_46, %c0_47], %92 {strides = array<i32>} : memref<64x128xf32, #tpu.memory_space<vmem>>, vector<64x128xf32>,
    %c0_48 = arith.constant 0 : index
    %c0_49 = arith.constant 0 : index
    %c0_50 = arith.constant 0 : index
    %94 = vector.load %arg5[%c0_48, %c0_49, %c0_50] : memref<2x32x128xbf16, #tpu.memory_space<vmem>>, vector<1x32x128xbf16>
    %95 = vector.shape_cast %94 : vector<1x32x128xbf16> to vector<32x128xbf16>
    %cst_51 = arith.constant 0.000000e+00 : f32
    %96 = vector.broadcast %cst_51 : f32 to vector<8x32xf32>
    %c0_52 = arith.constant 0 : index
    %c0_53 = arith.constant 0 : index
    %97 = vector.load %arg12[%c0_52, %c0_53] : memref<8x32xf32, #tpu.memory_space<vmem>>, vector<8x32xf32>
    tpu.vector_store %arg12[%c0_52, %c0_53], %96 {strides = array<i32>} : memref<8x32xf32, #tpu.memory_space<vmem>>, vector<8x32xf32>,
    %cst_54 = arith.constant 0.000000e+00 : f32
    %98 = vector.broadcast %cst_54 : f32 to vector<8x32xf32>
    %c0_55 = arith.constant 0 : index
    %c0_56 = arith.constant 0 : index
    %99 = vector.load %arg13[%c0_55, %c0_56] : memref<8x32xf32, #tpu.memory_space<vmem>>, vector<8x32xf32>
    tpu.vector_store %arg13[%c0_55, %c0_56], %98 {strides = array<i32>} : memref<8x32xf32, #tpu.memory_space<vmem>>, vector<8x32xf32>,
    %c0_i32_57 = arith.constant 0 : i32
    %c8_i32_58 = arith.constant 8 : i32
    %100 = arith.muli %c0_i32_57, %c8_i32_58 : i32
    %101 = tpu.assume_multiple %100, 8 : i32
    %102 = arith.index_cast %101 : i32 to index
    %c0_59 = arith.constant 0 : index
    %103 = vector.load %arg11[%102, %c0_59] : memref<64x128xf32, #tpu.memory_space<vmem>>, vector<8x128xf32>
    %c0_60 = arith.constant 0 : index
    %c0_61 = arith.constant 0 : index
    %104 = vector.load %arg12[%c0_60, %c0_61] : memref<8x32xf32, #tpu.memory_space<vmem>>, vector<8x32xf32>
    %105 = arith.truncf %104 : vector<8x32xf32> to vector<8x32xbf16>
    %cst_62 = arith.constant dense<0.000000e+00> : vector<8x128xf32>
    %106 = tpu.matmul %105, %95, %cst_62 {dimension_numbers = #tpu.dot_dimension_numbers<[1], [0], [0], [1], [0, 0, 1, 1], [], []>} : vector<8x32xbf16>, vector<32x128xbf16>, vector<8x128xf32> -> vector<8x128xf32>
    %107 = arith.addf %103, %106 : vector<8x128xf32>
    %108 = vector.extract_strided_slice %107 {offsets = [0, 0], sizes = [8, 32], strides = [1, 1]} : vector<8x128xf32> to vector<8x32xf32>
    %109 = arith.negf %108 : vector<8x32xf32>
    %110 = math.exp %109 : vector<8x32xf32>
    %cst_63 = arith.constant 1.000000e+00 : f32
    %111 = vector.broadcast %cst_63 : f32 to vector<8x32xf32>
    %112 = arith.addf %111, %110 : vector<8x32xf32>
    %113 = arith.divf %111, %112 : vector<8x32xf32>
    %114 = vector.extract_strided_slice %107 {offsets = [0, 32], sizes = [8, 32], strides = [1, 1]} : vector<8x128xf32> to vector<8x32xf32>
    %115 = arith.negf %114 : vector<8x32xf32>
    %116 = math.exp %115 : vector<8x32xf32>
    %cst_64 = arith.constant 1.000000e+00 : f32
    %117 = vector.broadcast %cst_64 : f32 to vector<8x32xf32>
    %118 = arith.addf %117, %116 : vector<8x32xf32>
    %119 = arith.divf %117, %118 : vector<8x32xf32>
    %120 = vector.extract_strided_slice %107 {offsets = [0, 64], sizes = [8, 32], strides = [1, 1]} : vector<8x128xf32> to vector<8x32xf32>
    %121 = math.tanh %120 : vector<8x32xf32>
    %122 = vector.extract_strided_slice %107 {offsets = [0, 96], sizes = [8, 32], strides = [1, 1]} : vector<8x128xf32> to vector<8x32xf32>
    %123 = arith.negf %122 : vector<8x32xf32>
    %124 = math.exp %123 : vector<8x32xf32>
    %cst_65 = arith.constant 1.000000e+00 : f32
    %125 = vector.broadcast %cst_65 : f32 to vector<8x32xf32>
    %126 = arith.addf %125, %124 : vector<8x32xf32>
    %127 = arith.divf %125, %126 : vector<8x32xf32>
    %c0_66 = arith.constant 0 : index
    %c0_67 = arith.constant 0 : index
    %128 = vector.load %arg13[%c0_66, %c0_67] : memref<8x32xf32, #tpu.memory_space<vmem>>, vector<8x32xf32>
    %129 = arith.mulf %119, %128 : vector<8x32xf32>
    %130 = arith.mulf %113, %121 : vector<8x32xf32>
    %131 = arith.addf %129, %130 : vector<8x32xf32>
    %132 = math.tanh %131 : vector<8x32xf32>
    %133 = arith.mulf %127, %132 : vector<8x32xf32>
    %c0_68 = arith.constant 0 : index
    %c0_69 = arith.constant 0 : index
    %134 = vector.load %arg13[%c0_68, %c0_69] : memref<8x32xf32, #tpu.memory_space<vmem>>, vector<8x32xf32>
    tpu.vector_store %arg13[%c0_68, %c0_69], %131 {strides = array<i32>} : memref<8x32xf32, #tpu.memory_space<vmem>>, vector<8x32xf32>,
    %c0_70 = arith.constant 0 : index
    %c0_71 = arith.constant 0 : index
    %135 = vector.load %arg12[%c0_70, %c0_71] : memref<8x32xf32, #tpu.memory_space<vmem>>, vector<8x32xf32>
    tpu.vector_store %arg12[%c0_70, %c0_71], %133 {strides = array<i32>} : memref<8x32xf32, #tpu.memory_space<vmem>>, vector<8x32xf32>,
    %136 = arith.index_cast %101 : i32 to index
    %c0_72 = arith.constant 0 : index
    %137 = vector.load %arg10[%136, %c0_72] : memref<64x32xf32, #tpu.memory_space<vmem>>, vector<8x32xf32>
    tpu.vector_store %arg10[%136, %c0_72], %133 {strides = array<i32>} : memref<64x32xf32, #tpu.memory_space<vmem>>, vector<8x32xf32>,
    %c1_i32_73 = arith.constant 1 : i32
    %c8_i32_74 = arith.constant 8 : i32
    %138 = arith.muli %c1_i32_73, %c8_i32_74 : i32
    %139 = tpu.assume_multiple %138, 8 : i32
    %140 = arith.index_cast %139 : i32 to index
    %c0_75 = arith.constant 0 : index
    %141 = vector.load %arg11[%140, %c0_75] : memref<64x128xf32, #tpu.memory_space<vmem>>, vector<8x128xf32>
    %c0_76 = arith.constant 0 : index
    %c0_77 = arith.constant 0 : index
    %142 = vector.load %arg12[%c0_76, %c0_77] : memref<8x32xf32, #tpu.memory_space<vmem>>, vector<8x32xf32>
    %143 = arith.truncf %142 : vector<8x32xf32> to vector<8x32xbf16>
    %cst_78 = arith.constant dense<0.000000e+00> : vector<8x128xf32>
    %144 = tpu.matmul %143, %95, %cst_78 {dimension_numbers = #tpu.dot_dimension_numbers<[1], [0], [0], [1], [0, 0, 1, 1], [], []>} : vector<8x32xbf16>, vector<32x128xbf16>, vector<8x128xf32> -> vector<8x128xf32>
    %145 = arith.addf %141, %144 : vector<8x128xf32>
    %146 = vector.extract_strided_slice %145 {offsets = [0, 0], sizes = [8, 32], strides = [1, 1]} : vector<8x128xf32> to vector<8x32xf32>
    %147 = arith.negf %146 : vector<8x32xf32>
    %148 = math.exp %147 : vector<8x32xf32>
    %cst_79 = arith.constant 1.000000e+00 : f32
    %149 = vector.broadcast %cst_79 : f32 to vector<8x32xf32>
    %150 = arith.addf %149, %148 : vector<8x32xf32>
    %151 = arith.divf %149, %150 : vector<8x32xf32>
    %152 = vector.extract_strided_slice %145 {offsets = [0, 32], sizes = [8, 32], strides = [1, 1]} : vector<8x128xf32> to vector<8x32xf32>
    %153 = arith.negf %152 : vector<8x32xf32>
    %154 = math.exp %153 : vector<8x32xf32>
    %cst_80 = arith.constant 1.000000e+00 : f32
    %155 = vector.broadcast %cst_80 : f32 to vector<8x32xf32>
    %156 = arith.addf %155, %154 : vector<8x32xf32>
    %157 = arith.divf %155, %156 : vector<8x32xf32>
    %158 = vector.extract_strided_slice %145 {offsets = [0, 64], sizes = [8, 32], strides = [1, 1]} : vector<8x128xf32> to vector<8x32xf32>
    %159 = math.tanh %158 : vector<8x32xf32>
    %160 = vector.extract_strided_slice %145 {offsets = [0, 96], sizes = [8, 32], strides = [1, 1]} : vector<8x128xf32> to vector<8x32xf32>
    %161 = arith.negf %160 : vector<8x32xf32>
    %162 = math.exp %161 : vector<8x32xf32>
    %cst_81 = arith.constant 1.000000e+00 : f32
    %163 = vector.broadcast %cst_81 : f32 to vector<8x32xf32>
    %164 = arith.addf %163, %162 : vector<8x32xf32>
    %165 = arith.divf %163, %164 : vector<8x32xf32>
    %c0_82 = arith.constant 0 : index
    %c0_83 = arith.constant 0 : index
    %166 = vector.load %arg13[%c0_82, %c0_83] : memref<8x32xf32, #tpu.memory_space<vmem>>, vector<8x32xf32>
    %167 = arith.mulf %157, %166 : vector<8x32xf32>
    %168 = arith.mulf %151, %159 : vector<8x32xf32>
    %169 = arith.addf %167, %168 : vector<8x32xf32>
    %170 = math.tanh %169 : vector<8x32xf32>
    %171 = arith.mulf %165, %170 : vector<8x32xf32>
    %c0_84 = arith.constant 0 : index
    %c0_85 = arith.constant 0 : index
    %172 = vector.load %arg13[%c0_84, %c0_85] : memref<8x32xf32, #tpu.memory_space<vmem>>, vector<8x32xf32>
    tpu.vector_store %arg13[%c0_84, %c0_85], %169 {strides = array<i32>} : memref<8x32xf32, #tpu.memory_space<vmem>>, vector<8x32xf32>,
    %c0_86 = arith.constant 0 : index
    %c0_87 = arith.constant 0 : index
    %173 = vector.load %arg12[%c0_86, %c0_87] : memref<8x32xf32, #tpu.memory_space<vmem>>, vector<8x32xf32>
    tpu.vector_store %arg12[%c0_86, %c0_87], %171 {strides = array<i32>} : memref<8x32xf32, #tpu.memory_space<vmem>>, vector<8x32xf32>,
    %174 = arith.index_cast %139 : i32 to index
    %c0_88 = arith.constant 0 : index
    %175 = vector.load %arg10[%174, %c0_88] : memref<64x32xf32, #tpu.memory_space<vmem>>, vector<8x32xf32>
    tpu.vector_store %arg10[%174, %c0_88], %171 {strides = array<i32>} : memref<64x32xf32, #tpu.memory_space<vmem>>, vector<8x32xf32>,
    %c2_i32_89 = arith.constant 2 : i32
    %c8_i32_90 = arith.constant 8 : i32
    %176 = arith.muli %c2_i32_89, %c8_i32_90 : i32
    %177 = tpu.assume_multiple %176, 8 : i32
    %178 = arith.index_cast %177 : i32 to index
    %c0_91 = arith.constant 0 : index
    %179 = vector.load %arg11[%178, %c0_91] : memref<64x128xf32, #tpu.memory_space<vmem>>, vector<8x128xf32>
    %c0_92 = arith.constant 0 : index
    %c0_93 = arith.constant 0 : index
    %180 = vector.load %arg12[%c0_92, %c0_93] : memref<8x32xf32, #tpu.memory_space<vmem>>, vector<8x32xf32>
    %181 = arith.truncf %180 : vector<8x32xf32> to vector<8x32xbf16>
    %cst_94 = arith.constant dense<0.000000e+00> : vector<8x128xf32>
    %182 = tpu.matmul %181, %95, %cst_94 {dimension_numbers = #tpu.dot_dimension_numbers<[1], [0], [0], [1], [0, 0, 1, 1], [], []>} : vector<8x32xbf16>, vector<32x128xbf16>, vector<8x128xf32> -> vector<8x128xf32>
    %183 = arith.addf %179, %182 : vector<8x128xf32>
    %184 = vector.extract_strided_slice %183 {offsets = [0, 0], sizes = [8, 32], strides = [1, 1]} : vector<8x128xf32> to vector<8x32xf32>
    %185 = arith.negf %184 : vector<8x32xf32>
    %186 = math.exp %185 : vector<8x32xf32>
    %cst_95 = arith.constant 1.000000e+00 : f32
    %187 = vector.broadcast %cst_95 : f32 to vector<8x32xf32>
    %188 = arith.addf %187, %186 : vector<8x32xf32>
    %189 = arith.divf %187, %188 : vector<8x32xf32>
    %190 = vector.extract_strided_slice %183 {offsets = [0, 32], sizes = [8, 32], strides = [1, 1]} : vector<8x128xf32> to vector<8x32xf32>
    %191 = arith.negf %190 : vector<8x32xf32>
    %192 = math.exp %191 : vector<8x32xf32>
    %cst_96 = arith.constant 1.000000e+00 : f32
    %193 = vector.broadcast %cst_96 : f32 to vector<8x32xf32>
    %194 = arith.addf %193, %192 : vector<8x32xf32>
    %195 = arith.divf %193, %194 : vector<8x32xf32>
    %196 = vector.extract_strided_slice %183 {offsets = [0, 64], sizes = [8, 32], strides = [1, 1]} : vector<8x128xf32> to vector<8x32xf32>
    %197 = math.tanh %196 : vector<8x32xf32>
    %198 = vector.extract_strided_slice %183 {offsets = [0, 96], sizes = [8, 32], strides = [1, 1]} : vector<8x128xf32> to vector<8x32xf32>
    %199 = arith.negf %198 : vector<8x32xf32>
    %200 = math.exp %199 : vector<8x32xf32>
    %cst_97 = arith.constant 1.000000e+00 : f32
    %201 = vector.broadcast %cst_97 : f32 to vector<8x32xf32>
    %202 = arith.addf %201, %200 : vector<8x32xf32>
    %203 = arith.divf %201, %202 : vector<8x32xf32>
    %c0_98 = arith.constant 0 : index
    %c0_99 = arith.constant 0 : index
    %204 = vector.load %arg13[%c0_98, %c0_99] : memref<8x32xf32, #tpu.memory_space<vmem>>, vector<8x32xf32>
    %205 = arith.mulf %195, %204 : vector<8x32xf32>
    %206 = arith.mulf %189, %197 : vector<8x32xf32>
    %207 = arith.addf %205, %206 : vector<8x32xf32>
    %208 = math.tanh %207 : vector<8x32xf32>
    %209 = arith.mulf %203, %208 : vector<8x32xf32>
    %c0_100 = arith.constant 0 : index
    %c0_101 = arith.constant 0 : index
    %210 = vector.load %arg13[%c0_100, %c0_101] : memref<8x32xf32, #tpu.memory_space<vmem>>, vector<8x32xf32>
    tpu.vector_store %arg13[%c0_100, %c0_101], %207 {strides = array<i32>} : memref<8x32xf32, #tpu.memory_space<vmem>>, vector<8x32xf32>,
    %c0_102 = arith.constant 0 : index
    %c0_103 = arith.constant 0 : index
    %211 = vector.load %arg12[%c0_102, %c0_103] : memref<8x32xf32, #tpu.memory_space<vmem>>, vector<8x32xf32>
    tpu.vector_store %arg12[%c0_102, %c0_103], %209 {strides = array<i32>} : memref<8x32xf32, #tpu.memory_space<vmem>>, vector<8x32xf32>,
    %212 = arith.index_cast %177 : i32 to index
    %c0_104 = arith.constant 0 : index
    %213 = vector.load %arg10[%212, %c0_104] : memref<64x32xf32, #tpu.memory_space<vmem>>, vector<8x32xf32>
    tpu.vector_store %arg10[%212, %c0_104], %209 {strides = array<i32>} : memref<64x32xf32, #tpu.memory_space<vmem>>, vector<8x32xf32>,
    %c3_i32_105 = arith.constant 3 : i32
    %c8_i32_106 = arith.constant 8 : i32
    %214 = arith.muli %c3_i32_105, %c8_i32_106 : i32
    %215 = tpu.assume_multiple %214, 8 : i32
    %216 = arith.index_cast %215 : i32 to index
    %c0_107 = arith.constant 0 : index
    %217 = vector.load %arg11[%216, %c0_107] : memref<64x128xf32, #tpu.memory_space<vmem>>, vector<8x128xf32>
    %c0_108 = arith.constant 0 : index
    %c0_109 = arith.constant 0 : index
    %218 = vector.load %arg12[%c0_108, %c0_109] : memref<8x32xf32, #tpu.memory_space<vmem>>, vector<8x32xf32>
    %219 = arith.truncf %218 : vector<8x32xf32> to vector<8x32xbf16>
    %cst_110 = arith.constant dense<0.000000e+00> : vector<8x128xf32>
    %220 = tpu.matmul %219, %95, %cst_110 {dimension_numbers = #tpu.dot_dimension_numbers<[1], [0], [0], [1], [0, 0, 1, 1], [], []>} : vector<8x32xbf16>, vector<32x128xbf16>, vector<8x128xf32> -> vector<8x128xf32>
    %221 = arith.addf %217, %220 : vector<8x128xf32>
    %222 = vector.extract_strided_slice %221 {offsets = [0, 0], sizes = [8, 32], strides = [1, 1]} : vector<8x128xf32> to vector<8x32xf32>
    %223 = arith.negf %222 : vector<8x32xf32>
    %224 = math.exp %223 : vector<8x32xf32>
    %cst_111 = arith.constant 1.000000e+00 : f32
    %225 = vector.broadcast %cst_111 : f32 to vector<8x32xf32>
    %226 = arith.addf %225, %224 : vector<8x32xf32>
    %227 = arith.divf %225, %226 : vector<8x32xf32>
    %228 = vector.extract_strided_slice %221 {offsets = [0, 32], sizes = [8, 32], strides = [1, 1]} : vector<8x128xf32> to vector<8x32xf32>
    %229 = arith.negf %228 : vector<8x32xf32>
    %230 = math.exp %229 : vector<8x32xf32>
    %cst_112 = arith.constant 1.000000e+00 : f32
    %231 = vector.broadcast %cst_112 : f32 to vector<8x32xf32>
    %232 = arith.addf %231, %230 : vector<8x32xf32>
    %233 = arith.divf %231, %232 : vector<8x32xf32>
    %234 = vector.extract_strided_slice %221 {offsets = [0, 64], sizes = [8, 32], strides = [1, 1]} : vector<8x128xf32> to vector<8x32xf32>
    %235 = math.tanh %234 : vector<8x32xf32>
    %236 = vector.extract_strided_slice %221 {offsets = [0, 96], sizes = [8, 32], strides = [1, 1]} : vector<8x128xf32> to vector<8x32xf32>
    %237 = arith.negf %236 : vector<8x32xf32>
    %238 = math.exp %237 : vector<8x32xf32>
    %cst_113 = arith.constant 1.000000e+00 : f32
    %239 = vector.broadcast %cst_113 : f32 to vector<8x32xf32>
    %240 = arith.addf %239, %238 : vector<8x32xf32>
    %241 = arith.divf %239, %240 : vector<8x32xf32>
    %c0_114 = arith.constant 0 : index
    %c0_115 = arith.constant 0 : index
    %242 = vector.load %arg13[%c0_114, %c0_115] : memref<8x32xf32, #tpu.memory_space<vmem>>, vector<8x32xf32>
    %243 = arith.mulf %233, %242 : vector<8x32xf32>
    %244 = arith.mulf %227, %235 : vector<8x32xf32>
    %245 = arith.addf %243, %244 : vector<8x32xf32>
    %246 = math.tanh %245 : vector<8x32xf32>
    %247 = arith.mulf %241, %246 : vector<8x32xf32>
    %c0_116 = arith.constant 0 : index
    %c0_117 = arith.constant 0 : index
    %248 = vector.load %arg13[%c0_116, %c0_117] : memref<8x32xf32, #tpu.memory_space<vmem>>, vector<8x32xf32>
    tpu.vector_store %arg13[%c0_116, %c0_117], %245 {strides = array<i32>} : memref<8x32xf32, #tpu.memory_space<vmem>>, vector<8x32xf32>,
    %c0_118 = arith.constant 0 : index
    %c0_119 = arith.constant 0 : index
    %249 = vector.load %arg12[%c0_118, %c0_119] : memref<8x32xf32, #tpu.memory_space<vmem>>, vector<8x32xf32>
    tpu.vector_store %arg12[%c0_118, %c0_119], %247 {strides = array<i32>} : memref<8x32xf32, #tpu.memory_space<vmem>>, vector<8x32xf32>,
    %250 = arith.index_cast %215 : i32 to index
    %c0_120 = arith.constant 0 : index
    %251 = vector.load %arg10[%250, %c0_120] : memref<64x32xf32, #tpu.memory_space<vmem>>, vector<8x32xf32>
    tpu.vector_store %arg10[%250, %c0_120], %247 {strides = array<i32>} : memref<64x32xf32, #tpu.memory_space<vmem>>, vector<8x32xf32>,
    %c4_i32_121 = arith.constant 4 : i32
    %c8_i32_122 = arith.constant 8 : i32
    %252 = arith.muli %c4_i32_121, %c8_i32_122 : i32
    %253 = tpu.assume_multiple %252, 8 : i32
    %254 = arith.index_cast %253 : i32 to index
    %c0_123 = arith.constant 0 : index
    %255 = vector.load %arg11[%254, %c0_123] : memref<64x128xf32, #tpu.memory_space<vmem>>, vector<8x128xf32>
    %c0_124 = arith.constant 0 : index
    %c0_125 = arith.constant 0 : index
    %256 = vector.load %arg12[%c0_124, %c0_125] : memref<8x32xf32, #tpu.memory_space<vmem>>, vector<8x32xf32>
    %257 = arith.truncf %256 : vector<8x32xf32> to vector<8x32xbf16>
    %cst_126 = arith.constant dense<0.000000e+00> : vector<8x128xf32>
    %258 = tpu.matmul %257, %95, %cst_126 {dimension_numbers = #tpu.dot_dimension_numbers<[1], [0], [0], [1], [0, 0, 1, 1], [], []>} : vector<8x32xbf16>, vector<32x128xbf16>, vector<8x128xf32> -> vector<8x128xf32>
    %259 = arith.addf %255, %258 : vector<8x128xf32>
    %260 = vector.extract_strided_slice %259 {offsets = [0, 0], sizes = [8, 32], strides = [1, 1]} : vector<8x128xf32> to vector<8x32xf32>
    %261 = arith.negf %260 : vector<8x32xf32>
    %262 = math.exp %261 : vector<8x32xf32>
    %cst_127 = arith.constant 1.000000e+00 : f32
    %263 = vector.broadcast %cst_127 : f32 to vector<8x32xf32>
    %264 = arith.addf %263, %262 : vector<8x32xf32>
    %265 = arith.divf %263, %264 : vector<8x32xf32>
    %266 = vector.extract_strided_slice %259 {offsets = [0, 32], sizes = [8, 32], strides = [1, 1]} : vector<8x128xf32> to vector<8x32xf32>
    %267 = arith.negf %266 : vector<8x32xf32>
    %268 = math.exp %267 : vector<8x32xf32>
    %cst_128 = arith.constant 1.000000e+00 : f32
    %269 = vector.broadcast %cst_128 : f32 to vector<8x32xf32>
    %270 = arith.addf %269, %268 : vector<8x32xf32>
    %271 = arith.divf %269, %270 : vector<8x32xf32>
    %272 = vector.extract_strided_slice %259 {offsets = [0, 64], sizes = [8, 32], strides = [1, 1]} : vector<8x128xf32> to vector<8x32xf32>
    %273 = math.tanh %272 : vector<8x32xf32>
    %274 = vector.extract_strided_slice %259 {offsets = [0, 96], sizes = [8, 32], strides = [1, 1]} : vector<8x128xf32> to vector<8x32xf32>
    %275 = arith.negf %274 : vector<8x32xf32>
    %276 = math.exp %275 : vector<8x32xf32>
    %cst_129 = arith.constant 1.000000e+00 : f32
    %277 = vector.broadcast %cst_129 : f32 to vector<8x32xf32>
    %278 = arith.addf %277, %276 : vector<8x32xf32>
    %279 = arith.divf %277, %278 : vector<8x32xf32>
    %c0_130 = arith.constant 0 : index
    %c0_131 = arith.constant 0 : index
    %280 = vector.load %arg13[%c0_130, %c0_131] : memref<8x32xf32, #tpu.memory_space<vmem>>, vector<8x32xf32>
    %281 = arith.mulf %271, %280 : vector<8x32xf32>
    %282 = arith.mulf %265, %273 : vector<8x32xf32>
    %283 = arith.addf %281, %282 : vector<8x32xf32>
    %284 = math.tanh %283 : vector<8x32xf32>
    %285 = arith.mulf %279, %284 : vector<8x32xf32>
    %c0_132 = arith.constant 0 : index
    %c0_133 = arith.constant 0 : index
    %286 = vector.load %arg13[%c0_132, %c0_133] : memref<8x32xf32, #tpu.memory_space<vmem>>, vector<8x32xf32>
    tpu.vector_store %arg13[%c0_132, %c0_133], %283 {strides = array<i32>} : memref<8x32xf32, #tpu.memory_space<vmem>>, vector<8x32xf32>,
    %c0_134 = arith.constant 0 : index
    %c0_135 = arith.constant 0 : index
    %287 = vector.load %arg12[%c0_134, %c0_135] : memref<8x32xf32, #tpu.memory_space<vmem>>, vector<8x32xf32>
    tpu.vector_store %arg12[%c0_134, %c0_135], %285 {strides = array<i32>} : memref<8x32xf32, #tpu.memory_space<vmem>>, vector<8x32xf32>,
    %288 = arith.index_cast %253 : i32 to index
    %c0_136 = arith.constant 0 : index
    %289 = vector.load %arg10[%288, %c0_136] : memref<64x32xf32, #tpu.memory_space<vmem>>, vector<8x32xf32>
    tpu.vector_store %arg10[%288, %c0_136], %285 {strides = array<i32>} : memref<64x32xf32, #tpu.memory_space<vmem>>, vector<8x32xf32>,
    %c5_i32_137 = arith.constant 5 : i32
    %c8_i32_138 = arith.constant 8 : i32
    %290 = arith.muli %c5_i32_137, %c8_i32_138 : i32
    %291 = tpu.assume_multiple %290, 8 : i32
    %292 = arith.index_cast %291 : i32 to index
    %c0_139 = arith.constant 0 : index
    %293 = vector.load %arg11[%292, %c0_139] : memref<64x128xf32, #tpu.memory_space<vmem>>, vector<8x128xf32>
    %c0_140 = arith.constant 0 : index
    %c0_141 = arith.constant 0 : index
    %294 = vector.load %arg12[%c0_140, %c0_141] : memref<8x32xf32, #tpu.memory_space<vmem>>, vector<8x32xf32>
    %295 = arith.truncf %294 : vector<8x32xf32> to vector<8x32xbf16>
    %cst_142 = arith.constant dense<0.000000e+00> : vector<8x128xf32>
    %296 = tpu.matmul %295, %95, %cst_142 {dimension_numbers = #tpu.dot_dimension_numbers<[1], [0], [0], [1], [0, 0, 1, 1], [], []>} : vector<8x32xbf16>, vector<32x128xbf16>, vector<8x128xf32> -> vector<8x128xf32>
    %297 = arith.addf %293, %296 : vector<8x128xf32>
    %298 = vector.extract_strided_slice %297 {offsets = [0, 0], sizes = [8, 32], strides = [1, 1]} : vector<8x128xf32> to vector<8x32xf32>
    %299 = arith.negf %298 : vector<8x32xf32>
    %300 = math.exp %299 : vector<8x32xf32>
    %cst_143 = arith.constant 1.000000e+00 : f32
    %301 = vector.broadcast %cst_143 : f32 to vector<8x32xf32>
    %302 = arith.addf %301, %300 : vector<8x32xf32>
    %303 = arith.divf %301, %302 : vector<8x32xf32>
    %304 = vector.extract_strided_slice %297 {offsets = [0, 32], sizes = [8, 32], strides = [1, 1]} : vector<8x128xf32> to vector<8x32xf32>
    %305 = arith.negf %304 : vector<8x32xf32>
    %306 = math.exp %305 : vector<8x32xf32>
    %cst_144 = arith.constant 1.000000e+00 : f32
    %307 = vector.broadcast %cst_144 : f32 to vector<8x32xf32>
    %308 = arith.addf %307, %306 : vector<8x32xf32>
    %309 = arith.divf %307, %308 : vector<8x32xf32>
    %310 = vector.extract_strided_slice %297 {offsets = [0, 64], sizes = [8, 32], strides = [1, 1]} : vector<8x128xf32> to vector<8x32xf32>
    %311 = math.tanh %310 : vector<8x32xf32>
    %312 = vector.extract_strided_slice %297 {offsets = [0, 96], sizes = [8, 32], strides = [1, 1]} : vector<8x128xf32> to vector<8x32xf32>
    %313 = arith.negf %312 : vector<8x32xf32>
    %314 = math.exp %313 : vector<8x32xf32>
    %cst_145 = arith.constant 1.000000e+00 : f32
    %315 = vector.broadcast %cst_145 : f32 to vector<8x32xf32>
    %316 = arith.addf %315, %314 : vector<8x32xf32>
    %317 = arith.divf %315, %316 : vector<8x32xf32>
    %c0_146 = arith.constant 0 : index
    %c0_147 = arith.constant 0 : index
    %318 = vector.load %arg13[%c0_146, %c0_147] : memref<8x32xf32, #tpu.memory_space<vmem>>, vector<8x32xf32>
    %319 = arith.mulf %309, %318 : vector<8x32xf32>
    %320 = arith.mulf %303, %311 : vector<8x32xf32>
    %321 = arith.addf %319, %320 : vector<8x32xf32>
    %322 = math.tanh %321 : vector<8x32xf32>
    %323 = arith.mulf %317, %322 : vector<8x32xf32>
    %c0_148 = arith.constant 0 : index
    %c0_149 = arith.constant 0 : index
    %324 = vector.load %arg13[%c0_148, %c0_149] : memref<8x32xf32, #tpu.memory_space<vmem>>, vector<8x32xf32>
    tpu.vector_store %arg13[%c0_148, %c0_149], %321 {strides = array<i32>} : memref<8x32xf32, #tpu.memory_space<vmem>>, vector<8x32xf32>,
    %c0_150 = arith.constant 0 : index
    %c0_151 = arith.constant 0 : index
    %325 = vector.load %arg12[%c0_150, %c0_151] : memref<8x32xf32, #tpu.memory_space<vmem>>, vector<8x32xf32>
    tpu.vector_store %arg12[%c0_150, %c0_151], %323 {strides = array<i32>} : memref<8x32xf32, #tpu.memory_space<vmem>>, vector<8x32xf32>,
    %326 = arith.index_cast %291 : i32 to index
    %c0_152 = arith.constant 0 : index
    %327 = vector.load %arg10[%326, %c0_152] : memref<64x32xf32, #tpu.memory_space<vmem>>, vector<8x32xf32>
    tpu.vector_store %arg10[%326, %c0_152], %323 {strides = array<i32>} : memref<64x32xf32, #tpu.memory_space<vmem>>, vector<8x32xf32>,
    %c6_i32_153 = arith.constant 6 : i32
    %c8_i32_154 = arith.constant 8 : i32
    %328 = arith.muli %c6_i32_153, %c8_i32_154 : i32
    %329 = tpu.assume_multiple %328, 8 : i32
    %330 = arith.index_cast %329 : i32 to index
    %c0_155 = arith.constant 0 : index
    %331 = vector.load %arg11[%330, %c0_155] : memref<64x128xf32, #tpu.memory_space<vmem>>, vector<8x128xf32>
    %c0_156 = arith.constant 0 : index
    %c0_157 = arith.constant 0 : index
    %332 = vector.load %arg12[%c0_156, %c0_157] : memref<8x32xf32, #tpu.memory_space<vmem>>, vector<8x32xf32>
    %333 = arith.truncf %332 : vector<8x32xf32> to vector<8x32xbf16>
    %cst_158 = arith.constant dense<0.000000e+00> : vector<8x128xf32>
    %334 = tpu.matmul %333, %95, %cst_158 {dimension_numbers = #tpu.dot_dimension_numbers<[1], [0], [0], [1], [0, 0, 1, 1], [], []>} : vector<8x32xbf16>, vector<32x128xbf16>, vector<8x128xf32> -> vector<8x128xf32>
    %335 = arith.addf %331, %334 : vector<8x128xf32>
    %336 = vector.extract_strided_slice %335 {offsets = [0, 0], sizes = [8, 32], strides = [1, 1]} : vector<8x128xf32> to vector<8x32xf32>
    %337 = arith.negf %336 : vector<8x32xf32>
    %338 = math.exp %337 : vector<8x32xf32>
    %cst_159 = arith.constant 1.000000e+00 : f32
    %339 = vector.broadcast %cst_159 : f32 to vector<8x32xf32>
    %340 = arith.addf %339, %338 : vector<8x32xf32>
    %341 = arith.divf %339, %340 : vector<8x32xf32>
    %342 = vector.extract_strided_slice %335 {offsets = [0, 32], sizes = [8, 32], strides = [1, 1]} : vector<8x128xf32> to vector<8x32xf32>
    %343 = arith.negf %342 : vector<8x32xf32>
    %344 = math.exp %343 : vector<8x32xf32>
    %cst_160 = arith.constant 1.000000e+00 : f32
    %345 = vector.broadcast %cst_160 : f32 to vector<8x32xf32>
    %346 = arith.addf %345, %344 : vector<8x32xf32>
    %347 = arith.divf %345, %346 : vector<8x32xf32>
    %348 = vector.extract_strided_slice %335 {offsets = [0, 64], sizes = [8, 32], strides = [1, 1]} : vector<8x128xf32> to vector<8x32xf32>
    %349 = math.tanh %348 : vector<8x32xf32>
    %350 = vector.extract_strided_slice %335 {offsets = [0, 96], sizes = [8, 32], strides = [1, 1]} : vector<8x128xf32> to vector<8x32xf32>
    %351 = arith.negf %350 : vector<8x32xf32>
    %352 = math.exp %351 : vector<8x32xf32>
    %cst_161 = arith.constant 1.000000e+00 : f32
    %353 = vector.broadcast %cst_161 : f32 to vector<8x32xf32>
    %354 = arith.addf %353, %352 : vector<8x32xf32>
    %355 = arith.divf %353, %354 : vector<8x32xf32>
    %c0_162 = arith.constant 0 : index
    %c0_163 = arith.constant 0 : index
    %356 = vector.load %arg13[%c0_162, %c0_163] : memref<8x32xf32, #tpu.memory_space<vmem>>, vector<8x32xf32>
    %357 = arith.mulf %347, %356 : vector<8x32xf32>
    %358 = arith.mulf %341, %349 : vector<8x32xf32>
    %359 = arith.addf %357, %358 : vector<8x32xf32>
    %360 = math.tanh %359 : vector<8x32xf32>
    %361 = arith.mulf %355, %360 : vector<8x32xf32>
    %c0_164 = arith.constant 0 : index
    %c0_165 = arith.constant 0 : index
    %362 = vector.load %arg13[%c0_164, %c0_165] : memref<8x32xf32, #tpu.memory_space<vmem>>, vector<8x32xf32>
    tpu.vector_store %arg13[%c0_164, %c0_165], %359 {strides = array<i32>} : memref<8x32xf32, #tpu.memory_space<vmem>>, vector<8x32xf32>,
    %c0_166 = arith.constant 0 : index
    %c0_167 = arith.constant 0 : index
    %363 = vector.load %arg12[%c0_166, %c0_167] : memref<8x32xf32, #tpu.memory_space<vmem>>, vector<8x32xf32>
    tpu.vector_store %arg12[%c0_166, %c0_167], %361 {strides = array<i32>} : memref<8x32xf32, #tpu.memory_space<vmem>>, vector<8x32xf32>,
    %364 = arith.index_cast %329 : i32 to index
    %c0_168 = arith.constant 0 : index
    %365 = vector.load %arg10[%364, %c0_168] : memref<64x32xf32, #tpu.memory_space<vmem>>, vector<8x32xf32>
    tpu.vector_store %arg10[%364, %c0_168], %361 {strides = array<i32>} : memref<64x32xf32, #tpu.memory_space<vmem>>, vector<8x32xf32>,
    %c7_i32_169 = arith.constant 7 : i32
    %c8_i32_170 = arith.constant 8 : i32
    %366 = arith.muli %c7_i32_169, %c8_i32_170 : i32
    %367 = tpu.assume_multiple %366, 8 : i32
    %368 = arith.index_cast %367 : i32 to index
    %c0_171 = arith.constant 0 : index
    %369 = vector.load %arg11[%368, %c0_171] : memref<64x128xf32, #tpu.memory_space<vmem>>, vector<8x128xf32>
    %c0_172 = arith.constant 0 : index
    %c0_173 = arith.constant 0 : index
    %370 = vector.load %arg12[%c0_172, %c0_173] : memref<8x32xf32, #tpu.memory_space<vmem>>, vector<8x32xf32>
    %371 = arith.truncf %370 : vector<8x32xf32> to vector<8x32xbf16>
    %cst_174 = arith.constant dense<0.000000e+00> : vector<8x128xf32>
    %372 = tpu.matmul %371, %95, %cst_174 {dimension_numbers = #tpu.dot_dimension_numbers<[1], [0], [0], [1], [0, 0, 1, 1], [], []>} : vector<8x32xbf16>, vector<32x128xbf16>, vector<8x128xf32> -> vector<8x128xf32>
    %373 = arith.addf %369, %372 : vector<8x128xf32>
    %374 = vector.extract_strided_slice %373 {offsets = [0, 0], sizes = [8, 32], strides = [1, 1]} : vector<8x128xf32> to vector<8x32xf32>
    %375 = arith.negf %374 : vector<8x32xf32>
    %376 = math.exp %375 : vector<8x32xf32>
    %cst_175 = arith.constant 1.000000e+00 : f32
    %377 = vector.broadcast %cst_175 : f32 to vector<8x32xf32>
    %378 = arith.addf %377, %376 : vector<8x32xf32>
    %379 = arith.divf %377, %378 : vector<8x32xf32>
    %380 = vector.extract_strided_slice %373 {offsets = [0, 32], sizes = [8, 32], strides = [1, 1]} : vector<8x128xf32> to vector<8x32xf32>
    %381 = arith.negf %380 : vector<8x32xf32>
    %382 = math.exp %381 : vector<8x32xf32>
    %cst_176 = arith.constant 1.000000e+00 : f32
    %383 = vector.broadcast %cst_176 : f32 to vector<8x32xf32>
    %384 = arith.addf %383, %382 : vector<8x32xf32>
    %385 = arith.divf %383, %384 : vector<8x32xf32>
    %386 = vector.extract_strided_slice %373 {offsets = [0, 64], sizes = [8, 32], strides = [1, 1]} : vector<8x128xf32> to vector<8x32xf32>
    %387 = math.tanh %386 : vector<8x32xf32>
    %388 = vector.extract_strided_slice %373 {offsets = [0, 96], sizes = [8, 32], strides = [1, 1]} : vector<8x128xf32> to vector<8x32xf32>
    %389 = arith.negf %388 : vector<8x32xf32>
    %390 = math.exp %389 : vector<8x32xf32>
    %cst_177 = arith.constant 1.000000e+00 : f32
    %391 = vector.broadcast %cst_177 : f32 to vector<8x32xf32>
    %392 = arith.addf %391, %390 : vector<8x32xf32>
    %393 = arith.divf %391, %392 : vector<8x32xf32>
    %c0_178 = arith.constant 0 : index
    %c0_179 = arith.constant 0 : index
    %394 = vector.load %arg13[%c0_178, %c0_179] : memref<8x32xf32, #tpu.memory_space<vmem>>, vector<8x32xf32>
    %395 = arith.mulf %385, %394 : vector<8x32xf32>
    %396 = arith.mulf %379, %387 : vector<8x32xf32>
    %397 = arith.addf %395, %396 : vector<8x32xf32>
    %398 = math.tanh %397 : vector<8x32xf32>
    %399 = arith.mulf %393, %398 : vector<8x32xf32>
    %c0_180 = arith.constant 0 : index
    %c0_181 = arith.constant 0 : index
    %400 = vector.load %arg13[%c0_180, %c0_181] : memref<8x32xf32, #tpu.memory_space<vmem>>, vector<8x32xf32>
    tpu.vector_store %arg13[%c0_180, %c0_181], %397 {strides = array<i32>} : memref<8x32xf32, #tpu.memory_space<vmem>>, vector<8x32xf32>,
    %c0_182 = arith.constant 0 : index
    %c0_183 = arith.constant 0 : index
    %401 = vector.load %arg12[%c0_182, %c0_183] : memref<8x32xf32, #tpu.memory_space<vmem>>, vector<8x32xf32>
    tpu.vector_store %arg12[%c0_182, %c0_183], %399 {strides = array<i32>} : memref<8x32xf32, #tpu.memory_space<vmem>>, vector<8x32xf32>,
    %402 = arith.index_cast %367 : i32 to index
    %c0_184 = arith.constant 0 : index
    %403 = vector.load %arg10[%402, %c0_184] : memref<64x32xf32, #tpu.memory_space<vmem>>, vector<8x32xf32>
    tpu.vector_store %arg10[%402, %c0_184], %399 {strides = array<i32>} : memref<64x32xf32, #tpu.memory_space<vmem>>, vector<8x32xf32>,
    %c8_i32_185 = arith.constant 8 : i32
    %c0_186 = arith.constant 0 : index
    %c0_187 = arith.constant 0 : index
    %404 = vector.load %arg10[%c0_186, %c0_187] : memref<64x32xf32, #tpu.memory_space<vmem>>, vector<64x32xf32>
    %405 = arith.truncf %404 : vector<64x32xf32> to vector<64x32xbf16>
    %c1 = arith.constant 1 : index
    %c0_188 = arith.constant 0 : index
    %c0_189 = arith.constant 0 : index
    %406 = vector.load %arg4[%c1, %c0_188, %c0_189] : memref<2x32x128xbf16, #tpu.memory_space<vmem>>, vector<1x32x128xbf16>
    %407 = vector.shape_cast %406 : vector<1x32x128xbf16> to vector<32x128xbf16>
    %cst_190 = arith.constant dense<0.000000e+00> : vector<64x128xf32>
    %408 = tpu.matmul %405, %407, %cst_190 {dimension_numbers = #tpu.dot_dimension_numbers<[1], [0], [0], [1], [0, 0, 1, 1], [], []>} : vector<64x32xbf16>, vector<32x128xbf16>, vector<64x128xf32> -> vector<64x128xf32>
    %c1_191 = arith.constant 1 : index
    %c0_192 = arith.constant 0 : index
    %c0_193 = arith.constant 0 : index
    %409 = vector.load %arg6[%c1_191, %c0_192, %c0_193] : memref<2x1x128xf32, #tpu.memory_space<vmem>>, vector<1x1x128xf32>
    %410 = vector.shape_cast %409 : vector<1x1x128xf32> to vector<1x128xf32>
    %411 = vector.broadcast %410 : vector<1x128xf32> to vector<64x128xf32>
    %412 = arith.addf %408, %411 : vector<64x128xf32>
    %c0_194 = arith.constant 0 : index
    %c0_195 = arith.constant 0 : index
    %413 = vector.load %arg11[%c0_194, %c0_195] : memref<64x128xf32, #tpu.memory_space<vmem>>, vector<64x128xf32>
    tpu.vector_store %arg11[%c0_194, %c0_195], %412 {strides = array<i32>} : memref<64x128xf32, #tpu.memory_space<vmem>>, vector<64x128xf32>,
    %c1_196 = arith.constant 1 : index
    %c0_197 = arith.constant 0 : index
    %c0_198 = arith.constant 0 : index
    %414 = vector.load %arg5[%c1_196, %c0_197, %c0_198] : memref<2x32x128xbf16, #tpu.memory_space<vmem>>, vector<1x32x128xbf16>
    %415 = vector.shape_cast %414 : vector<1x32x128xbf16> to vector<32x128xbf16>
    %cst_199 = arith.constant 0.000000e+00 : f32
    %416 = vector.broadcast %cst_199 : f32 to vector<8x32xf32>
    %c0_200 = arith.constant 0 : index
    %c0_201 = arith.constant 0 : index
    %417 = vector.load %arg12[%c0_200, %c0_201] : memref<8x32xf32, #tpu.memory_space<vmem>>, vector<8x32xf32>
    tpu.vector_store %arg12[%c0_200, %c0_201], %416 {strides = array<i32>} : memref<8x32xf32, #tpu.memory_space<vmem>>, vector<8x32xf32>,
    %cst_202 = arith.constant 0.000000e+00 : f32
    %418 = vector.broadcast %cst_202 : f32 to vector<8x32xf32>
    %c0_203 = arith.constant 0 : index
    %c0_204 = arith.constant 0 : index
    %419 = vector.load %arg13[%c0_203, %c0_204] : memref<8x32xf32, #tpu.memory_space<vmem>>, vector<8x32xf32>
    tpu.vector_store %arg13[%c0_203, %c0_204], %418 {strides = array<i32>} : memref<8x32xf32, #tpu.memory_space<vmem>>, vector<8x32xf32>,
    %c0_i32_205 = arith.constant 0 : i32
    %c8_i32_206 = arith.constant 8 : i32
    %420 = arith.muli %c0_i32_205, %c8_i32_206 : i32
    %421 = tpu.assume_multiple %420, 8 : i32
    %422 = arith.index_cast %421 : i32 to index
    %c0_207 = arith.constant 0 : index
    %423 = vector.load %arg11[%422, %c0_207] : memref<64x128xf32, #tpu.memory_space<vmem>>, vector<8x128xf32>
    %c0_208 = arith.constant 0 : index
    %c0_209 = arith.constant 0 : index
    %424 = vector.load %arg12[%c0_208, %c0_209] : memref<8x32xf32, #tpu.memory_space<vmem>>, vector<8x32xf32>
    %425 = arith.truncf %424 : vector<8x32xf32> to vector<8x32xbf16>
    %cst_210 = arith.constant dense<0.000000e+00> : vector<8x128xf32>
    %426 = tpu.matmul %425, %415, %cst_210 {dimension_numbers = #tpu.dot_dimension_numbers<[1], [0], [0], [1], [0, 0, 1, 1], [], []>} : vector<8x32xbf16>, vector<32x128xbf16>, vector<8x128xf32> -> vector<8x128xf32>
    %427 = arith.addf %423, %426 : vector<8x128xf32>
    %428 = vector.extract_strided_slice %427 {offsets = [0, 0], sizes = [8, 32], strides = [1, 1]} : vector<8x128xf32> to vector<8x32xf32>
    %429 = arith.negf %428 : vector<8x32xf32>
    %430 = math.exp %429 : vector<8x32xf32>
    %cst_211 = arith.constant 1.000000e+00 : f32
    %431 = vector.broadcast %cst_211 : f32 to vector<8x32xf32>
    %432 = arith.addf %431, %430 : vector<8x32xf32>
    %433 = arith.divf %431, %432 : vector<8x32xf32>
    %434 = vector.extract_strided_slice %427 {offsets = [0, 32], sizes = [8, 32], strides = [1, 1]} : vector<8x128xf32> to vector<8x32xf32>
    %435 = arith.negf %434 : vector<8x32xf32>
    %436 = math.exp %435 : vector<8x32xf32>
    %cst_212 = arith.constant 1.000000e+00 : f32
    %437 = vector.broadcast %cst_212 : f32 to vector<8x32xf32>
    %438 = arith.addf %437, %436 : vector<8x32xf32>
    %439 = arith.divf %437, %438 : vector<8x32xf32>
    %440 = vector.extract_strided_slice %427 {offsets = [0, 64], sizes = [8, 32], strides = [1, 1]} : vector<8x128xf32> to vector<8x32xf32>
    %441 = math.tanh %440 : vector<8x32xf32>
    %442 = vector.extract_strided_slice %427 {offsets = [0, 96], sizes = [8, 32], strides = [1, 1]} : vector<8x128xf32> to vector<8x32xf32>
    %443 = arith.negf %442 : vector<8x32xf32>
    %444 = math.exp %443 : vector<8x32xf32>
    %cst_213 = arith.constant 1.000000e+00 : f32
    %445 = vector.broadcast %cst_213 : f32 to vector<8x32xf32>
    %446 = arith.addf %445, %444 : vector<8x32xf32>
    %447 = arith.divf %445, %446 : vector<8x32xf32>
    %c0_214 = arith.constant 0 : index
    %c0_215 = arith.constant 0 : index
    %448 = vector.load %arg13[%c0_214, %c0_215] : memref<8x32xf32, #tpu.memory_space<vmem>>, vector<8x32xf32>
    %449 = arith.mulf %439, %448 : vector<8x32xf32>
    %450 = arith.mulf %433, %441 : vector<8x32xf32>
    %451 = arith.addf %449, %450 : vector<8x32xf32>
    %452 = math.tanh %451 : vector<8x32xf32>
    %453 = arith.mulf %447, %452 : vector<8x32xf32>
    %c0_216 = arith.constant 0 : index
    %c0_217 = arith.constant 0 : index
    %454 = vector.load %arg13[%c0_216, %c0_217] : memref<8x32xf32, #tpu.memory_space<vmem>>, vector<8x32xf32>
    tpu.vector_store %arg13[%c0_216, %c0_217], %451 {strides = array<i32>} : memref<8x32xf32, #tpu.memory_space<vmem>>, vector<8x32xf32>,
    %c0_218 = arith.constant 0 : index
    %c0_219 = arith.constant 0 : index
    %455 = vector.load %arg12[%c0_218, %c0_219] : memref<8x32xf32, #tpu.memory_space<vmem>>, vector<8x32xf32>
    tpu.vector_store %arg12[%c0_218, %c0_219], %453 {strides = array<i32>} : memref<8x32xf32, #tpu.memory_space<vmem>>, vector<8x32xf32>,
    %c1_i32_220 = arith.constant 1 : i32
    %c8_i32_221 = arith.constant 8 : i32
    %456 = arith.muli %c1_i32_220, %c8_i32_221 : i32
    %457 = tpu.assume_multiple %456, 8 : i32
    %458 = arith.index_cast %457 : i32 to index
    %c0_222 = arith.constant 0 : index
    %459 = vector.load %arg11[%458, %c0_222] : memref<64x128xf32, #tpu.memory_space<vmem>>, vector<8x128xf32>
    %c0_223 = arith.constant 0 : index
    %c0_224 = arith.constant 0 : index
    %460 = vector.load %arg12[%c0_223, %c0_224] : memref<8x32xf32, #tpu.memory_space<vmem>>, vector<8x32xf32>
    %461 = arith.truncf %460 : vector<8x32xf32> to vector<8x32xbf16>
    %cst_225 = arith.constant dense<0.000000e+00> : vector<8x128xf32>
    %462 = tpu.matmul %461, %415, %cst_225 {dimension_numbers = #tpu.dot_dimension_numbers<[1], [0], [0], [1], [0, 0, 1, 1], [], []>} : vector<8x32xbf16>, vector<32x128xbf16>, vector<8x128xf32> -> vector<8x128xf32>
    %463 = arith.addf %459, %462 : vector<8x128xf32>
    %464 = vector.extract_strided_slice %463 {offsets = [0, 0], sizes = [8, 32], strides = [1, 1]} : vector<8x128xf32> to vector<8x32xf32>
    %465 = arith.negf %464 : vector<8x32xf32>
    %466 = math.exp %465 : vector<8x32xf32>
    %cst_226 = arith.constant 1.000000e+00 : f32
    %467 = vector.broadcast %cst_226 : f32 to vector<8x32xf32>
    %468 = arith.addf %467, %466 : vector<8x32xf32>
    %469 = arith.divf %467, %468 : vector<8x32xf32>
    %470 = vector.extract_strided_slice %463 {offsets = [0, 32], sizes = [8, 32], strides = [1, 1]} : vector<8x128xf32> to vector<8x32xf32>
    %471 = arith.negf %470 : vector<8x32xf32>
    %472 = math.exp %471 : vector<8x32xf32>
    %cst_227 = arith.constant 1.000000e+00 : f32
    %473 = vector.broadcast %cst_227 : f32 to vector<8x32xf32>
    %474 = arith.addf %473, %472 : vector<8x32xf32>
    %475 = arith.divf %473, %474 : vector<8x32xf32>
    %476 = vector.extract_strided_slice %463 {offsets = [0, 64], sizes = [8, 32], strides = [1, 1]} : vector<8x128xf32> to vector<8x32xf32>
    %477 = math.tanh %476 : vector<8x32xf32>
    %478 = vector.extract_strided_slice %463 {offsets = [0, 96], sizes = [8, 32], strides = [1, 1]} : vector<8x128xf32> to vector<8x32xf32>
    %479 = arith.negf %478 : vector<8x32xf32>
    %480 = math.exp %479 : vector<8x32xf32>
    %cst_228 = arith.constant 1.000000e+00 : f32
    %481 = vector.broadcast %cst_228 : f32 to vector<8x32xf32>
    %482 = arith.addf %481, %480 : vector<8x32xf32>
    %483 = arith.divf %481, %482 : vector<8x32xf32>
    %c0_229 = arith.constant 0 : index
    %c0_230 = arith.constant 0 : index
    %484 = vector.load %arg13[%c0_229, %c0_230] : memref<8x32xf32, #tpu.memory_space<vmem>>, vector<8x32xf32>
    %485 = arith.mulf %475, %484 : vector<8x32xf32>
    %486 = arith.mulf %469, %477 : vector<8x32xf32>
    %487 = arith.addf %485, %486 : vector<8x32xf32>
    %488 = math.tanh %487 : vector<8x32xf32>
    %489 = arith.mulf %483, %488 : vector<8x32xf32>
    %c0_231 = arith.constant 0 : index
    %c0_232 = arith.constant 0 : index
    %490 = vector.load %arg13[%c0_231, %c0_232] : memref<8x32xf32, #tpu.memory_space<vmem>>, vector<8x32xf32>
    tpu.vector_store %arg13[%c0_231, %c0_232], %487 {strides = array<i32>} : memref<8x32xf32, #tpu.memory_space<vmem>>, vector<8x32xf32>,
    %c0_233 = arith.constant 0 : index
    %c0_234 = arith.constant 0 : index
    %491 = vector.load %arg12[%c0_233, %c0_234] : memref<8x32xf32, #tpu.memory_space<vmem>>, vector<8x32xf32>
    tpu.vector_store %arg12[%c0_233, %c0_234], %489 {strides = array<i32>} : memref<8x32xf32, #tpu.memory_space<vmem>>, vector<8x32xf32>,
    %c2_i32_235 = arith.constant 2 : i32
    %c8_i32_236 = arith.constant 8 : i32
    %492 = arith.muli %c2_i32_235, %c8_i32_236 : i32
    %493 = tpu.assume_multiple %492, 8 : i32
    %494 = arith.index_cast %493 : i32 to index
    %c0_237 = arith.constant 0 : index
    %495 = vector.load %arg11[%494, %c0_237] : memref<64x128xf32, #tpu.memory_space<vmem>>, vector<8x128xf32>
    %c0_238 = arith.constant 0 : index
    %c0_239 = arith.constant 0 : index
    %496 = vector.load %arg12[%c0_238, %c0_239] : memref<8x32xf32, #tpu.memory_space<vmem>>, vector<8x32xf32>
    %497 = arith.truncf %496 : vector<8x32xf32> to vector<8x32xbf16>
    %cst_240 = arith.constant dense<0.000000e+00> : vector<8x128xf32>
    %498 = tpu.matmul %497, %415, %cst_240 {dimension_numbers = #tpu.dot_dimension_numbers<[1], [0], [0], [1], [0, 0, 1, 1], [], []>} : vector<8x32xbf16>, vector<32x128xbf16>, vector<8x128xf32> -> vector<8x128xf32>
    %499 = arith.addf %495, %498 : vector<8x128xf32>
    %500 = vector.extract_strided_slice %499 {offsets = [0, 0], sizes = [8, 32], strides = [1, 1]} : vector<8x128xf32> to vector<8x32xf32>
    %501 = arith.negf %500 : vector<8x32xf32>
    %502 = math.exp %501 : vector<8x32xf32>
    %cst_241 = arith.constant 1.000000e+00 : f32
    %503 = vector.broadcast %cst_241 : f32 to vector<8x32xf32>
    %504 = arith.addf %503, %502 : vector<8x32xf32>
    %505 = arith.divf %503, %504 : vector<8x32xf32>
    %506 = vector.extract_strided_slice %499 {offsets = [0, 32], sizes = [8, 32], strides = [1, 1]} : vector<8x128xf32> to vector<8x32xf32>
    %507 = arith.negf %506 : vector<8x32xf32>
    %508 = math.exp %507 : vector<8x32xf32>
    %cst_242 = arith.constant 1.000000e+00 : f32
    %509 = vector.broadcast %cst_242 : f32 to vector<8x32xf32>
    %510 = arith.addf %509, %508 : vector<8x32xf32>
    %511 = arith.divf %509, %510 : vector<8x32xf32>
    %512 = vector.extract_strided_slice %499 {offsets = [0, 64], sizes = [8, 32], strides = [1, 1]} : vector<8x128xf32> to vector<8x32xf32>
    %513 = math.tanh %512 : vector<8x32xf32>
    %514 = vector.extract_strided_slice %499 {offsets = [0, 96], sizes = [8, 32], strides = [1, 1]} : vector<8x128xf32> to vector<8x32xf32>
    %515 = arith.negf %514 : vector<8x32xf32>
    %516 = math.exp %515 : vector<8x32xf32>
    %cst_243 = arith.constant 1.000000e+00 : f32
    %517 = vector.broadcast %cst_243 : f32 to vector<8x32xf32>
    %518 = arith.addf %517, %516 : vector<8x32xf32>
    %519 = arith.divf %517, %518 : vector<8x32xf32>
    %c0_244 = arith.constant 0 : index
    %c0_245 = arith.constant 0 : index
    %520 = vector.load %arg13[%c0_244, %c0_245] : memref<8x32xf32, #tpu.memory_space<vmem>>, vector<8x32xf32>
    %521 = arith.mulf %511, %520 : vector<8x32xf32>
    %522 = arith.mulf %505, %513 : vector<8x32xf32>
    %523 = arith.addf %521, %522 : vector<8x32xf32>
    %524 = math.tanh %523 : vector<8x32xf32>
    %525 = arith.mulf %519, %524 : vector<8x32xf32>
    %c0_246 = arith.constant 0 : index
    %c0_247 = arith.constant 0 : index
    %526 = vector.load %arg13[%c0_246, %c0_247] : memref<8x32xf32, #tpu.memory_space<vmem>>, vector<8x32xf32>
    tpu.vector_store %arg13[%c0_246, %c0_247], %523 {strides = array<i32>} : memref<8x32xf32, #tpu.memory_space<vmem>>, vector<8x32xf32>,
    %c0_248 = arith.constant 0 : index
    %c0_249 = arith.constant 0 : index
    %527 = vector.load %arg12[%c0_248, %c0_249] : memref<8x32xf32, #tpu.memory_space<vmem>>, vector<8x32xf32>
    tpu.vector_store %arg12[%c0_248, %c0_249], %525 {strides = array<i32>} : memref<8x32xf32, #tpu.memory_space<vmem>>, vector<8x32xf32>,
    %c3_i32_250 = arith.constant 3 : i32
    %c8_i32_251 = arith.constant 8 : i32
    %528 = arith.muli %c3_i32_250, %c8_i32_251 : i32
    %529 = tpu.assume_multiple %528, 8 : i32
    %530 = arith.index_cast %529 : i32 to index
    %c0_252 = arith.constant 0 : index
    %531 = vector.load %arg11[%530, %c0_252] : memref<64x128xf32, #tpu.memory_space<vmem>>, vector<8x128xf32>
    %c0_253 = arith.constant 0 : index
    %c0_254 = arith.constant 0 : index
    %532 = vector.load %arg12[%c0_253, %c0_254] : memref<8x32xf32, #tpu.memory_space<vmem>>, vector<8x32xf32>
    %533 = arith.truncf %532 : vector<8x32xf32> to vector<8x32xbf16>
    %cst_255 = arith.constant dense<0.000000e+00> : vector<8x128xf32>
    %534 = tpu.matmul %533, %415, %cst_255 {dimension_numbers = #tpu.dot_dimension_numbers<[1], [0], [0], [1], [0, 0, 1, 1], [], []>} : vector<8x32xbf16>, vector<32x128xbf16>, vector<8x128xf32> -> vector<8x128xf32>
    %535 = arith.addf %531, %534 : vector<8x128xf32>
    %536 = vector.extract_strided_slice %535 {offsets = [0, 0], sizes = [8, 32], strides = [1, 1]} : vector<8x128xf32> to vector<8x32xf32>
    %537 = arith.negf %536 : vector<8x32xf32>
    %538 = math.exp %537 : vector<8x32xf32>
    %cst_256 = arith.constant 1.000000e+00 : f32
    %539 = vector.broadcast %cst_256 : f32 to vector<8x32xf32>
    %540 = arith.addf %539, %538 : vector<8x32xf32>
    %541 = arith.divf %539, %540 : vector<8x32xf32>
    %542 = vector.extract_strided_slice %535 {offsets = [0, 32], sizes = [8, 32], strides = [1, 1]} : vector<8x128xf32> to vector<8x32xf32>
    %543 = arith.negf %542 : vector<8x32xf32>
    %544 = math.exp %543 : vector<8x32xf32>
    %cst_257 = arith.constant 1.000000e+00 : f32
    %545 = vector.broadcast %cst_257 : f32 to vector<8x32xf32>
    %546 = arith.addf %545, %544 : vector<8x32xf32>
    %547 = arith.divf %545, %546 : vector<8x32xf32>
    %548 = vector.extract_strided_slice %535 {offsets = [0, 64], sizes = [8, 32], strides = [1, 1]} : vector<8x128xf32> to vector<8x32xf32>
    %549 = math.tanh %548 : vector<8x32xf32>
    %550 = vector.extract_strided_slice %535 {offsets = [0, 96], sizes = [8, 32], strides = [1, 1]} : vector<8x128xf32> to vector<8x32xf32>
    %551 = arith.negf %550 : vector<8x32xf32>
    %552 = math.exp %551 : vector<8x32xf32>
    %cst_258 = arith.constant 1.000000e+00 : f32
    %553 = vector.broadcast %cst_258 : f32 to vector<8x32xf32>
    %554 = arith.addf %553, %552 : vector<8x32xf32>
    %555 = arith.divf %553, %554 : vector<8x32xf32>
    %c0_259 = arith.constant 0 : index
    %c0_260 = arith.constant 0 : index
    %556 = vector.load %arg13[%c0_259, %c0_260] : memref<8x32xf32, #tpu.memory_space<vmem>>, vector<8x32xf32>
    %557 = arith.mulf %547, %556 : vector<8x32xf32>
    %558 = arith.mulf %541, %549 : vector<8x32xf32>
    %559 = arith.addf %557, %558 : vector<8x32xf32>
    %560 = math.tanh %559 : vector<8x32xf32>
    %561 = arith.mulf %555, %560 : vector<8x32xf32>
    %c0_261 = arith.constant 0 : index
    %c0_262 = arith.constant 0 : index
    %562 = vector.load %arg13[%c0_261, %c0_262] : memref<8x32xf32, #tpu.memory_space<vmem>>, vector<8x32xf32>
    tpu.vector_store %arg13[%c0_261, %c0_262], %559 {strides = array<i32>} : memref<8x32xf32, #tpu.memory_space<vmem>>, vector<8x32xf32>,
    %c0_263 = arith.constant 0 : index
    %c0_264 = arith.constant 0 : index
    %563 = vector.load %arg12[%c0_263, %c0_264] : memref<8x32xf32, #tpu.memory_space<vmem>>, vector<8x32xf32>
    tpu.vector_store %arg12[%c0_263, %c0_264], %561 {strides = array<i32>} : memref<8x32xf32, #tpu.memory_space<vmem>>, vector<8x32xf32>,
    %c4_i32_265 = arith.constant 4 : i32
    %c8_i32_266 = arith.constant 8 : i32
    %564 = arith.muli %c4_i32_265, %c8_i32_266 : i32
    %565 = tpu.assume_multiple %564, 8 : i32
    %566 = arith.index_cast %565 : i32 to index
    %c0_267 = arith.constant 0 : index
    %567 = vector.load %arg11[%566, %c0_267] : memref<64x128xf32, #tpu.memory_space<vmem>>, vector<8x128xf32>
    %c0_268 = arith.constant 0 : index
    %c0_269 = arith.constant 0 : index
    %568 = vector.load %arg12[%c0_268, %c0_269] : memref<8x32xf32, #tpu.memory_space<vmem>>, vector<8x32xf32>
    %569 = arith.truncf %568 : vector<8x32xf32> to vector<8x32xbf16>
    %cst_270 = arith.constant dense<0.000000e+00> : vector<8x128xf32>
    %570 = tpu.matmul %569, %415, %cst_270 {dimension_numbers = #tpu.dot_dimension_numbers<[1], [0], [0], [1], [0, 0, 1, 1], [], []>} : vector<8x32xbf16>, vector<32x128xbf16>, vector<8x128xf32> -> vector<8x128xf32>
    %571 = arith.addf %567, %570 : vector<8x128xf32>
    %572 = vector.extract_strided_slice %571 {offsets = [0, 0], sizes = [8, 32], strides = [1, 1]} : vector<8x128xf32> to vector<8x32xf32>
    %573 = arith.negf %572 : vector<8x32xf32>
    %574 = math.exp %573 : vector<8x32xf32>
    %cst_271 = arith.constant 1.000000e+00 : f32
    %575 = vector.broadcast %cst_271 : f32 to vector<8x32xf32>
    %576 = arith.addf %575, %574 : vector<8x32xf32>
    %577 = arith.divf %575, %576 : vector<8x32xf32>
    %578 = vector.extract_strided_slice %571 {offsets = [0, 32], sizes = [8, 32], strides = [1, 1]} : vector<8x128xf32> to vector<8x32xf32>
    %579 = arith.negf %578 : vector<8x32xf32>
    %580 = math.exp %579 : vector<8x32xf32>
    %cst_272 = arith.constant 1.000000e+00 : f32
    %581 = vector.broadcast %cst_272 : f32 to vector<8x32xf32>
    %582 = arith.addf %581, %580 : vector<8x32xf32>
    %583 = arith.divf %581, %582 : vector<8x32xf32>
    %584 = vector.extract_strided_slice %571 {offsets = [0, 64], sizes = [8, 32], strides = [1, 1]} : vector<8x128xf32> to vector<8x32xf32>
    %585 = math.tanh %584 : vector<8x32xf32>
    %586 = vector.extract_strided_slice %571 {offsets = [0, 96], sizes = [8, 32], strides = [1, 1]} : vector<8x128xf32> to vector<8x32xf32>
    %587 = arith.negf %586 : vector<8x32xf32>
    %588 = math.exp %587 : vector<8x32xf32>
    %cst_273 = arith.constant 1.000000e+00 : f32
    %589 = vector.broadcast %cst_273 : f32 to vector<8x32xf32>
    %590 = arith.addf %589, %588 : vector<8x32xf32>
    %591 = arith.divf %589, %590 : vector<8x32xf32>
    %c0_274 = arith.constant 0 : index
    %c0_275 = arith.constant 0 : index
    %592 = vector.load %arg13[%c0_274, %c0_275] : memref<8x32xf32, #tpu.memory_space<vmem>>, vector<8x32xf32>
    %593 = arith.mulf %583, %592 : vector<8x32xf32>
    %594 = arith.mulf %577, %585 : vector<8x32xf32>
    %595 = arith.addf %593, %594 : vector<8x32xf32>
    %596 = math.tanh %595 : vector<8x32xf32>
    %597 = arith.mulf %591, %596 : vector<8x32xf32>
    %c0_276 = arith.constant 0 : index
    %c0_277 = arith.constant 0 : index
    %598 = vector.load %arg13[%c0_276, %c0_277] : memref<8x32xf32, #tpu.memory_space<vmem>>, vector<8x32xf32>
    tpu.vector_store %arg13[%c0_276, %c0_277], %595 {strides = array<i32>} : memref<8x32xf32, #tpu.memory_space<vmem>>, vector<8x32xf32>,
    %c0_278 = arith.constant 0 : index
    %c0_279 = arith.constant 0 : index
    %599 = vector.load %arg12[%c0_278, %c0_279] : memref<8x32xf32, #tpu.memory_space<vmem>>, vector<8x32xf32>
    tpu.vector_store %arg12[%c0_278, %c0_279], %597 {strides = array<i32>} : memref<8x32xf32, #tpu.memory_space<vmem>>, vector<8x32xf32>,
    %c5_i32_280 = arith.constant 5 : i32
    %c8_i32_281 = arith.constant 8 : i32
    %600 = arith.muli %c5_i32_280, %c8_i32_281 : i32
    %601 = tpu.assume_multiple %600, 8 : i32
    %602 = arith.index_cast %601 : i32 to index
    %c0_282 = arith.constant 0 : index
    %603 = vector.load %arg11[%602, %c0_282] : memref<64x128xf32, #tpu.memory_space<vmem>>, vector<8x128xf32>
    %c0_283 = arith.constant 0 : index
    %c0_284 = arith.constant 0 : index
    %604 = vector.load %arg12[%c0_283, %c0_284] : memref<8x32xf32, #tpu.memory_space<vmem>>, vector<8x32xf32>
    %605 = arith.truncf %604 : vector<8x32xf32> to vector<8x32xbf16>
    %cst_285 = arith.constant dense<0.000000e+00> : vector<8x128xf32>
    %606 = tpu.matmul %605, %415, %cst_285 {dimension_numbers = #tpu.dot_dimension_numbers<[1], [0], [0], [1], [0, 0, 1, 1], [], []>} : vector<8x32xbf16>, vector<32x128xbf16>, vector<8x128xf32> -> vector<8x128xf32>
    %607 = arith.addf %603, %606 : vector<8x128xf32>
    %608 = vector.extract_strided_slice %607 {offsets = [0, 0], sizes = [8, 32], strides = [1, 1]} : vector<8x128xf32> to vector<8x32xf32>
    %609 = arith.negf %608 : vector<8x32xf32>
    %610 = math.exp %609 : vector<8x32xf32>
    %cst_286 = arith.constant 1.000000e+00 : f32
    %611 = vector.broadcast %cst_286 : f32 to vector<8x32xf32>
    %612 = arith.addf %611, %610 : vector<8x32xf32>
    %613 = arith.divf %611, %612 : vector<8x32xf32>
    %614 = vector.extract_strided_slice %607 {offsets = [0, 32], sizes = [8, 32], strides = [1, 1]} : vector<8x128xf32> to vector<8x32xf32>
    %615 = arith.negf %614 : vector<8x32xf32>
    %616 = math.exp %615 : vector<8x32xf32>
    %cst_287 = arith.constant 1.000000e+00 : f32
    %617 = vector.broadcast %cst_287 : f32 to vector<8x32xf32>
    %618 = arith.addf %617, %616 : vector<8x32xf32>
    %619 = arith.divf %617, %618 : vector<8x32xf32>
    %620 = vector.extract_strided_slice %607 {offsets = [0, 64], sizes = [8, 32], strides = [1, 1]} : vector<8x128xf32> to vector<8x32xf32>
    %621 = math.tanh %620 : vector<8x32xf32>
    %622 = vector.extract_strided_slice %607 {offsets = [0, 96], sizes = [8, 32], strides = [1, 1]} : vector<8x128xf32> to vector<8x32xf32>
    %623 = arith.negf %622 : vector<8x32xf32>
    %624 = math.exp %623 : vector<8x32xf32>
    %cst_288 = arith.constant 1.000000e+00 : f32
    %625 = vector.broadcast %cst_288 : f32 to vector<8x32xf32>
    %626 = arith.addf %625, %624 : vector<8x32xf32>
    %627 = arith.divf %625, %626 : vector<8x32xf32>
    %c0_289 = arith.constant 0 : index
    %c0_290 = arith.constant 0 : index
    %628 = vector.load %arg13[%c0_289, %c0_290] : memref<8x32xf32, #tpu.memory_space<vmem>>, vector<8x32xf32>
    %629 = arith.mulf %619, %628 : vector<8x32xf32>
    %630 = arith.mulf %613, %621 : vector<8x32xf32>
    %631 = arith.addf %629, %630 : vector<8x32xf32>
    %632 = math.tanh %631 : vector<8x32xf32>
    %633 = arith.mulf %627, %632 : vector<8x32xf32>
    %c0_291 = arith.constant 0 : index
    %c0_292 = arith.constant 0 : index
    %634 = vector.load %arg13[%c0_291, %c0_292] : memref<8x32xf32, #tpu.memory_space<vmem>>, vector<8x32xf32>
    tpu.vector_store %arg13[%c0_291, %c0_292], %631 {strides = array<i32>} : memref<8x32xf32, #tpu.memory_space<vmem>>, vector<8x32xf32>,
    %c0_293 = arith.constant 0 : index
    %c0_294 = arith.constant 0 : index
    %635 = vector.load %arg12[%c0_293, %c0_294] : memref<8x32xf32, #tpu.memory_space<vmem>>, vector<8x32xf32>
    tpu.vector_store %arg12[%c0_293, %c0_294], %633 {strides = array<i32>} : memref<8x32xf32, #tpu.memory_space<vmem>>, vector<8x32xf32>,
    %c6_i32_295 = arith.constant 6 : i32
    %c8_i32_296 = arith.constant 8 : i32
    %636 = arith.muli %c6_i32_295, %c8_i32_296 : i32
    %637 = tpu.assume_multiple %636, 8 : i32
    %638 = arith.index_cast %637 : i32 to index
    %c0_297 = arith.constant 0 : index
    %639 = vector.load %arg11[%638, %c0_297] : memref<64x128xf32, #tpu.memory_space<vmem>>, vector<8x128xf32>
    %c0_298 = arith.constant 0 : index
    %c0_299 = arith.constant 0 : index
    %640 = vector.load %arg12[%c0_298, %c0_299] : memref<8x32xf32, #tpu.memory_space<vmem>>, vector<8x32xf32>
    %641 = arith.truncf %640 : vector<8x32xf32> to vector<8x32xbf16>
    %cst_300 = arith.constant dense<0.000000e+00> : vector<8x128xf32>
    %642 = tpu.matmul %641, %415, %cst_300 {dimension_numbers = #tpu.dot_dimension_numbers<[1], [0], [0], [1], [0, 0, 1, 1], [], []>} : vector<8x32xbf16>, vector<32x128xbf16>, vector<8x128xf32> -> vector<8x128xf32>
    %643 = arith.addf %639, %642 : vector<8x128xf32>
    %644 = vector.extract_strided_slice %643 {offsets = [0, 0], sizes = [8, 32], strides = [1, 1]} : vector<8x128xf32> to vector<8x32xf32>
    %645 = arith.negf %644 : vector<8x32xf32>
    %646 = math.exp %645 : vector<8x32xf32>
    %cst_301 = arith.constant 1.000000e+00 : f32
    %647 = vector.broadcast %cst_301 : f32 to vector<8x32xf32>
    %648 = arith.addf %647, %646 : vector<8x32xf32>
    %649 = arith.divf %647, %648 : vector<8x32xf32>
    %650 = vector.extract_strided_slice %643 {offsets = [0, 32], sizes = [8, 32], strides = [1, 1]} : vector<8x128xf32> to vector<8x32xf32>
    %651 = arith.negf %650 : vector<8x32xf32>
    %652 = math.exp %651 : vector<8x32xf32>
    %cst_302 = arith.constant 1.000000e+00 : f32
    %653 = vector.broadcast %cst_302 : f32 to vector<8x32xf32>
    %654 = arith.addf %653, %652 : vector<8x32xf32>
    %655 = arith.divf %653, %654 : vector<8x32xf32>
    %656 = vector.extract_strided_slice %643 {offsets = [0, 64], sizes = [8, 32], strides = [1, 1]} : vector<8x128xf32> to vector<8x32xf32>
    %657 = math.tanh %656 : vector<8x32xf32>
    %658 = vector.extract_strided_slice %643 {offsets = [0, 96], sizes = [8, 32], strides = [1, 1]} : vector<8x128xf32> to vector<8x32xf32>
    %659 = arith.negf %658 : vector<8x32xf32>
    %660 = math.exp %659 : vector<8x32xf32>
    %cst_303 = arith.constant 1.000000e+00 : f32
    %661 = vector.broadcast %cst_303 : f32 to vector<8x32xf32>
    %662 = arith.addf %661, %660 : vector<8x32xf32>
    %663 = arith.divf %661, %662 : vector<8x32xf32>
    %c0_304 = arith.constant 0 : index
    %c0_305 = arith.constant 0 : index
    %664 = vector.load %arg13[%c0_304, %c0_305] : memref<8x32xf32, #tpu.memory_space<vmem>>, vector<8x32xf32>
    %665 = arith.mulf %655, %664 : vector<8x32xf32>
    %666 = arith.mulf %649, %657 : vector<8x32xf32>
    %667 = arith.addf %665, %666 : vector<8x32xf32>
    %668 = math.tanh %667 : vector<8x32xf32>
    %669 = arith.mulf %663, %668 : vector<8x32xf32>
    %c0_306 = arith.constant 0 : index
    %c0_307 = arith.constant 0 : index
    %670 = vector.load %arg13[%c0_306, %c0_307] : memref<8x32xf32, #tpu.memory_space<vmem>>, vector<8x32xf32>
    tpu.vector_store %arg13[%c0_306, %c0_307], %667 {strides = array<i32>} : memref<8x32xf32, #tpu.memory_space<vmem>>, vector<8x32xf32>,
    %c0_308 = arith.constant 0 : index
    %c0_309 = arith.constant 0 : index
    %671 = vector.load %arg12[%c0_308, %c0_309] : memref<8x32xf32, #tpu.memory_space<vmem>>, vector<8x32xf32>
    tpu.vector_store %arg12[%c0_308, %c0_309], %669 {strides = array<i32>} : memref<8x32xf32, #tpu.memory_space<vmem>>, vector<8x32xf32>,
    %c7_i32_310 = arith.constant 7 : i32
    %c8_i32_311 = arith.constant 8 : i32
    %672 = arith.muli %c7_i32_310, %c8_i32_311 : i32
    %673 = tpu.assume_multiple %672, 8 : i32
    %674 = arith.index_cast %673 : i32 to index
    %c0_312 = arith.constant 0 : index
    %675 = vector.load %arg11[%674, %c0_312] : memref<64x128xf32, #tpu.memory_space<vmem>>, vector<8x128xf32>
    %c0_313 = arith.constant 0 : index
    %c0_314 = arith.constant 0 : index
    %676 = vector.load %arg12[%c0_313, %c0_314] : memref<8x32xf32, #tpu.memory_space<vmem>>, vector<8x32xf32>
    %677 = arith.truncf %676 : vector<8x32xf32> to vector<8x32xbf16>
    %cst_315 = arith.constant dense<0.000000e+00> : vector<8x128xf32>
    %678 = tpu.matmul %677, %415, %cst_315 {dimension_numbers = #tpu.dot_dimension_numbers<[1], [0], [0], [1], [0, 0, 1, 1], [], []>} : vector<8x32xbf16>, vector<32x128xbf16>, vector<8x128xf32> -> vector<8x128xf32>
    %679 = arith.addf %675, %678 : vector<8x128xf32>
    %680 = vector.extract_strided_slice %679 {offsets = [0, 0], sizes = [8, 32], strides = [1, 1]} : vector<8x128xf32> to vector<8x32xf32>
    %681 = arith.negf %680 : vector<8x32xf32>
    %682 = math.exp %681 : vector<8x32xf32>
    %cst_316 = arith.constant 1.000000e+00 : f32
    %683 = vector.broadcast %cst_316 : f32 to vector<8x32xf32>
    %684 = arith.addf %683, %682 : vector<8x32xf32>
    %685 = arith.divf %683, %684 : vector<8x32xf32>
    %686 = vector.extract_strided_slice %679 {offsets = [0, 32], sizes = [8, 32], strides = [1, 1]} : vector<8x128xf32> to vector<8x32xf32>
    %687 = arith.negf %686 : vector<8x32xf32>
    %688 = math.exp %687 : vector<8x32xf32>
    %cst_317 = arith.constant 1.000000e+00 : f32
    %689 = vector.broadcast %cst_317 : f32 to vector<8x32xf32>
    %690 = arith.addf %689, %688 : vector<8x32xf32>
    %691 = arith.divf %689, %690 : vector<8x32xf32>
    %692 = vector.extract_strided_slice %679 {offsets = [0, 64], sizes = [8, 32], strides = [1, 1]} : vector<8x128xf32> to vector<8x32xf32>
    %693 = math.tanh %692 : vector<8x32xf32>
    %694 = vector.extract_strided_slice %679 {offsets = [0, 96], sizes = [8, 32], strides = [1, 1]} : vector<8x128xf32> to vector<8x32xf32>
    %695 = arith.negf %694 : vector<8x32xf32>
    %696 = math.exp %695 : vector<8x32xf32>
    %cst_318 = arith.constant 1.000000e+00 : f32
    %697 = vector.broadcast %cst_318 : f32 to vector<8x32xf32>
    %698 = arith.addf %697, %696 : vector<8x32xf32>
    %699 = arith.divf %697, %698 : vector<8x32xf32>
    %c0_319 = arith.constant 0 : index
    %c0_320 = arith.constant 0 : index
    %700 = vector.load %arg13[%c0_319, %c0_320] : memref<8x32xf32, #tpu.memory_space<vmem>>, vector<8x32xf32>
    %701 = arith.mulf %691, %700 : vector<8x32xf32>
    %702 = arith.mulf %685, %693 : vector<8x32xf32>
    %703 = arith.addf %701, %702 : vector<8x32xf32>
    %704 = math.tanh %703 : vector<8x32xf32>
    %705 = arith.mulf %699, %704 : vector<8x32xf32>
    %c0_321 = arith.constant 0 : index
    %c0_322 = arith.constant 0 : index
    %706 = vector.load %arg13[%c0_321, %c0_322] : memref<8x32xf32, #tpu.memory_space<vmem>>, vector<8x32xf32>
    tpu.vector_store %arg13[%c0_321, %c0_322], %703 {strides = array<i32>} : memref<8x32xf32, #tpu.memory_space<vmem>>, vector<8x32xf32>,
    %c0_323 = arith.constant 0 : index
    %c0_324 = arith.constant 0 : index
    %707 = vector.load %arg12[%c0_323, %c0_324] : memref<8x32xf32, #tpu.memory_space<vmem>>, vector<8x32xf32>
    tpu.vector_store %arg12[%c0_323, %c0_324], %705 {strides = array<i32>} : memref<8x32xf32, #tpu.memory_space<vmem>>, vector<8x32xf32>,
    %c8_i32_325 = arith.constant 8 : i32
    %c0_326 = arith.constant 0 : index
    %c0_327 = arith.constant 0 : index
    %708 = vector.load %arg12[%c0_326, %c0_327] : memref<8x32xf32, #tpu.memory_space<vmem>>, vector<8x32xf32>
    %709 = arith.truncf %708 : vector<8x32xf32> to vector<8x32xbf16>
    %c0_328 = arith.constant 0 : index
    %c0_329 = arith.constant 0 : index
    %710 = vector.load %arg7[%c0_328, %c0_329] : memref<32x8xbf16, #tpu.memory_space<vmem>>, vector<32x8xbf16>
    %cst_330 = arith.constant dense<0.000000e+00> : vector<8x8xf32>
    %711 = tpu.matmul %709, %710, %cst_330 {dimension_numbers = #tpu.dot_dimension_numbers<[1], [0], [0], [1], [0, 0, 1, 1], [], []>} : vector<8x32xbf16>, vector<32x8xbf16>, vector<8x8xf32> -> vector<8x8xf32>
    %c0_331 = arith.constant 0 : index
    %c0_332 = arith.constant 0 : index
    %712 = vector.load %arg8[%c0_331, %c0_332] : memref<1x8xf32, #tpu.memory_space<vmem>>, vector<1x8xf32>
    %713 = vector.broadcast %712 : vector<1x8xf32> to vector<8x8xf32>
    %714 = arith.addf %711, %713 : vector<8x8xf32>
    %c0_333 = arith.constant 0 : index
    %c0_334 = arith.constant 0 : index
    %715 = vector.load %arg9[%c0_333, %c0_334] : memref<8x8xf32, #tpu.memory_space<vmem>>, vector<8x8xf32>
    tpu.vector_store %arg9[%c0_333, %c0_334], %714 {strides = array<i32>} : memref<8x8xf32, #tpu.memory_space<vmem>>, vector<8x8xf32>,
    return
  }
  func.func @transform_0(%arg0: i32) -> (i32, i32) {
    %c0_i32 = arith.constant 0 : i32
    %c0_i32_0 = arith.constant 0 : i32
    return %arg0, %c0_i32 : i32, i32
  }
  func.func @transform_1(%arg0: i32) -> (i32, i32) {
    %c0_i32 = arith.constant 0 : i32
    %c0_i32_0 = arith.constant 0 : i32
    %c0_i32_1 = arith.constant 0 : i32
    return %c0_i32, %c0_i32_0 : i32, i32
  }
  func.func @transform_2(%arg0: i32) -> (i32, i32) {
    %c0_i32 = arith.constant 0 : i32
    %c0_i32_0 = arith.constant 0 : i32
    %c0_i32_1 = arith.constant 0 : i32
    return %c0_i32, %c0_i32_0 : i32, i32
  }
  func.func @transform_3(%arg0: i32) -> (i32, i32, i32) {
    %c0_i32 = arith.constant 0 : i32
    %c0_i32_0 = arith.constant 0 : i32
    %c0_i32_1 = arith.constant 0 : i32
    %c0_i32_2 = arith.constant 0 : i32
    return %c0_i32, %c0_i32_0, %c0_i32_1 : i32, i32, i32
  }
  func.func @transform_4(%arg0: i32) -> (i32, i32, i32) {
    %c0_i32 = arith.constant 0 : i32
    %c0_i32_0 = arith.constant 0 : i32
    %c0_i32_1 = arith.constant 0 : i32
    %c0_i32_2 = arith.constant 0 : i32
    return %c0_i32, %c0_i32_0, %c0_i32_1 : i32, i32, i32
  }
  func.func @transform_5(%arg0: i32) -> (i32, i32, i32) {
    %c0_i32 = arith.constant 0 : i32
    %c0_i32_0 = arith.constant 0 : i32
    %c0_i32_1 = arith.constant 0 : i32
    %c0_i32_2 = arith.constant 0 : i32
    return %c0_i32, %c0_i32_0, %c0_i32_1 : i32, i32, i32
  }
  func.func @transform_6(%arg0: i32) -> (i32, i32) {
    %c0_i32 = arith.constant 0 : i32
    %c0_i32_0 = arith.constant 0 : i32
    %c0_i32_1 = arith.constant 0 : i32
    return %c0_i32, %c0_i32_0 : i32, i32
  }
  func.func @transform_7(%arg0: i32) -> (i32, i32) {
    %c0_i32 = arith.constant 0 : i32
    %c0_i32_0 = arith.constant 0 : i32
    %c0_i32_1 = arith.constant 0 : i32
    return %c0_i32, %c0_i32_0 : i32, i32
  }
  func.func @transform_8(%arg0: i32) -> (i32, i32) {
    %c0_i32 = arith.constant 0 : i32
    %c0_i32_0 = arith.constant 0 : i32
    return %arg0, %c0_i32 : i32, i32
  }
}

</mosaic_0001>

<llo_original>
// kernel: tpu_custom_call.1
$region0: #{tpu_custom_call.1}
  #allocation0 [shape = 'u32[]', space=smem, size = 0x4, offset = 0x4, fixed_abs, tag = 'smem constant byte address 0x4 - core index']
  #allocation1 [shape = 'u32[144,128]{1,0:T(1,128)}', space=vmem, size = 0x12000, scoped, tag = 'internal scratch']
  #allocation2 [shape = 'f32[64,32]{1,0:T(8,128)}', space=vmem, size = 0x8000, scoped, tag = 'scratch operand']
  #allocation3 [shape = 'f32[64,128]{1,0:T(8,128)}', space=vmem, size = 0x8000, scoped, tag = 'scratch operand']
  #allocation4 [shape = 'f32[8,32]{1,0:T(8,128)}', space=vmem, size = 0x1000, scoped, tag = 'scratch operand']
  #allocation5 [shape = 'f32[8,32]{1,0:T(8,128)}', space=vmem, size = 0x1000, scoped, tag = 'scratch operand']
  %s0 = inlined_call_operand.vmem [shape: bf16[64,16], index: 0, kind: input, shape index: {}]
  %s1 = inlined_call_operand.hbm [shape: f32[8,32], index: 1, kind: input, shape index: {}]
  %s2 = inlined_call_operand.hbm [shape: bf16[16,32], index: 2, kind: input, shape index: {}]
  %s3 = inlined_call_operand.vmem [shape: bf16[2,32,128], index: 3, kind: input, shape index: {}]
  %s4 = inlined_call_operand.vmem [shape: bf16[2,32,128], index: 4, kind: input, shape index: {}]
  %s5 = inlined_call_operand.vmem [shape: f32[2,1,128], index: 5, kind: input, shape index: {}]
  %s6 = inlined_call_operand.vmem [shape: bf16[32,8], index: 6, kind: input, shape index: {}]
  %s7 = inlined_call_operand.vmem [shape: f32[1,8], index: 7, kind: input, shape index: {}]
  %s8 = inlined_call_operand.hbm [shape: f32[8,8], index: 8, kind: output, shape index: {}]
  %s9 = sld [smem:[#allocation0]]
  $region50: #{tpu_custom_call.1} parent=0
    _
  %s11 = ssub.s32 1, %s9
  %s12 = scalar_select 0, %s11, %s9
  $region1: #{tpu_custom_call.1} parent=0
    #allocation6 [shape = 'u8[4096]{0}', space=vmem, size = 0x1000, scoped, tag = 'input window, operand 1, single buffered']
    #allocation7 [shape = 's32[1]{0}', space=sflag, size = 0x4, scoped, tag = 'scoped memory for tpu_custom_call.1']
    #allocation8 [shape = 's32[1]{0}', space=sflag, size = 0x4, scoped, tag = 'scoped memory for tpu_custom_call.1']
    #allocation9 [shape = 'u8[4096]{0}', space=vmem, size = 0x1000, scoped, tag = 'input window, operand 2, single buffered']
    #allocation10 [shape = 's32[1]{0}', space=sflag, size = 0x4, scoped, tag = 'scoped memory for tpu_custom_call.1']
    #allocation11 [shape = 'u8[4096]{0}', space=vmem, size = 0x1000, scoped, tag = 'output window, operand 0, single buffered']
    %13 = vsyncpa [#allocation7], 0
    %14 = vsyncpa [#allocation10], 0
    %15 = vsyncpa [#allocation8], 0
    // Predicated region
    $region2: #{tpu_custom_call.1} parent=1 // pred_check
      _
    $region3: #{tpu_custom_call.1} parent=1 // pred_check_branch
      %17 = sbr.rel (0) target = $region5
    $region4: #{tpu_custom_call.1} parent=1 // pred_region
      _
    $region5: #{tpu_custom_call.1} parent=1 // pred_fallthru
      _
    // Predicated region
    $region6: #{tpu_custom_call.1} parent=1 // pred_check
      _
    $region7: #{tpu_custom_call.1} parent=1 // pred_check_branch
      %19 = sbr.rel (0) target = $region9
    $region8: #{tpu_custom_call.1} parent=1 // pred_region
      %s21 = ssub.s32 128, 128
      %22 = vsyncadd [#allocation7], %s21
      %s24 = sshll.u32 [#allocation6], 4
      %s25 = int_to_ptr.vmem [resolvable:$true] %s24
      %27 = dma.hbm_to_vmem [thread:$0]  %s1, 128, %s25, [#allocation7]
    $region9: #{tpu_custom_call.1} parent=1 // pred_fallthru
      _
    // Predicated region
    $region10: #{tpu_custom_call.1} parent=1 // pred_check
      _
    $region11: #{tpu_custom_call.1} parent=1 // pred_check_branch
      %29 = sbr.rel (0) target = $region13
    $region12: #{tpu_custom_call.1} parent=1 // pred_region
      %s31 = ssub.s32 128, 128
      %32 = vsyncadd [#allocation10], %s31
      %s33 = sshll.u32 [#allocation9], 4
      %s34 = int_to_ptr.vmem [resolvable:$true] %s33
      %39 = dma.hbm_to_vmem [thread:$0]  %s2, 128, %s34, [#allocation10], 64, 64, 4
    $region13: #{tpu_custom_call.1} parent=1 // pred_fallthru
      _
    // Predicated region
    $region14: #{tpu_custom_call.1} parent=1 // pred_check
      _
    $region15: #{tpu_custom_call.1} parent=1 // pred_check_branch
      %41 = sbr.rel (0) target = $region17
    $region16: #{tpu_custom_call.1} parent=1 // pred_region
      _
    $region17: #{tpu_custom_call.1} parent=1 // pred_fallthru
      _
    // Predicated region
    $region18: #{tpu_custom_call.1} parent=1 // pred_check
      _
    $region19: #{tpu_custom_call.1} parent=1 // pred_check_branch
      %43 = sbr.rel (0) target = $region21
    $region20: #{tpu_custom_call.1} parent=1 // pred_region
      _
    $region21: #{tpu_custom_call.1} parent=1 // pred_fallthru
      _
    // Predicated region
    $region22: #{tpu_custom_call.1} parent=1 // pred_check
      _
    $region23: #{tpu_custom_call.1} parent=1 // pred_check_branch
      %45 = sbr.rel (0) target = $region25
    $region24: #{tpu_custom_call.1} parent=1 // pred_region
      _
    $region25: #{tpu_custom_call.1} parent=1 // pred_fallthru
      _
    // Predicated region
    $region26: #{tpu_custom_call.1} parent=1 // pred_check
      _
    $region27: #{tpu_custom_call.1} parent=1 // pred_check_branch
      %47 = sbr.rel (0) target = $region29
    $region28: #{tpu_custom_call.1} parent=1 // pred_region
      _
    $region29: #{tpu_custom_call.1} parent=1 // pred_fallthru
      _
    // Predicated region
    $region30: #{tpu_custom_call.1} parent=1 // pred_check
      _
    $region31: #{tpu_custom_call.1} parent=1 // pred_check_branch
      %49 = sbr.rel (0) target = $region33
    $region32: #{tpu_custom_call.1} parent=1 // pred_region
      _
    $region33: #{tpu_custom_call.1} parent=1 // pred_fallthru
      _
    // Predicated region
    $region34: #{tpu_custom_call.1} parent=1 // pred_check
      _
    $region35: #{tpu_custom_call.1} parent=1 // pred_check_branch
      %51 = sbr.rel (0) target = $region37
    $region36: #{tpu_custom_call.1} parent=1 // pred_region
      %52 = dma.done [#allocation7], 128
    $region37: #{tpu_custom_call.1} parent=1 // pred_fallthru
      _
    // Predicated region
    $region38: #{tpu_custom_call.1} parent=1 // pred_check
      _
    $region39: #{tpu_custom_call.1} parent=1 // pred_check_branch
      %54 = sbr.rel (0) target = $region41
    $region40: #{tpu_custom_call.1} parent=1 // pred_region
      %55 = dma.done [#allocation10], 128
    $region41: #{tpu_custom_call.1} parent=1 // pred_fallthru
      _
    %v57 = vld [vmem:[%s0] sm:$0xf]
    %v58 = vld [vmem:[%s0 + $0x4] sm:$0xf]
    %v59 = vld [vmem:[%s0 + $0x8] sm:$0xf]
    %v60 = vld [vmem:[%s0 + $0xc] sm:$0xf]
    %v61 = vld [vmem:[%s0 + $0x10] sm:$0xf]
    %v62 = vld [vmem:[%s0 + $0x14] sm:$0xf]
    %v63 = vld [vmem:[%s0 + $0x18] sm:$0xf]
    %v64 = vld [vmem:[%s0 + $0x1c] sm:$0xf]
    %v65 = vld [vmem:[#allocation9] sm:$0xf]
    %v66 = vld [vmem:[#allocation9 + $0x4] sm:$0xf]
    %v75 = vunpack.c.l.b16 %v57
    %v76 = vunpack.c.l.b16 %v58
    %v77 = vunpack.c.l.b16 %v59
    %v78 = vunpack.c.l.b16 %v60
    %v79 = vunpack.c.l.b16 %v61
    %v80 = vunpack.c.l.b16 %v62
    %v81 = vunpack.c.l.b16 %v63
    %v82 = vunpack.c.l.b16 %v64
    %v83 = vpack.c.b16 %v76, %v75
    %v84 = vpack.c.b16 %v78, %v77
    %v85 = vpack.c.b16 %v80, %v79
    %v86 = vpack.c.b16 %v82, %v81
    %v89 = vunpack.c.l.b16 %v65
    %v90 = vunpack.c.l.b16 %v66
    %v91 = vpack.c.b16 %v90, %v89
    %vm93 = vcmask 130048
    %v95 = vsel %vm93, %v83, 0
    %v98 = vsel %vm93, %v84, 0
    %v101 = vsel %vm93, %v85, 0
    %v104 = vsel %vm93, %v86, 0
    %106 = vmatprep.subr.bf16.mxu0 0
    %107 = vmatpush1.bf16.msra.mxu0 %v91
    %108 = vmatprep.subr.bf16.mxu0 0
    %109 = vmatpush1.bf16.msra.mxu0 0
    %110 = vmatprep.subr.bf16.mxu0 0
    %111 = vmatpush1.bf16.msra.mxu0 0
    %112 = vmatprep.subr.bf16.mxu0 0
    %113 = vmatpush1.bf16.msra.mxu0 0
    %114 = vmatprep.subr.bf16.mxu0 0
    %115 = vmatpush1.bf16.msra.mxu0 0
    %116 = vmatprep.subr.bf16.mxu0 0
    %117 = vmatpush1.bf16.msra.mxu0 0
    %118 = vmatprep.subr.bf16.mxu0 0
    %119 = vmatpush1.bf16.msra.mxu0 0
    %120 = vmatprep.subr.bf16.mxu0 0
    %121 = vmatpush1.bf16.msra.mxu0 0
    %122 = vmatprep.subr.bf16.mxu0 0
    %123 = vmatpush1.bf16.msra.mxu0 0
    %124 = vmatprep.subr.bf16.mxu0 0
    %125 = vmatpush1.bf16.msra.mxu0 0
    %126 = vmatprep.subr.bf16.mxu0 0
    %127 = vmatpush1.bf16.msra.mxu0 0
    %128 = vmatprep.subr.bf16.mxu0 0
    %129 = vmatpush1.bf16.msra.mxu0 0
    %130 = vmatprep.subr.bf16.mxu0 0
    %131 = vmatpush1.bf16.msra.mxu0 0
    %132 = vmatprep.subr.bf16.mxu0 0
    %133 = vmatpush1.bf16.msra.mxu0 0
    %134 = vmatprep.subr.bf16.mxu0 0
    %135 = vmatpush1.bf16.msra.mxu0 0
    %136 = vmatprep.subr.bf16.mxu0 0
    %137 = vmatpush1.bf16.msra.mxu0 0
    %138 = vmatprep.mubr.bf16.mxu0 0
    %139 = vmatmul.mubr.bf16.gmra.mrb[0].mxu0 %v95
    %v140 = vpop.f32.mrb[0].mxu0
    %v141 = vadd.f32 0.0, %v140
    %v142 = vpop.f32.mrb[0].mxu0
    %v143 = vpop.f32.mrb[0].mxu0
    %v144 = vadd.f32 0.0, %v143
    %v145 = vpop.f32.mrb[0].mxu0
    %146 = vmatprep.mubr.bf16.mxu0 0
    %147 = vmatmul.mubr.bf16.gmra.mrb[0].mxu0 %v98
    %v148 = vpop.f32.mrb[0].mxu0
    %v149 = vadd.f32 0.0, %v148
    %v150 = vpop.f32.mrb[0].mxu0
    %v151 = vpop.f32.mrb[0].mxu0
    %v152 = vadd.f32 0.0, %v151
    %v153 = vpop.f32.mrb[0].mxu0
    %154 = vmatprep.mubr.bf16.mxu0 0
    %155 = vmatmul.mubr.bf16.gmra.mrb[0].mxu0 %v101
    %v156 = vpop.f32.mrb[0].mxu0
    %v157 = vadd.f32 0.0, %v156
    %v158 = vpop.f32.mrb[0].mxu0
    %v159 = vpop.f32.mrb[0].mxu0
    %v160 = vadd.f32 0.0, %v159
    %v161 = vpop.f32.mrb[0].mxu0
    %162 = vmatprep.mubr.bf16.mxu0 0
    %163 = vmatmul.mubr.bf16.gmra.mrb[0].mxu0 %v104
    %v164 = vpop.f32.mrb[0].mxu0
    %v165 = vadd.f32 0.0, %v164
    %v166 = vpop.f32.mrb[0].mxu0
    %v167 = vpop.f32.mrb[0].mxu0
    %v168 = vadd.f32 0.0, %v167
    %v169 = vpop.f32.mrb[0].mxu0
    %170 = vdwg.mxu0
    %vm171 = vcmask 261120
    %172 = vst.msk [vmem:[#allocation2] sm:$0xff] %vm171, %v141
    %173 = vst.msk [vmem:[#allocation2 + $0x8] sm:$0xff] %vm171, %v144
    %174 = vst.msk [vmem:[#allocation2 + $0x10] sm:$0xff] %vm171, %v149
    %175 = vst.msk [vmem:[#allocation2 + $0x18] sm:$0xff] %vm171, %v152
    %176 = vst.msk [vmem:[#allocation2 + $0x20] sm:$0xff] %vm171, %v157
    %177 = vst.msk [vmem:[#allocation2 + $0x28] sm:$0xff] %vm171, %v160
    %178 = vst.msk [vmem:[#allocation2 + $0x30] sm:$0xff] %vm171, %v165
    %179 = vst.msk [vmem:[#allocation2 + $0x38] sm:$0xff] %vm171, %v168
    %v180 = vld [vmem:[#allocation2] sm:$0xff]
    %v181 = vld [vmem:[#allocation6] sm:$0x1]
    %v182 = vlaneseq
    %v183 = vshrl.u32 %v182, 7
    %v184 = vsub.s32 0, %v183
    %v185 = vrot.slane %v181, %v184
    %v186 = vadd.f32 %v180, %v185
    %187 = vst.msk [vmem:[#allocation2] sm:$0xff] %vm171, %v186
    %s188 = scalar_lea.vmem [#allocation2], 8
    %v189 = vld [vmem:[%s188] sm:$0xff]
    %v190 = vld [vmem:[#allocation6 + $0x1] sm:$0x1]
    %v191 = vlaneseq
    %v192 = vshrl.u32 %v191, 7
    %v193 = vsub.s32 0, %v192
    %v194 = vrot.slane %v190, %v193
    %v195 = vadd.f32 %v189, %v194
    %196 = vst.msk [vmem:[%s188] sm:$0xff] %vm171, %v195
    %s197 = scalar_lea.vmem [#allocation2], 16
    %v198 = vld [vmem:[%s197] sm:$0xff]
    %v199 = vld [vmem:[#allocation6 + $0x2] sm:$0x1]
    %v200 = vlaneseq
    %v201 = vshrl.u32 %v200, 7
    %v202 = vsub.s32 0, %v201
    %v203 = vrot.slane %v199, %v202
    %v204 = vadd.f32 %v198, %v203
    %205 = vst.msk [vmem:[%s197] sm:$0xff] %vm171, %v204
    %s206 = scalar_lea.vmem [#allocation2], 24
    %v207 = vld [vmem:[%s206] sm:$0xff]
    %v208 = vld [vmem:[#allocation6 + $0x3] sm:$0x1]
    %v209 = vlaneseq
    %v210 = vshrl.u32 %v209, 7
    %v211 = vsub.s32 0, %v210
    %v212 = vrot.slane %v208, %v211
    %v213 = vadd.f32 %v207, %v212
    %214 = vst.msk [vmem:[%s206] sm:$0xff] %vm171, %v213
    %s215 = scalar_lea.vmem [#allocation2], 32
    %v216 = vld [vmem:[%s215] sm:$0xff]
    %v217 = vld [vmem:[#allocation6 + $0x4] sm:$0x1]
    %v218 = vlaneseq
    %v219 = vshrl.u32 %v218, 7
    %v220 = vsub.s32 0, %v219
    %v221 = vrot.slane %v217, %v220
    %v222 = vadd.f32 %v216, %v221
    %223 = vst.msk [vmem:[%s215] sm:$0xff] %vm171, %v222
    %s224 = scalar_lea.vmem [#allocation2], 40
    %v225 = vld [vmem:[%s224] sm:$0xff]
    %v226 = vld [vmem:[#allocation6 + $0x5] sm:$0x1]
    %v227 = vlaneseq
    %v228 = vshrl.u32 %v227, 7
    %v229 = vsub.s32 0, %v228
    %v230 = vrot.slane %v226, %v229
    %v231 = vadd.f32 %v225, %v230
    %232 = vst.msk [vmem:[%s224] sm:$0xff] %vm171, %v231
    %s233 = scalar_lea.vmem [#allocation2], 48
    %v234 = vld [vmem:[%s233] sm:$0xff]
    %v235 = vld [vmem:[#allocation6 + $0x6] sm:$0x1]
    %v236 = vlaneseq
    %v237 = vshrl.u32 %v236, 7
    %v238 = vsub.s32 0, %v237
    %v239 = vrot.slane %v235, %v238
    %v240 = vadd.f32 %v234, %v239
    %241 = vst.msk [vmem:[%s233] sm:$0xff] %vm171, %v240
    %s242 = scalar_lea.vmem [#allocation2], 56
    %v243 = vld [vmem:[%s242] sm:$0xff]
    %v244 = vld [vmem:[#allocation6 + $0x7] sm:$0x1]
    %v245 = vlaneseq
    %v246 = vshrl.u32 %v245, 7
    %v247 = vsub.s32 0, %v246
    %v248 = vrot.slane %v244, %v247
    %v249 = vadd.f32 %v243, %v248
    %250 = vst.msk [vmem:[%s242] sm:$0xff] %vm171, %v249
    %v251 = vld [vmem:[#allocation2] sm:$0xff]
    %v252 = vld [vmem:[#allocation2 + $0x8] sm:$0xff]
    %v253 = vld [vmem:[#allocation2 + $0x10] sm:$0xff]
    %v254 = vld [vmem:[#allocation2 + $0x18] sm:$0xff]
    %v255 = vld [vmem:[#allocation2 + $0x20] sm:$0xff]
    %v256 = vld [vmem:[#allocation2 + $0x28] sm:$0xff]
    %v257 = vld [vmem:[#allocation2 + $0x30] sm:$0xff]
    %v258 = vld [vmem:[#allocation2 + $0x38] sm:$0xff]
    %v259 = vpack.c.bf16 %v252, %v251
    %v260 = vpack.c.bf16 %v254, %v253
    %v261 = vpack.c.bf16 %v256, %v255
    %v262 = vpack.c.bf16 %v258, %v257
    %v263 = vld [vmem:[%s3] sm:$0xf]
    %v264 = vld [vmem:[%s3 + $0x4] sm:$0xf]
    %v265 = vld [vmem:[%s3 + $0x8] sm:$0xf]
    %v266 = vld [vmem:[%s3 + $0xc] sm:$0xf]
    %v267 = vld [vmem:[%s5] sm:$0x1]
    %v269 = vlaneseq
    %v270 = vshrl.u32 %v269, 7
    %v271 = vsub.s32 0, %v270
    %v272 = vrot.slane %v267, %v271
    %v278 = vunpack.c.l.b16 %v263
    %v279 = vunpack.c.l.b16 %v264
    %v280 = vunpack.c.l.b16 %v265
    %v281 = vunpack.c.l.b16 %v266
    %v282 = vpack.c.b16 %v279, %v278
    %v283 = vpack.c.b16 %v281, %v280
    %v287 = vsel %vm171, %v259, 0
    %v290 = vsel %vm171, %v260, 0
    %v293 = vsel %vm171, %v261, 0
    %v296 = vsel %vm171, %v262, 0
    %298 = vmatprep.subr.bf16.mxu0 0
    %299 = vmatpush1.bf16.msra.mxu0 %v282
    %300 = vmatprep.subr.bf16.mxu0 0
    %301 = vmatpush1.bf16.msra.mxu0 %v283
    %302 = vmatprep.subr.bf16.mxu0 0
    %303 = vmatpush1.bf16.msra.mxu0 0
    %304 = vmatprep.subr.bf16.mxu0 0
    %305 = vmatpush1.bf16.msra.mxu0 0
    %306 = vmatprep.subr.bf16.mxu0 0
    %307 = vmatpush1.bf16.msra.mxu0 0
    %308 = vmatprep.subr.bf16.mxu0 0
    %309 = vmatpush1.bf16.msra.mxu0 0
    %310 = vmatprep.subr.bf16.mxu0 0
    %311 = vmatpush1.bf16.msra.mxu0 0
    %312 = vmatprep.subr.bf16.mxu0 0
    %313 = vmatpush1.bf16.msra.mxu0 0
    %314 = vmatprep.subr.bf16.mxu0 0
    %315 = vmatpush1.bf16.msra.mxu0 0
    %316 = vmatprep.subr.bf16.mxu0 0
    %317 = vmatpush1.bf16.msra.mxu0 0
    %318 = vmatprep.subr.bf16.mxu0 0
    %319 = vmatpush1.bf16.msra.mxu0 0
    %320 = vmatprep.subr.bf16.mxu0 0
    %321 = vmatpush1.bf16.msra.mxu0 0
    %322 = vmatprep.subr.bf16.mxu0 0
    %323 = vmatpush1.bf16.msra.mxu0 0
    %324 = vmatprep.subr.bf16.mxu0 0
    %325 = vmatpush1.bf16.msra.mxu0 0
    %326 = vmatprep.subr.bf16.mxu0 0
    %327 = vmatpush1.bf16.msra.mxu0 0
    %328 = vmatprep.subr.bf16.mxu0 0
    %329 = vmatpush1.bf16.msra.mxu0 0
    %330 = vmatprep.mubr.bf16.mxu0 0
    %331 = vmatmul.mubr.bf16.gmra.mrb[0].mxu0 %v287
    %v332 = vpop.f32.mrb[0].mxu0
    %v333 = vadd.f32 %v272, %v332
    %v334 = vpop.f32.mrb[0].mxu0
    %v335 = vpop.f32.mrb[0].mxu0
    %v336 = vadd.f32 %v272, %v335
    %v337 = vpop.f32.mrb[0].mxu0
    %338 = vmatprep.mubr.bf16.mxu0 0
    %339 = vmatmul.mubr.bf16.gmra.mrb[0].mxu0 %v290
    %v340 = vpop.f32.mrb[0].mxu0
    %v341 = vadd.f32 %v272, %v340
    %v342 = vpop.f32.mrb[0].mxu0
    %v343 = vpop.f32.mrb[0].mxu0
    %v344 = vadd.f32 %v272, %v343
    %v345 = vpop.f32.mrb[0].mxu0
    %346 = vmatprep.mubr.bf16.mxu0 0
    %347 = vmatmul.mubr.bf16.gmra.mrb[0].mxu0 %v293
    %v348 = vpop.f32.mrb[0].mxu0
    %v349 = vadd.f32 %v272, %v348
    %v350 = vpop.f32.mrb[0].mxu0
    %v351 = vpop.f32.mrb[0].mxu0
    %v352 = vadd.f32 %v272, %v351
    %v353 = vpop.f32.mrb[0].mxu0
    %354 = vmatprep.mubr.bf16.mxu0 0
    %355 = vmatmul.mubr.bf16.gmra.mrb[0].mxu0 %v296
    %v356 = vpop.f32.mrb[0].mxu0
    %v357 = vadd.f32 %v272, %v356
    %v358 = vpop.f32.mrb[0].mxu0
    %v359 = vpop.f32.mrb[0].mxu0
    %v360 = vadd.f32 %v272, %v359
    %v361 = vpop.f32.mrb[0].mxu0
    %362 = vdwg.mxu0
    %363 = vst [vmem:[#allocation3] sm:$0xff] %v333
    %364 = vst [vmem:[#allocation3 + $0x8] sm:$0xff] %v336
    %365 = vst [vmem:[#allocation3 + $0x10] sm:$0xff] %v341
    %366 = vst [vmem:[#allocation3 + $0x18] sm:$0xff] %v344
    %367 = vst [vmem:[#allocation3 + $0x20] sm:$0xff] %v349
    %368 = vst [vmem:[#allocation3 + $0x28] sm:$0xff] %v352
    %369 = vst [vmem:[#allocation3 + $0x30] sm:$0xff] %v357
    %370 = vst [vmem:[#allocation3 + $0x38] sm:$0xff] %v360
    %v371 = vld [vmem:[%s4] sm:$0xf]
    %v372 = vld [vmem:[%s4 + $0x4] sm:$0xf]
    %v373 = vld [vmem:[%s4 + $0x8] sm:$0xf]
    %v374 = vld [vmem:[%s4 + $0xc] sm:$0xf]
    %375 = vst.msk [vmem:[#allocation4] sm:$0xff] %vm171, 0.0
    %376 = vst.msk [vmem:[#allocation5] sm:$0xff] %vm171, 0.0
    %v377 = vld [vmem:[#allocation3] sm:$0xff]
    %v378 = vld [vmem:[#allocation4] sm:$0xff]
    %v379 = vpack.c.bf16 %v378, %v378
    %v384 = vunpack.c.l.b16 %v371
    %v385 = vunpack.c.l.b16 %v372
    %v386 = vunpack.c.l.b16 %v373
    %v387 = vunpack.c.l.b16 %v374
    %v388 = vpack.c.b16 %v385, %v384
    %v389 = vpack.c.b16 %v387, %v386
    %v393 = vsel %vm171, %v379, 0
    %395 = vmatprep.subr.bf16.mxu0 0
    %396 = vmatpush1.bf16.msra.mxu0 %v388
    %397 = vmatprep.subr.bf16.mxu0 0
    %398 = vmatpush1.bf16.msra.mxu0 %v389
    %399 = vmatprep.subr.bf16.mxu0 0
    %400 = vmatpush1.bf16.msra.mxu0 0
    %401 = vmatprep.subr.bf16.mxu0 0
    %402 = vmatpush1.bf16.msra.mxu0 0
    %403 = vmatprep.subr.bf16.mxu0 0
    %404 = vmatpush1.bf16.msra.mxu0 0
    %405 = vmatprep.subr.bf16.mxu0 0
    %406 = vmatpush1.bf16.msra.mxu0 0
    %407 = vmatprep.subr.bf16.mxu0 0
    %408 = vmatpush1.bf16.msra.mxu0 0
    %409 = vmatprep.subr.bf16.mxu0 0
    %410 = vmatpush1.bf16.msra.mxu0 0
    %411 = vmatprep.subr.bf16.mxu0 0
    %412 = vmatpush1.bf16.msra.mxu0 0
    %413 = vmatprep.subr.bf16.mxu0 0
    %414 = vmatpush1.bf16.msra.mxu0 0
    %415 = vmatprep.subr.bf16.mxu0 0
    %416 = vmatpush1.bf16.msra.mxu0 0
    %417 = vmatprep.subr.bf16.mxu0 0
    %418 = vmatpush1.bf16.msra.mxu0 0
    %419 = vmatprep.subr.bf16.mxu0 0
    %420 = vmatpush1.bf16.msra.mxu0 0
    %421 = vmatprep.subr.bf16.mxu0 0
    %422 = vmatpush1.bf16.msra.mxu0 0
    %423 = vmatprep.subr.bf16.mxu0 0
    %424 = vmatpush1.bf16.msra.mxu0 0
    %425 = vmatprep.subr.bf16.mxu0 0
    %426 = vmatpush1.bf16.msra.mxu0 0
    %427 = vmatprep.mubr.bf16.mxu0 0
    %428 = vmatmul.mubr.bf16.gmra.mrb[0].mxu0 %v393
    %v429 = vpop.f32.mrb[0].mxu0
    %v430 = vadd.f32 0.0, %v429
    %v431 = vpop.f32.mrb[0].mxu0
    %v432 = vpop.f32.mrb[0].mxu0
    %v433 = vpop.f32.mrb[0].mxu0
    %434 = vdwg.mxu0
    %v435 = vadd.f32 %v377, %v430
    %v436 = vxor.u32 %v435, 2147483648
    %v437 = vmul.f32 %v436, 1.442695
    %v438 = vpow.pop %v437
    %v439 = vadd.f32 %v438, 1.0
    %v440 = vrcp.pop %v439
    %v441 = vmul.f32 1.0, %v440
    %v442 = vtanh.pop %v435
    %v443 = vld [vmem:[#allocation5] sm:$0xff]
    %445 = vrot.lane.b32.xlu0 %v443, 32
    %v446 = vpop.permute.xlu0 %445
    %v448 = vmul.f32 %v441, %v446
    %450 = vrot.lane.b32.xlu0 %v442, 64
    %v451 = vpop.permute.xlu0 %450
    %v453 = vmul.f32 %v441, %v451
    %455 = vrot.lane.b32.xlu0 %v453, 32
    %v456 = vpop.permute.xlu0 %455
    %v458 = vadd.f32 %v448, %v456
    %v459 = vtanh.pop %v458
    %461 = vrot.lane.b32.xlu0 %v459, 64
    %v462 = vpop.permute.xlu0 %461
    %v464 = vmul.f32 %v441, %v462
    %466 = vrot.lane.b32.xlu0 %v458, 96
    %v467 = vpop.permute.xlu0 %466
    %469 = vst.msk [vmem:[#allocation5] sm:$0xff] %vm171, %v467
    %471 = vrot.lane.b32.xlu0 %v464, 32
    %v472 = vpop.permute.xlu0 %471
    %474 = vst.msk [vmem:[#allocation4] sm:$0xff] %vm171, %v472
    %475 = vst.msk [vmem:[#allocation2] sm:$0xff] %vm171, %v472
    %s476 = scalar_lea.vmem [#allocation3], 8
    %v477 = vld [vmem:[%s476] sm:$0xff]
    %v478 = vld [vmem:[#allocation4] sm:$0xff]
    %v479 = vpack.c.bf16 %v478, %v478
    %v481 = vsel %vm171, %v479, 0
    %483 = vmatprep.subr.bf16.mxu0 0
    %484 = vmatpush1.bf16.msra.mxu0 %v388
    %485 = vmatprep.subr.bf16.mxu0 0
    %486 = vmatpush1.bf16.msra.mxu0 %v389
    %487 = vmatprep.subr.bf16.mxu0 0
    %488 = vmatpush1.bf16.msra.mxu0 0
    %489 = vmatprep.subr.bf16.mxu0 0
    %490 = vmatpush1.bf16.msra.mxu0 0
    %491 = vmatprep.subr.bf16.mxu0 0
    %492 = vmatpush1.bf16.msra.mxu0 0
    %493 = vmatprep.subr.bf16.mxu0 0
    %494 = vmatpush1.bf16.msra.mxu0 0
    %495 = vmatprep.subr.bf16.mxu0 0
    %496 = vmatpush1.bf16.msra.mxu0 0
    %497 = vmatprep.subr.bf16.mxu0 0
    %498 = vmatpush1.bf16.msra.mxu0 0
    %499 = vmatprep.subr.bf16.mxu0 0
    %500 = vmatpush1.bf16.msra.mxu0 0
    %501 = vmatprep.subr.bf16.mxu0 0
    %502 = vmatpush1.bf16.msra.mxu0 0
    %503 = vmatprep.subr.bf16.mxu0 0
    %504 = vmatpush1.bf16.msra.mxu0 0
    %505 = vmatprep.subr.bf16.mxu0 0
    %506 = vmatpush1.bf16.msra.mxu0 0
    %507 = vmatprep.subr.bf16.mxu0 0
    %508 = vmatpush1.bf16.msra.mxu0 0
    %509 = vmatprep.subr.bf16.mxu0 0
    %510 = vmatpush1.bf16.msra.mxu0 0
    %511 = vmatprep.subr.bf16.mxu0 0
    %512 = vmatpush1.bf16.msra.mxu0 0
    %513 = vmatprep.subr.bf16.mxu0 0
    %514 = vmatpush1.bf16.msra.mxu0 0
    %515 = vmatprep.mubr.bf16.mxu0 0
    %516 = vmatmul.mubr.bf16.gmra.mrb[0].mxu0 %v481
    %v517 = vpop.f32.mrb[0].mxu0
    %v518 = vadd.f32 0.0, %v517
    %v519 = vpop.f32.mrb[0].mxu0
    %v520 = vpop.f32.mrb[0].mxu0
    %v521 = vpop.f32.mrb[0].mxu0
    %522 = vdwg.mxu0
    %v523 = vadd.f32 %v477, %v518
    %v524 = vxor.u32 %v523, 2147483648
    %v525 = vmul.f32 %v524, 1.442695
    %v526 = vpow.pop %v525
    %v527 = vadd.f32 %v526, 1.0
    %v528 = vrcp.pop %v527
    %v529 = vmul.f32 1.0, %v528
    %v530 = vtanh.pop %v523
    %v531 = vld [vmem:[#allocation5] sm:$0xff]
    %533 = vrot.lane.b32.xlu0 %v531, 32
    %v534 = vpop.permute.xlu0 %533
    %v536 = vmul.f32 %v529, %v534
    %538 = vrot.lane.b32.xlu0 %v530, 64
    %v539 = vpop.permute.xlu0 %538
    %v541 = vmul.f32 %v529, %v539
    %543 = vrot.lane.b32.xlu0 %v541, 32
    %v544 = vpop.permute.xlu0 %543
    %v546 = vadd.f32 %v536, %v544
    %v547 = vtanh.pop %v546
    %549 = vrot.lane.b32.xlu0 %v547, 64
    %v550 = vpop.permute.xlu0 %549
    %v552 = vmul.f32 %v529, %v550
    %554 = vrot.lane.b32.xlu0 %v546, 96
    %v555 = vpop.permute.xlu0 %554
    %557 = vst.msk [vmem:[#allocation5] sm:$0xff] %vm171, %v555
    %559 = vrot.lane.b32.xlu0 %v552, 32
    %v560 = vpop.permute.xlu0 %559
    %562 = vst.msk [vmem:[#allocation4] sm:$0xff] %vm171, %v560
    %563 = vst.msk [vmem:[%s188] sm:$0xff] %vm171, %v560
    %s564 = scalar_lea.vmem [#allocation3], 16
    %v565 = vld [vmem:[%s564] sm:$0xff]
    %v566 = vld [vmem:[#allocation4] sm:$0xff]
    %v567 = vpack.c.bf16 %v566, %v566
    %v569 = vsel %vm171, %v567, 0
    %571 = vmatprep.subr.bf16.mxu0 0
    %572 = vmatpush1.bf16.msra.mxu0 %v388
    %573 = vmatprep.subr.bf16.mxu0 0
    %574 = vmatpush1.bf16.msra.mxu0 %v389
    %575 = vmatprep.subr.bf16.mxu0 0
    %576 = vmatpush1.bf16.msra.mxu0 0
    %577 = vmatprep.subr.bf16.mxu0 0
    %578 = vmatpush1.bf16.msra.mxu0 0
    %579 = vmatprep.subr.bf16.mxu0 0
    %580 = vmatpush1.bf16.msra.mxu0 0
    %581 = vmatprep.subr.bf16.mxu0 0
    %582 = vmatpush1.bf16.msra.mxu0 0
    %583 = vmatprep.subr.bf16.mxu0 0
    %584 = vmatpush1.bf16.msra.mxu0 0
    %585 = vmatprep.subr.bf16.mxu0 0
    %586 = vmatpush1.bf16.msra.mxu0 0
    %587 = vmatprep.subr.bf16.mxu0 0
    %588 = vmatpush1.bf16.msra.mxu0 0
    %589 = vmatprep.subr.bf16.mxu0 0
    %590 = vmatpush1.bf16.msra.mxu0 0
    %591 = vmatprep.subr.bf16.mxu0 0
    %592 = vmatpush1.bf16.msra.mxu0 0
    %593 = vmatprep.subr.bf16.mxu0 0
    %594 = vmatpush1.bf16.msra.mxu0 0
    %595 = vmatprep.subr.bf16.mxu0 0
    %596 = vmatpush1.bf16.msra.mxu0 0
    %597 = vmatprep.subr.bf16.mxu0 0
    %598 = vmatpush1.bf16.msra.mxu0 0
    %599 = vmatprep.subr.bf16.mxu0 0
    %600 = vmatpush1.bf16.msra.mxu0 0
    %601 = vmatprep.subr.bf16.mxu0 0
    %602 = vmatpush1.bf16.msra.mxu0 0
    %603 = vmatprep.mubr.bf16.mxu0 0
    %604 = vmatmul.mubr.bf16.gmra.mrb[0].mxu0 %v569
    %v605 = vpop.f32.mrb[0].mxu0
    %v606 = vadd.f32 0.0, %v605
    %v607 = vpop.f32.mrb[0].mxu0
    %v608 = vpop.f32.mrb[0].mxu0
    %v609 = vpop.f32.mrb[0].mxu0
    %610 = vdwg.mxu0
    %v611 = vadd.f32 %v565, %v606
    %v612 = vxor.u32 %v611, 2147483648
    %v613 = vmul.f32 %v612, 1.442695
    %v614 = vpow.pop %v613
    %v615 = vadd.f32 %v614, 1.0
    %v616 = vrcp.pop %v615
    %v617 = vmul.f32 1.0, %v616
    %v618 = vtanh.pop %v611
    %v619 = vld [vmem:[#allocation5] sm:$0xff]
    %621 = vrot.lane.b32.xlu0 %v619, 32
    %v622 = vpop.permute.xlu0 %621
    %v624 = vmul.f32 %v617, %v622
    %626 = vrot.lane.b32.xlu0 %v618, 64
    %v627 = vpop.permute.xlu0 %626
    %v629 = vmul.f32 %v617, %v627
    %631 = vrot.lane.b32.xlu0 %v629, 32
    %v632 = vpop.permute.xlu0 %631
    %v634 = vadd.f32 %v624, %v632
    %v635 = vtanh.pop %v634
    %637 = vrot.lane.b32.xlu0 %v635, 64
    %v638 = vpop.permute.xlu0 %637
    %v640 = vmul.f32 %v617, %v638
    %642 = vrot.lane.b32.xlu0 %v634, 96
    %v643 = vpop.permute.xlu0 %642
    %645 = vst.msk [vmem:[#allocation5] sm:$0xff] %vm171, %v643
    %647 = vrot.lane.b32.xlu0 %v640, 32
    %v648 = vpop.permute.xlu0 %647
    %650 = vst.msk [vmem:[#allocation4] sm:$0xff] %vm171, %v648
    %651 = vst.msk [vmem:[%s197] sm:$0xff] %vm171, %v648
    %s652 = scalar_lea.vmem [#allocation3], 24
    %v653 = vld [vmem:[%s652] sm:$0xff]
    %v654 = vld [vmem:[#allocation4] sm:$0xff]
    %v655 = vpack.c.bf16 %v654, %v654
    %v657 = vsel %vm171, %v655, 0
    %659 = vmatprep.subr.bf16.mxu0 0
    %660 = vmatpush1.bf16.msra.mxu0 %v388
    %661 = vmatprep.subr.bf16.mxu0 0
    %662 = vmatpush1.bf16.msra.mxu0 %v389
    %663 = vmatprep.subr.bf16.mxu0 0
    %664 = vmatpush1.bf16.msra.mxu0 0
    %665 = vmatprep.subr.bf16.mxu0 0
    %666 = vmatpush1.bf16.msra.mxu0 0
    %667 = vmatprep.subr.bf16.mxu0 0
    %668 = vmatpush1.bf16.msra.mxu0 0
    %669 = vmatprep.subr.bf16.mxu0 0
    %670 = vmatpush1.bf16.msra.mxu0 0
    %671 = vmatprep.subr.bf16.mxu0 0
    %672 = vmatpush1.bf16.msra.mxu0 0
    %673 = vmatprep.subr.bf16.mxu0 0
    %674 = vmatpush1.bf16.msra.mxu0 0
    %675 = vmatprep.subr.bf16.mxu0 0
    %676 = vmatpush1.bf16.msra.mxu0 0
    %677 = vmatprep.subr.bf16.mxu0 0
    %678 = vmatpush1.bf16.msra.mxu0 0
    %679 = vmatprep.subr.bf16.mxu0 0
    %680 = vmatpush1.bf16.msra.mxu0 0
    %681 = vmatprep.subr.bf16.mxu0 0
    %682 = vmatpush1.bf16.msra.mxu0 0
    %683 = vmatprep.subr.bf16.mxu0 0
    %684 = vmatpush1.bf16.msra.mxu0 0
    %685 = vmatprep.subr.bf16.mxu0 0
    %686 = vmatpush1.bf16.msra.mxu0 0
    %687 = vmatprep.subr.bf16.mxu0 0
    %688 = vmatpush1.bf16.msra.mxu0 0
    %689 = vmatprep.subr.bf16.mxu0 0
    %690 = vmatpush1.bf16.msra.mxu0 0
    %691 = vmatprep.mubr.bf16.mxu0 0
    %692 = vmatmul.mubr.bf16.gmra.mrb[0].mxu0 %v657
    %v693 = vpop.f32.mrb[0].mxu0
    %v694 = vadd.f32 0.0, %v693
    %v695 = vpop.f32.mrb[0].mxu0
    %v696 = vpop.f32.mrb[0].mxu0
    %v697 = vpop.f32.mrb[0].mxu0
    %698 = vdwg.mxu0
    %v699 = vadd.f32 %v653, %v694
    %v700 = vxor.u32 %v699, 2147483648
    %v701 = vmul.f32 %v700, 1.442695
    %v702 = vpow.pop %v701
    %v703 = vadd.f32 %v702, 1.0
    %v704 = vrcp.pop %v703
    %v705 = vmul.f32 1.0, %v704
    %v706 = vtanh.pop %v699
    %v707 = vld [vmem:[#allocation5] sm:$0xff]
    %709 = vrot.lane.b32.xlu0 %v707, 32
    %v710 = vpop.permute.xlu0 %709
    %v712 = vmul.f32 %v705, %v710
    %714 = vrot.lane.b32.xlu0 %v706, 64
    %v715 = vpop.permute.xlu0 %714
    %v717 = vmul.f32 %v705, %v715
    %719 = vrot.lane.b32.xlu0 %v717, 32
    %v720 = vpop.permute.xlu0 %719
    %v722 = vadd.f32 %v712, %v720
    %v723 = vtanh.pop %v722
    %725 = vrot.lane.b32.xlu0 %v723, 64
    %v726 = vpop.permute.xlu0 %725
    %v728 = vmul.f32 %v705, %v726
    %730 = vrot.lane.b32.xlu0 %v722, 96
    %v731 = vpop.permute.xlu0 %730
    %733 = vst.msk [vmem:[#allocation5] sm:$0xff] %vm171, %v731
    %735 = vrot.lane.b32.xlu0 %v728, 32
    %v736 = vpop.permute.xlu0 %735
    %738 = vst.msk [vmem:[#allocation4] sm:$0xff] %vm171, %v736
    %739 = vst.msk [vmem:[%s206] sm:$0xff] %vm171, %v736
    %s740 = scalar_lea.vmem [#allocation3], 32
    %v741 = vld [vmem:[%s740] sm:$0xff]
    %v742 = vld [vmem:[#allocation4] sm:$0xff]
    %v743 = vpack.c.bf16 %v742, %v742
    %v745 = vsel %vm171, %v743, 0
    %747 = vmatprep.subr.bf16.mxu0 0
    %748 = vmatpush1.bf16.msra.mxu0 %v388
    %749 = vmatprep.subr.bf16.mxu0 0
    %750 = vmatpush1.bf16.msra.mxu0 %v389
    %751 = vmatprep.subr.bf16.mxu0 0
    %752 = vmatpush1.bf16.msra.mxu0 0
    %753 = vmatprep.subr.bf16.mxu0 0
    %754 = vmatpush1.bf16.msra.mxu0 0
    %755 = vmatprep.subr.bf16.mxu0 0
    %756 = vmatpush1.bf16.msra.mxu0 0
    %757 = vmatprep.subr.bf16.mxu0 0
    %758 = vmatpush1.bf16.msra.mxu0 0
    %759 = vmatprep.subr.bf16.mxu0 0
    %760 = vmatpush1.bf16.msra.mxu0 0
    %761 = vmatprep.subr.bf16.mxu0 0
    %762 = vmatpush1.bf16.msra.mxu0 0
    %763 = vmatprep.subr.bf16.mxu0 0
    %764 = vmatpush1.bf16.msra.mxu0 0
    %765 = vmatprep.subr.bf16.mxu0 0
    %766 = vmatpush1.bf16.msra.mxu0 0
    %767 = vmatprep.subr.bf16.mxu0 0
    %768 = vmatpush1.bf16.msra.mxu0 0
    %769 = vmatprep.subr.bf16.mxu0 0
    %770 = vmatpush1.bf16.msra.mxu0 0
    %771 = vmatprep.subr.bf16.mxu0 0
    %772 = vmatpush1.bf16.msra.mxu0 0
    %773 = vmatprep.subr.bf16.mxu0 0
    %774 = vmatpush1.bf16.msra.mxu0 0
    %775 = vmatprep.subr.bf16.mxu0 0
    %776 = vmatpush1.bf16.msra.mxu0 0
    %777 = vmatprep.subr.bf16.mxu0 0
    %778 = vmatpush1.bf16.msra.mxu0 0
    %779 = vmatprep.mubr.bf16.mxu0 0
    %780 = vmatmul.mubr.bf16.gmra.mrb[0].mxu0 %v745
    %v781 = vpop.f32.mrb[0].mxu0
    %v782 = vadd.f32 0.0, %v781
    %v783 = vpop.f32.mrb[0].mxu0
    %v784 = vpop.f32.mrb[0].mxu0
    %v785 = vpop.f32.mrb[0].mxu0
    %786 = vdwg.mxu0
    %v787 = vadd.f32 %v741, %v782
    %v788 = vxor.u32 %v787, 2147483648
    %v789 = vmul.f32 %v788, 1.442695
    %v790 = vpow.pop %v789
    %v791 = vadd.f32 %v790, 1.0
    %v792 = vrcp.pop %v791
    %v793 = vmul.f32 1.0, %v792
    %v794 = vtanh.pop %v787
    %v795 = vld [vmem:[#allocation5] sm:$0xff]
    %797 = vrot.lane.b32.xlu0 %v795, 32
    %v798 = vpop.permute.xlu0 %797
    %v800 = vmul.f32 %v793, %v798
    %802 = vrot.lane.b32.xlu0 %v794, 64
    %v803 = vpop.permute.xlu0 %802
    %v805 = vmul.f32 %v793, %v803
    %807 = vrot.lane.b32.xlu0 %v805, 32
    %v808 = vpop.permute.xlu0 %807
    %v810 = vadd.f32 %v800, %v808
    %v811 = vtanh.pop %v810
    %813 = vrot.lane.b32.xlu0 %v811, 64
    %v814 = vpop.permute.xlu0 %813
    %v816 = vmul.f32 %v793, %v814
    %818 = vrot.lane.b32.xlu0 %v810, 96
    %v819 = vpop.permute.xlu0 %818
    %821 = vst.msk [vmem:[#allocation5] sm:$0xff] %vm171, %v819
    %823 = vrot.lane.b32.xlu0 %v816, 32
    %v824 = vpop.permute.xlu0 %823
    %826 = vst.msk [vmem:[#allocation4] sm:$0xff] %vm171, %v824
    %827 = vst.msk [vmem:[%s215] sm:$0xff] %vm171, %v824
    %s828 = scalar_lea.vmem [#allocation3], 40
    %v829 = vld [vmem:[%s828] sm:$0xff]
    %v830 = vld [vmem:[#allocation4] sm:$0xff]
    %v831 = vpack.c.bf16 %v830, %v830
    %v833 = vsel %vm171, %v831, 0
    %835 = vmatprep.subr.bf16.mxu0 0
    %836 = vmatpush1.bf16.msra.mxu0 %v388
    %837 = vmatprep.subr.bf16.mxu0 0
    %838 = vmatpush1.bf16.msra.mxu0 %v389
    %839 = vmatprep.subr.bf16.mxu0 0
    %840 = vmatpush1.bf16.msra.mxu0 0
    %841 = vmatprep.subr.bf16.mxu0 0
    %842 = vmatpush1.bf16.msra.mxu0 0
    %843 = vmatprep.subr.bf16.mxu0 0
    %844 = vmatpush1.bf16.msra.mxu0 0
    %845 = vmatprep.subr.bf16.mxu0 0
    %846 = vmatpush1.bf16.msra.mxu0 0
    %847 = vmatprep.subr.bf16.mxu0 0
    %848 = vmatpush1.bf16.msra.mxu0 0
    %849 = vmatprep.subr.bf16.mxu0 0
    %850 = vmatpush1.bf16.msra.mxu0 0
    %851 = vmatprep.subr.bf16.mxu0 0
    %852 = vmatpush1.bf16.msra.mxu0 0
    %853 = vmatprep.subr.bf16.mxu0 0
    %854 = vmatpush1.bf16.msra.mxu0 0
    %855 = vmatprep.subr.bf16.mxu0 0
    %856 = vmatpush1.bf16.msra.mxu0 0
    %857 = vmatprep.subr.bf16.mxu0 0
    %858 = vmatpush1.bf16.msra.mxu0 0
    %859 = vmatprep.subr.bf16.mxu0 0
    %860 = vmatpush1.bf16.msra.mxu0 0
    %861 = vmatprep.subr.bf16.mxu0 0
    %862 = vmatpush1.bf16.msra.mxu0 0
    %863 = vmatprep.subr.bf16.mxu0 0
    %864 = vmatpush1.bf16.msra.mxu0 0
    %865 = vmatprep.subr.bf16.mxu0 0
    %866 = vmatpush1.bf16.msra.mxu0 0
    %867 = vmatprep.mubr.bf16.mxu0 0
    %868 = vmatmul.mubr.bf16.gmra.mrb[0].mxu0 %v833
    %v869 = vpop.f32.mrb[0].mxu0
    %v870 = vadd.f32 0.0, %v869
    %v871 = vpop.f32.mrb[0].mxu0
    %v872 = vpop.f32.mrb[0].mxu0
    %v873 = vpop.f32.mrb[0].mxu0
    %874 = vdwg.mxu0
    %v875 = vadd.f32 %v829, %v870
    %v876 = vxor.u32 %v875, 2147483648
    %v877 = vmul.f32 %v876, 1.442695
    %v878 = vpow.pop %v877
    %v879 = vadd.f32 %v878, 1.0
    %v880 = vrcp.pop %v879
    %v881 = vmul.f32 1.0, %v880
    %v882 = vtanh.pop %v875
    %v883 = vld [vmem:[#allocation5] sm:$0xff]
    %885 = vrot.lane.b32.xlu0 %v883, 32
    %v886 = vpop.permute.xlu0 %885
    %v888 = vmul.f32 %v881, %v886
    %890 = vrot.lane.b32.xlu0 %v882, 64
    %v891 = vpop.permute.xlu0 %890
    %v893 = vmul.f32 %v881, %v891
    %895 = vrot.lane.b32.xlu0 %v893, 32
    %v896 = vpop.permute.xlu0 %895
    %v898 = vadd.f32 %v888, %v896
    %v899 = vtanh.pop %v898
    %901 = vrot.lane.b32.xlu0 %v899, 64
    %v902 = vpop.permute.xlu0 %901
    %v904 = vmul.f32 %v881, %v902
    %906 = vrot.lane.b32.xlu0 %v898, 96
    %v907 = vpop.permute.xlu0 %906
    %909 = vst.msk [vmem:[#allocation5] sm:$0xff] %vm171, %v907
    %911 = vrot.lane.b32.xlu0 %v904, 32
    %v912 = vpop.permute.xlu0 %911
    %914 = vst.msk [vmem:[#allocation4] sm:$0xff] %vm171, %v912
    %915 = vst.msk [vmem:[%s224] sm:$0xff] %vm171, %v912
    %s916 = scalar_lea.vmem [#allocation3], 48
    %v917 = vld [vmem:[%s916] sm:$0xff]
    %v918 = vld [vmem:[#allocation4] sm:$0xff]
    %v919 = vpack.c.bf16 %v918, %v918
    %v921 = vsel %vm171, %v919, 0
    %923 = vmatprep.subr.bf16.mxu0 0
    %924 = vmatpush1.bf16.msra.mxu0 %v388
    %925 = vmatprep.subr.bf16.mxu0 0
    %926 = vmatpush1.bf16.msra.mxu0 %v389
    %927 = vmatprep.subr.bf16.mxu0 0
    %928 = vmatpush1.bf16.msra.mxu0 0
    %929 = vmatprep.subr.bf16.mxu0 0
    %930 = vmatpush1.bf16.msra.mxu0 0
    %931 = vmatprep.subr.bf16.mxu0 0
    %932 = vmatpush1.bf16.msra.mxu0 0
    %933 = vmatprep.subr.bf16.mxu0 0
    %934 = vmatpush1.bf16.msra.mxu0 0
    %935 = vmatprep.subr.bf16.mxu0 0
    %936 = vmatpush1.bf16.msra.mxu0 0
    %937 = vmatprep.subr.bf16.mxu0 0
    %938 = vmatpush1.bf16.msra.mxu0 0
    %939 = vmatprep.subr.bf16.mxu0 0
    %940 = vmatpush1.bf16.msra.mxu0 0
    %941 = vmatprep.subr.bf16.mxu0 0
    %942 = vmatpush1.bf16.msra.mxu0 0
    %943 = vmatprep.subr.bf16.mxu0 0
    %944 = vmatpush1.bf16.msra.mxu0 0
    %945 = vmatprep.subr.bf16.mxu0 0
    %946 = vmatpush1.bf16.msra.mxu0 0
    %947 = vmatprep.subr.bf16.mxu0 0
    %948 = vmatpush1.bf16.msra.mxu0 0
    %949 = vmatprep.subr.bf16.mxu0 0
    %950 = vmatpush1.bf16.msra.mxu0 0
    %951 = vmatprep.subr.bf16.mxu0 0
    %952 = vmatpush1.bf16.msra.mxu0 0
    %953 = vmatprep.subr.bf16.mxu0 0
    %954 = vmatpush1.bf16.msra.mxu0 0
    %955 = vmatprep.mubr.bf16.mxu0 0
    %956 = vmatmul.mubr.bf16.gmra.mrb[0].mxu0 %v921
    %v957 = vpop.f32.mrb[0].mxu0
    %v958 = vadd.f32 0.0, %v957
    %v959 = vpop.f32.mrb[0].mxu0
    %v960 = vpop.f32.mrb[0].mxu0
    %v961 = vpop.f32.mrb[0].mxu0
    %962 = vdwg.mxu0
    %v963 = vadd.f32 %v917, %v958
    %v964 = vxor.u32 %v963, 2147483648
    %v965 = vmul.f32 %v964, 1.442695
    %v966 = vpow.pop %v965
    %v967 = vadd.f32 %v966, 1.0
    %v968 = vrcp.pop %v967
    %v969 = vmul.f32 1.0, %v968
    %v970 = vtanh.pop %v963
    %v971 = vld [vmem:[#allocation5] sm:$0xff]
    %973 = vrot.lane.b32.xlu0 %v971, 32
    %v974 = vpop.permute.xlu0 %973
    %v976 = vmul.f32 %v969, %v974
    %978 = vrot.lane.b32.xlu0 %v970, 64
    %v979 = vpop.permute.xlu0 %978
    %v981 = vmul.f32 %v969, %v979
    %983 = vrot.lane.b32.xlu0 %v981, 32
    %v984 = vpop.permute.xlu0 %983
    %v986 = vadd.f32 %v976, %v984
    %v987 = vtanh.pop %v986
    %989 = vrot.lane.b32.xlu0 %v987, 64
    %v990 = vpop.permute.xlu0 %989
    %v992 = vmul.f32 %v969, %v990
    %994 = vrot.lane.b32.xlu0 %v986, 96
    %v995 = vpop.permute.xlu0 %994
    %997 = vst.msk [vmem:[#allocation5] sm:$0xff] %vm171, %v995
    %999 = vrot.lane.b32.xlu0 %v992, 32
    %v1000 = vpop.permute.xlu0 %999
    %1002 = vst.msk [vmem:[#allocation4] sm:$0xff] %vm171, %v1000
    %1003 = vst.msk [vmem:[%s233] sm:$0xff] %vm171, %v1000
    %s1004 = scalar_lea.vmem [#allocation3], 56
    %v1005 = vld [vmem:[%s1004] sm:$0xff]
    %v1006 = vld [vmem:[#allocation4] sm:$0xff]
    %v1007 = vpack.c.bf16 %v1006, %v1006
    %v1009 = vsel %vm171, %v1007, 0
    %1011 = vmatprep.subr.bf16.mxu0 0
    %1012 = vmatpush1.bf16.msra.mxu0 %v388
    %1013 = vmatprep.subr.bf16.mxu0 0
    %1014 = vmatpush1.bf16.msra.mxu0 %v389
    %1015 = vmatprep.subr.bf16.mxu0 0
    %1016 = vmatpush1.bf16.msra.mxu0 0
    %1017 = vmatprep.subr.bf16.mxu0 0
    %1018 = vmatpush1.bf16.msra.mxu0 0
    %1019 = vmatprep.subr.bf16.mxu0 0
    %1020 = vmatpush1.bf16.msra.mxu0 0
    %1021 = vmatprep.subr.bf16.mxu0 0
    %1022 = vmatpush1.bf16.msra.mxu0 0
    %1023 = vmatprep.subr.bf16.mxu0 0
    %1024 = vmatpush1.bf16.msra.mxu0 0
    %1025 = vmatprep.subr.bf16.mxu0 0
    %1026 = vmatpush1.bf16.msra.mxu0 0
    %1027 = vmatprep.subr.bf16.mxu0 0
    %1028 = vmatpush1.bf16.msra.mxu0 0
    %1029 = vmatprep.subr.bf16.mxu0 0
    %1030 = vmatpush1.bf16.msra.mxu0 0
    %1031 = vmatprep.subr.bf16.mxu0 0
    %1032 = vmatpush1.bf16.msra.mxu0 0
    %1033 = vmatprep.subr.bf16.mxu0 0
    %1034 = vmatpush1.bf16.msra.mxu0 0
    %1035 = vmatprep.subr.bf16.mxu0 0
    %1036 = vmatpush1.bf16.msra.mxu0 0
    %1037 = vmatprep.subr.bf16.mxu0 0
    %1038 = vmatpush1.bf16.msra.mxu0 0
    %1039 = vmatprep.subr.bf16.mxu0 0
    %1040 = vmatpush1.bf16.msra.mxu0 0
    %1041 = vmatprep.subr.bf16.mxu0 0
    %1042 = vmatpush1.bf16.msra.mxu0 0
    %1043 = vmatprep.mubr.bf16.mxu0 0
    %1044 = vmatmul.mubr.bf16.gmra.mrb[0].mxu0 %v1009
    %v1045 = vpop.f32.mrb[0].mxu0
    %v1046 = vadd.f32 0.0, %v1045
    %v1047 = vpop.f32.mrb[0].mxu0
    %v1048 = vpop.f32.mrb[0].mxu0
    %v1049 = vpop.f32.mrb[0].mxu0
    %1050 = vdwg.mxu0
    %v1051 = vadd.f32 %v1005, %v1046
    %v1052 = vxor.u32 %v1051, 2147483648
    %v1053 = vmul.f32 %v1052, 1.442695
    %v1054 = vpow.pop %v1053
    %v1055 = vadd.f32 %v1054, 1.0
    %v1056 = vrcp.pop %v1055
    %v1057 = vmul.f32 1.0, %v1056
    %v1058 = vtanh.pop %v1051
    %v1059 = vld [vmem:[#allocation5] sm:$0xff]
    %1061 = vrot.lane.b32.xlu0 %v1059, 32
    %v1062 = vpop.permute.xlu0 %1061
    %v1064 = vmul.f32 %v1057, %v1062
    %1066 = vrot.lane.b32.xlu0 %v1058, 64
    %v1067 = vpop.permute.xlu0 %1066
    %v1069 = vmul.f32 %v1057, %v1067
    %1071 = vrot.lane.b32.xlu0 %v1069, 32
    %v1072 = vpop.permute.xlu0 %1071
    %v1074 = vadd.f32 %v1064, %v1072
    %v1075 = vtanh.pop %v1074
    %1077 = vrot.lane.b32.xlu0 %v1075, 64
    %v1078 = vpop.permute.xlu0 %1077
    %v1080 = vmul.f32 %v1057, %v1078
    %1082 = vrot.lane.b32.xlu0 %v1074, 96
    %v1083 = vpop.permute.xlu0 %1082
    %1085 = vst.msk [vmem:[#allocation5] sm:$0xff] %vm171, %v1083
    %1087 = vrot.lane.b32.xlu0 %v1080, 32
    %v1088 = vpop.permute.xlu0 %1087
    %1090 = vst.msk [vmem:[#allocation4] sm:$0xff] %vm171, %v1088
    %1091 = vst.msk [vmem:[%s242] sm:$0xff] %vm171, %v1088
    %v1092 = vld [vmem:[#allocation2] sm:$0xff]
    %v1093 = vld [vmem:[#allocation2 + $0x8] sm:$0xff]
    %v1094 = vld [vmem:[#allocation2 + $0x10] sm:$0xff]
    %v1095 = vld [vmem:[#allocation2 + $0x18] sm:$0xff]
    %v1096 = vld [vmem:[#allocation2 + $0x20] sm:$0xff]
    %v1097 = vld [vmem:[#allocation2 + $0x28] sm:$0xff]
    %v1098 = vld [vmem:[#allocation2 + $0x30] sm:$0xff]
    %v1099 = vld [vmem:[#allocation2 + $0x38] sm:$0xff]
    %v1100 = vpack.c.bf16 %v1093, %v1092
    %v1101 = vpack.c.bf16 %v1095, %v1094
    %v1102 = vpack.c.bf16 %v1097, %v1096
    %v1103 = vpack.c.bf16 %v1099, %v1098
    %s1104 = scalar_lea.vmem %s3, 16
    %v1105 = vld [vmem:[%s1104] sm:$0xf]
    %v1106 = vld [vmem:[%s1104 + $0x4] sm:$0xf]
    %v1107 = vld [vmem:[%s1104 + $0x8] sm:$0xf]
    %v1108 = vld [vmem:[%s1104 + $0xc] sm:$0xf]
    %s1109 = scalar_lea.vmem %s5, 1
    %v1110 = vld [vmem:[%s1109] sm:$0x1]
    %v1112 = vlaneseq
    %v1113 = vshrl.u32 %v1112, 7
    %v1114 = vsub.s32 0, %v1113
    %v1115 = vrot.slane %v1110, %v1114
    %v1121 = vunpack.c.l.b16 %v1105
    %v1122 = vunpack.c.l.b16 %v1106
    %v1123 = vunpack.c.l.b16 %v1107
    %v1124 = vunpack.c.l.b16 %v1108
    %v1125 = vpack.c.b16 %v1122, %v1121
    %v1126 = vpack.c.b16 %v1124, %v1123
    %v1130 = vsel %vm171, %v1100, 0
    %v1133 = vsel %vm171, %v1101, 0
    %v1136 = vsel %vm171, %v1102, 0
    %v1139 = vsel %vm171, %v1103, 0
    %1141 = vmatprep.subr.bf16.mxu0 0
    %1142 = vmatpush1.bf16.msra.mxu0 %v1125
    %1143 = vmatprep.subr.bf16.mxu0 0
    %1144 = vmatpush1.bf16.msra.mxu0 %v1126
    %1145 = vmatprep.subr.bf16.mxu0 0
    %1146 = vmatpush1.bf16.msra.mxu0 0
    %1147 = vmatprep.subr.bf16.mxu0 0
    %1148 = vmatpush1.bf16.msra.mxu0 0
    %1149 = vmatprep.subr.bf16.mxu0 0
    %1150 = vmatpush1.bf16.msra.mxu0 0
    %1151 = vmatprep.subr.bf16.mxu0 0
    %1152 = vmatpush1.bf16.msra.mxu0 0
    %1153 = vmatprep.subr.bf16.mxu0 0
    %1154 = vmatpush1.bf16.msra.mxu0 0
    %1155 = vmatprep.subr.bf16.mxu0 0
    %1156 = vmatpush1.bf16.msra.mxu0 0
    %1157 = vmatprep.subr.bf16.mxu0 0
    %1158 = vmatpush1.bf16.msra.mxu0 0
    %1159 = vmatprep.subr.bf16.mxu0 0
    %1160 = vmatpush1.bf16.msra.mxu0 0
    %1161 = vmatprep.subr.bf16.mxu0 0
    %1162 = vmatpush1.bf16.msra.mxu0 0
    %1163 = vmatprep.subr.bf16.mxu0 0
    %1164 = vmatpush1.bf16.msra.mxu0 0
    %1165 = vmatprep.subr.bf16.mxu0 0
    %1166 = vmatpush1.bf16.msra.mxu0 0
    %1167 = vmatprep.subr.bf16.mxu0 0
    %1168 = vmatpush1.bf16.msra.mxu0 0
    %1169 = vmatprep.subr.bf16.mxu0 0
    %1170 = vmatpush1.bf16.msra.mxu0 0
    %1171 = vmatprep.subr.bf16.mxu0 0
    %1172 = vmatpush1.bf16.msra.mxu0 0
    %1173 = vmatprep.mubr.bf16.mxu0 0
    %1174 = vmatmul.mubr.bf16.gmra.mrb[0].mxu0 %v1130
    %v1175 = vpop.f32.mrb[0].mxu0
    %v1176 = vadd.f32 %v1115, %v1175
    %v1177 = vpop.f32.mrb[0].mxu0
    %v1178 = vpop.f32.mrb[0].mxu0
    %v1179 = vadd.f32 %v1115, %v1178
    %v1180 = vpop.f32.mrb[0].mxu0
    %1181 = vmatprep.mubr.bf16.mxu0 0
    %1182 = vmatmul.mubr.bf16.gmra.mrb[0].mxu0 %v1133
    %v1183 = vpop.f32.mrb[0].mxu0
    %v1184 = vadd.f32 %v1115, %v1183
    %v1185 = vpop.f32.mrb[0].mxu0
    %v1186 = vpop.f32.mrb[0].mxu0
    %v1187 = vadd.f32 %v1115, %v1186
    %v1188 = vpop.f32.mrb[0].mxu0
    %1189 = vmatprep.mubr.bf16.mxu0 0
    %1190 = vmatmul.mubr.bf16.gmra.mrb[0].mxu0 %v1136
    %v1191 = vpop.f32.mrb[0].mxu0
    %v1192 = vadd.f32 %v1115, %v1191
    %v1193 = vpop.f32.mrb[0].mxu0
    %v1194 = vpop.f32.mrb[0].mxu0
    %v1195 = vadd.f32 %v1115, %v1194
    %v1196 = vpop.f32.mrb[0].mxu0
    %1197 = vmatprep.mubr.bf16.mxu0 0
    %1198 = vmatmul.mubr.bf16.gmra.mrb[0].mxu0 %v1139
    %v1199 = vpop.f32.mrb[0].mxu0
    %v1200 = vadd.f32 %v1115, %v1199
    %v1201 = vpop.f32.mrb[0].mxu0
    %v1202 = vpop.f32.mrb[0].mxu0
    %v1203 = vadd.f32 %v1115, %v1202
    %v1204 = vpop.f32.mrb[0].mxu0
    %1205 = vdwg.mxu0
    %1206 = vst [vmem:[#allocation3] sm:$0xff] %v1176
    %1207 = vst [vmem:[#allocation3 + $0x8] sm:$0xff] %v1179
    %1208 = vst [vmem:[#allocation3 + $0x10] sm:$0xff] %v1184
    %1209 = vst [vmem:[#allocation3 + $0x18] sm:$0xff] %v1187
    %1210 = vst [vmem:[#allocation3 + $0x20] sm:$0xff] %v1192
    %1211 = vst [vmem:[#allocation3 + $0x28] sm:$0xff] %v1195
    %1212 = vst [vmem:[#allocation3 + $0x30] sm:$0xff] %v1200
    %1213 = vst [vmem:[#allocation3 + $0x38] sm:$0xff] %v1203
    %s1214 = scalar_lea.vmem %s4, 16
    %v1215 = vld [vmem:[%s1214] sm:$0xf]
    %v1216 = vld [vmem:[%s1214 + $0x4] sm:$0xf]
    %v1217 = vld [vmem:[%s1214 + $0x8] sm:$0xf]
    %v1218 = vld [vmem:[%s1214 + $0xc] sm:$0xf]
    %1219 = vst.msk [vmem:[#allocation4] sm:$0xff] %vm171, 0.0
    %1220 = vst.msk [vmem:[#allocation5] sm:$0xff] %vm171, 0.0
    %v1221 = vld [vmem:[#allocation3] sm:$0xff]
    %v1222 = vld [vmem:[#allocation4] sm:$0xff]
    %v1223 = vpack.c.bf16 %v1222, %v1222
    %v1228 = vunpack.c.l.b16 %v1215
    %v1229 = vunpack.c.l.b16 %v1216
    %v1230 = vunpack.c.l.b16 %v1217
    %v1231 = vunpack.c.l.b16 %v1218
    %v1232 = vpack.c.b16 %v1229, %v1228
    %v1233 = vpack.c.b16 %v1231, %v1230
    %v1237 = vsel %vm171, %v1223, 0
    %1239 = vmatprep.subr.bf16.mxu0 0
    %1240 = vmatpush1.bf16.msra.mxu0 %v1232
    %1241 = vmatprep.subr.bf16.mxu0 0
    %1242 = vmatpush1.bf16.msra.mxu0 %v1233
    %1243 = vmatprep.subr.bf16.mxu0 0
    %1244 = vmatpush1.bf16.msra.mxu0 0
    %1245 = vmatprep.subr.bf16.mxu0 0
    %1246 = vmatpush1.bf16.msra.mxu0 0
    %1247 = vmatprep.subr.bf16.mxu0 0
    %1248 = vmatpush1.bf16.msra.mxu0 0
    %1249 = vmatprep.subr.bf16.mxu0 0
    %1250 = vmatpush1.bf16.msra.mxu0 0
    %1251 = vmatprep.subr.bf16.mxu0 0
    %1252 = vmatpush1.bf16.msra.mxu0 0
    %1253 = vmatprep.subr.bf16.mxu0 0
    %1254 = vmatpush1.bf16.msra.mxu0 0
    %1255 = vmatprep.subr.bf16.mxu0 0
    %1256 = vmatpush1.bf16.msra.mxu0 0
    %1257 = vmatprep.subr.bf16.mxu0 0
    %1258 = vmatpush1.bf16.msra.mxu0 0
    %1259 = vmatprep.subr.bf16.mxu0 0
    %1260 = vmatpush1.bf16.msra.mxu0 0
    %1261 = vmatprep.subr.bf16.mxu0 0
    %1262 = vmatpush1.bf16.msra.mxu0 0
    %1263 = vmatprep.subr.bf16.mxu0 0
    %1264 = vmatpush1.bf16.msra.mxu0 0
    %1265 = vmatprep.subr.bf16.mxu0 0
    %1266 = vmatpush1.bf16.msra.mxu0 0
    %1267 = vmatprep.subr.bf16.mxu0 0
    %1268 = vmatpush1.bf16.msra.mxu0 0
    %1269 = vmatprep.subr.bf16.mxu0 0
    %1270 = vmatpush1.bf16.msra.mxu0 0
    %1271 = vmatprep.mubr.bf16.mxu0 0
    %1272 = vmatmul.mubr.bf16.gmra.mrb[0].mxu0 %v1237
    %v1273 = vpop.f32.mrb[0].mxu0
    %v1274 = vadd.f32 0.0, %v1273
    %v1275 = vpop.f32.mrb[0].mxu0
    %v1276 = vpop.f32.mrb[0].mxu0
    %v1277 = vpop.f32.mrb[0].mxu0
    %1278 = vdwg.mxu0
    %v1279 = vadd.f32 %v1221, %v1274
    %v1280 = vxor.u32 %v1279, 2147483648
    %v1281 = vmul.f32 %v1280, 1.442695
    %v1282 = vpow.pop %v1281
    %v1283 = vadd.f32 %v1282, 1.0
    %v1284 = vrcp.pop %v1283
    %v1285 = vmul.f32 1.0, %v1284
    %v1286 = vtanh.pop %v1279
    %v1287 = vld [vmem:[#allocation5] sm:$0xff]
    %1289 = vrot.lane.b32.xlu0 %v1287, 32
    %v1290 = vpop.permute.xlu0 %1289
    %v1292 = vmul.f32 %v1285, %v1290
    %1294 = vrot.lane.b32.xlu0 %v1286, 64
    %v1295 = vpop.permute.xlu0 %1294
    %v1297 = vmul.f32 %v1285, %v1295
    %1299 = vrot.lane.b32.xlu0 %v1297, 32
    %v1300 = vpop.permute.xlu0 %1299
    %v1302 = vadd.f32 %v1292, %v1300
    %v1303 = vtanh.pop %v1302
    %1305 = vrot.lane.b32.xlu0 %v1303, 64
    %v1306 = vpop.permute.xlu0 %1305
    %v1308 = vmul.f32 %v1285, %v1306
    %1310 = vrot.lane.b32.xlu0 %v1302, 96
    %v1311 = vpop.permute.xlu0 %1310
    %1313 = vst.msk [vmem:[#allocation5] sm:$0xff] %vm171, %v1311
    %1315 = vrot.lane.b32.xlu0 %v1308, 32
    %v1316 = vpop.permute.xlu0 %1315
    %1318 = vst.msk [vmem:[#allocation4] sm:$0xff] %vm171, %v1316
    %v1319 = vld [vmem:[%s476] sm:$0xff]
    %v1320 = vld [vmem:[#allocation4] sm:$0xff]
    %v1321 = vpack.c.bf16 %v1320, %v1320
    %v1323 = vsel %vm171, %v1321, 0
    %1325 = vmatprep.subr.bf16.mxu0 0
    %1326 = vmatpush1.bf16.msra.mxu0 %v1232
    %1327 = vmatprep.subr.bf16.mxu0 0
    %1328 = vmatpush1.bf16.msra.mxu0 %v1233
    %1329 = vmatprep.subr.bf16.mxu0 0
    %1330 = vmatpush1.bf16.msra.mxu0 0
    %1331 = vmatprep.subr.bf16.mxu0 0
    %1332 = vmatpush1.bf16.msra.mxu0 0
    %1333 = vmatprep.subr.bf16.mxu0 0
    %1334 = vmatpush1.bf16.msra.mxu0 0
    %1335 = vmatprep.subr.bf16.mxu0 0
    %1336 = vmatpush1.bf16.msra.mxu0 0
    %1337 = vmatprep.subr.bf16.mxu0 0
    %1338 = vmatpush1.bf16.msra.mxu0 0
    %1339 = vmatprep.subr.bf16.mxu0 0
    %1340 = vmatpush1.bf16.msra.mxu0 0
    %1341 = vmatprep.subr.bf16.mxu0 0
    %1342 = vmatpush1.bf16.msra.mxu0 0
    %1343 = vmatprep.subr.bf16.mxu0 0
    %1344 = vmatpush1.bf16.msra.mxu0 0
    %1345 = vmatprep.subr.bf16.mxu0 0
    %1346 = vmatpush1.bf16.msra.mxu0 0
    %1347 = vmatprep.subr.bf16.mxu0 0
    %1348 = vmatpush1.bf16.msra.mxu0 0
    %1349 = vmatprep.subr.bf16.mxu0 0
    %1350 = vmatpush1.bf16.msra.mxu0 0
    %1351 = vmatprep.subr.bf16.mxu0 0
    %1352 = vmatpush1.bf16.msra.mxu0 0
    %1353 = vmatprep.subr.bf16.mxu0 0
    %1354 = vmatpush1.bf16.msra.mxu0 0
    %1355 = vmatprep.subr.bf16.mxu0 0
    %1356 = vmatpush1.bf16.msra.mxu0 0
    %1357 = vmatprep.mubr.bf16.mxu0 0
    %1358 = vmatmul.mubr.bf16.gmra.mrb[0].mxu0 %v1323
    %v1359 = vpop.f32.mrb[0].mxu0
    %v1360 = vadd.f32 0.0, %v1359
    %v1361 = vpop.f32.mrb[0].mxu0
    %v1362 = vpop.f32.mrb[0].mxu0
    %v1363 = vpop.f32.mrb[0].mxu0
    %1364 = vdwg.mxu0
    %v1365 = vadd.f32 %v1319, %v1360
    %v1366 = vxor.u32 %v1365, 2147483648
    %v1367 = vmul.f32 %v1366, 1.442695
    %v1368 = vpow.pop %v1367
    %v1369 = vadd.f32 %v1368, 1.0
    %v1370 = vrcp.pop %v1369
    %v1371 = vmul.f32 1.0, %v1370
    %v1372 = vtanh.pop %v1365
    %v1373 = vld [vmem:[#allocation5] sm:$0xff]
    %1375 = vrot.lane.b32.xlu0 %v1373, 32
    %v1376 = vpop.permute.xlu0 %1375
    %v1378 = vmul.f32 %v1371, %v1376
    %1380 = vrot.lane.b32.xlu0 %v1372, 64
    %v1381 = vpop.permute.xlu0 %1380
    %v1383 = vmul.f32 %v1371, %v1381
    %1385 = vrot.lane.b32.xlu0 %v1383, 32
    %v1386 = vpop.permute.xlu0 %1385
    %v1388 = vadd.f32 %v1378, %v1386
    %v1389 = vtanh.pop %v1388
    %1391 = vrot.lane.b32.xlu0 %v1389, 64
    %v1392 = vpop.permute.xlu0 %1391
    %v1394 = vmul.f32 %v1371, %v1392
    %1396 = vrot.lane.b32.xlu0 %v1388, 96
    %v1397 = vpop.permute.xlu0 %1396
    %1399 = vst.msk [vmem:[#allocation5] sm:$0xff] %vm171, %v1397
    %1401 = vrot.lane.b32.xlu0 %v1394, 32
    %v1402 = vpop.permute.xlu0 %1401
    %1404 = vst.msk [vmem:[#allocation4] sm:$0xff] %vm171, %v1402
    %v1405 = vld [vmem:[%s564] sm:$0xff]
    %v1406 = vld [vmem:[#allocation4] sm:$0xff]
    %v1407 = vpack.c.bf16 %v1406, %v1406
    %v1409 = vsel %vm171, %v1407, 0
    %1411 = vmatprep.subr.bf16.mxu0 0
    %1412 = vmatpush1.bf16.msra.mxu0 %v1232
    %1413 = vmatprep.subr.bf16.mxu0 0
    %1414 = vmatpush1.bf16.msra.mxu0 %v1233
    %1415 = vmatprep.subr.bf16.mxu0 0
    %1416 = vmatpush1.bf16.msra.mxu0 0
    %1417 = vmatprep.subr.bf16.mxu0 0
    %1418 = vmatpush1.bf16.msra.mxu0 0
    %1419 = vmatprep.subr.bf16.mxu0 0
    %1420 = vmatpush1.bf16.msra.mxu0 0
    %1421 = vmatprep.subr.bf16.mxu0 0
    %1422 = vmatpush1.bf16.msra.mxu0 0
    %1423 = vmatprep.subr.bf16.mxu0 0
    %1424 = vmatpush1.bf16.msra.mxu0 0
    %1425 = vmatprep.subr.bf16.mxu0 0
    %1426 = vmatpush1.bf16.msra.mxu0 0
    %1427 = vmatprep.subr.bf16.mxu0 0
    %1428 = vmatpush1.bf16.msra.mxu0 0
    %1429 = vmatprep.subr.bf16.mxu0 0
    %1430 = vmatpush1.bf16.msra.mxu0 0
    %1431 = vmatprep.subr.bf16.mxu0 0
    %1432 = vmatpush1.bf16.msra.mxu0 0
    %1433 = vmatprep.subr.bf16.mxu0 0
    %1434 = vmatpush1.bf16.msra.mxu0 0
    %1435 = vmatprep.subr.bf16.mxu0 0
    %1436 = vmatpush1.bf16.msra.mxu0 0
    %1437 = vmatprep.subr.bf16.mxu0 0
    %1438 = vmatpush1.bf16.msra.mxu0 0
    %1439 = vmatprep.subr.bf16.mxu0 0
    %1440 = vmatpush1.bf16.msra.mxu0 0
    %1441 = vmatprep.subr.bf16.mxu0 0
    %1442 = vmatpush1.bf16.msra.mxu0 0
    %1443 = vmatprep.mubr.bf16.mxu0 0
    %1444 = vmatmul.mubr.bf16.gmra.mrb[0].mxu0 %v1409
    %v1445 = vpop.f32.mrb[0].mxu0
    %v1446 = vadd.f32 0.0, %v1445
    %v1447 = vpop.f32.mrb[0].mxu0
    %v1448 = vpop.f32.mrb[0].mxu0
    %v1449 = vpop.f32.mrb[0].mxu0
    %1450 = vdwg.mxu0
    %v1451 = vadd.f32 %v1405, %v1446
    %v1452 = vxor.u32 %v1451, 2147483648
    %v1453 = vmul.f32 %v1452, 1.442695
    %v1454 = vpow.pop %v1453
    %v1455 = vadd.f32 %v1454, 1.0
    %v1456 = vrcp.pop %v1455
    %v1457 = vmul.f32 1.0, %v1456
    %v1458 = vtanh.pop %v1451
    %v1459 = vld [vmem:[#allocation5] sm:$0xff]
    %1461 = vrot.lane.b32.xlu0 %v1459, 32
    %v1462 = vpop.permute.xlu0 %1461
    %v1464 = vmul.f32 %v1457, %v1462
    %1466 = vrot.lane.b32.xlu0 %v1458, 64
    %v1467 = vpop.permute.xlu0 %1466
    %v1469 = vmul.f32 %v1457, %v1467
    %1471 = vrot.lane.b32.xlu0 %v1469, 32
    %v1472 = vpop.permute.xlu0 %1471
    %v1474 = vadd.f32 %v1464, %v1472
    %v1475 = vtanh.pop %v1474
    %1477 = vrot.lane.b32.xlu0 %v1475, 64
    %v1478 = vpop.permute.xlu0 %1477
    %v1480 = vmul.f32 %v1457, %v1478
    %1482 = vrot.lane.b32.xlu0 %v1474, 96
    %v1483 = vpop.permute.xlu0 %1482
    %1485 = vst.msk [vmem:[#allocation5] sm:$0xff] %vm171, %v1483
    %1487 = vrot.lane.b32.xlu0 %v1480, 32
    %v1488 = vpop.permute.xlu0 %1487
    %1490 = vst.msk [vmem:[#allocation4] sm:$0xff] %vm171, %v1488
    %v1491 = vld [vmem:[%s652] sm:$0xff]
    %v1492 = vld [vmem:[#allocation4] sm:$0xff]
    %v1493 = vpack.c.bf16 %v1492, %v1492
    %v1495 = vsel %vm171, %v1493, 0
    %1497 = vmatprep.subr.bf16.mxu0 0
    %1498 = vmatpush1.bf16.msra.mxu0 %v1232
    %1499 = vmatprep.subr.bf16.mxu0 0
    %1500 = vmatpush1.bf16.msra.mxu0 %v1233
    %1501 = vmatprep.subr.bf16.mxu0 0
    %1502 = vmatpush1.bf16.msra.mxu0 0
    %1503 = vmatprep.subr.bf16.mxu0 0
    %1504 = vmatpush1.bf16.msra.mxu0 0
    %1505 = vmatprep.subr.bf16.mxu0 0
    %1506 = vmatpush1.bf16.msra.mxu0 0
    %1507 = vmatprep.subr.bf16.mxu0 0
    %1508 = vmatpush1.bf16.msra.mxu0 0
    %1509 = vmatprep.subr.bf16.mxu0 0
    %1510 = vmatpush1.bf16.msra.mxu0 0
    %1511 = vmatprep.subr.bf16.mxu0 0
    %1512 = vmatpush1.bf16.msra.mxu0 0
    %1513 = vmatprep.subr.bf16.mxu0 0
    %1514 = vmatpush1.bf16.msra.mxu0 0
    %1515 = vmatprep.subr.bf16.mxu0 0
    %1516 = vmatpush1.bf16.msra.mxu0 0
    %1517 = vmatprep.subr.bf16.mxu0 0
    %1518 = vmatpush1.bf16.msra.mxu0 0
    %1519 = vmatprep.subr.bf16.mxu0 0
    %1520 = vmatpush1.bf16.msra.mxu0 0
    %1521 = vmatprep.subr.bf16.mxu0 0
    %1522 = vmatpush1.bf16.msra.mxu0 0
    %1523 = vmatprep.subr.bf16.mxu0 0
    %1524 = vmatpush1.bf16.msra.mxu0 0
    %1525 = vmatprep.subr.bf16.mxu0 0
    %1526 = vmatpush1.bf16.msra.mxu0 0
    %1527 = vmatprep.subr.bf16.mxu0 0
    %1528 = vmatpush1.bf16.msra.mxu0 0
    %1529 = vmatprep.mubr.bf16.mxu0 0
    %1530 = vmatmul.mubr.bf16.gmra.mrb[0].mxu0 %v1495
    %v1531 = vpop.f32.mrb[0].mxu0
    %v1532 = vadd.f32 0.0, %v1531
    %v1533 = vpop.f32.mrb[0].mxu0
    %v1534 = vpop.f32.mrb[0].mxu0
    %v1535 = vpop.f32.mrb[0].mxu0
    %1536 = vdwg.mxu0
    %v1537 = vadd.f32 %v1491, %v1532
    %v1538 = vxor.u32 %v1537, 2147483648
    %v1539 = vmul.f32 %v1538, 1.442695
    %v1540 = vpow.pop %v1539
    %v1541 = vadd.f32 %v1540, 1.0
    %v1542 = vrcp.pop %v1541
    %v1543 = vmul.f32 1.0, %v1542
    %v1544 = vtanh.pop %v1537
    %v1545 = vld [vmem:[#allocation5] sm:$0xff]
    %1547 = vrot.lane.b32.xlu0 %v1545, 32
    %v1548 = vpop.permute.xlu0 %1547
    %v1550 = vmul.f32 %v1543, %v1548
    %1552 = vrot.lane.b32.xlu0 %v1544, 64
    %v1553 = vpop.permute.xlu0 %1552
    %v1555 = vmul.f32 %v1543, %v1553
    %1557 = vrot.lane.b32.xlu0 %v1555, 32
    %v1558 = vpop.permute.xlu0 %1557
    %v1560 = vadd.f32 %v1550, %v1558
    %v1561 = vtanh.pop %v1560
    %1563 = vrot.lane.b32.xlu0 %v1561, 64
    %v1564 = vpop.permute.xlu0 %1563
    %v1566 = vmul.f32 %v1543, %v1564
    %1568 = vrot.lane.b32.xlu0 %v1560, 96
    %v1569 = vpop.permute.xlu0 %1568
    %1571 = vst.msk [vmem:[#allocation5] sm:$0xff] %vm171, %v1569
    %1573 = vrot.lane.b32.xlu0 %v1566, 32
    %v1574 = vpop.permute.xlu0 %1573
    %1576 = vst.msk [vmem:[#allocation4] sm:$0xff] %vm171, %v1574
    %v1577 = vld [vmem:[%s740] sm:$0xff]
    %v1578 = vld [vmem:[#allocation4] sm:$0xff]
    %v1579 = vpack.c.bf16 %v1578, %v1578
    %v1581 = vsel %vm171, %v1579, 0
    %1583 = vmatprep.subr.bf16.mxu0 0
    %1584 = vmatpush1.bf16.msra.mxu0 %v1232
    %1585 = vmatprep.subr.bf16.mxu0 0
    %1586 = vmatpush1.bf16.msra.mxu0 %v1233
    %1587 = vmatprep.subr.bf16.mxu0 0
    %1588 = vmatpush1.bf16.msra.mxu0 0
    %1589 = vmatprep.subr.bf16.mxu0 0
    %1590 = vmatpush1.bf16.msra.mxu0 0
    %1591 = vmatprep.subr.bf16.mxu0 0
    %1592 = vmatpush1.bf16.msra.mxu0 0
    %1593 = vmatprep.subr.bf16.mxu0 0
    %1594 = vmatpush1.bf16.msra.mxu0 0
    %1595 = vmatprep.subr.bf16.mxu0 0
    %1596 = vmatpush1.bf16.msra.mxu0 0
    %1597 = vmatprep.subr.bf16.mxu0 0
    %1598 = vmatpush1.bf16.msra.mxu0 0
    %1599 = vmatprep.subr.bf16.mxu0 0
    %1600 = vmatpush1.bf16.msra.mxu0 0
    %1601 = vmatprep.subr.bf16.mxu0 0
    %1602 = vmatpush1.bf16.msra.mxu0 0
    %1603 = vmatprep.subr.bf16.mxu0 0
    %1604 = vmatpush1.bf16.msra.mxu0 0
    %1605 = vmatprep.subr.bf16.mxu0 0
    %1606 = vmatpush1.bf16.msra.mxu0 0
    %1607 = vmatprep.subr.bf16.mxu0 0
    %1608 = vmatpush1.bf16.msra.mxu0 0
    %1609 = vmatprep.subr.bf16.mxu0 0
    %1610 = vmatpush1.bf16.msra.mxu0 0
    %1611 = vmatprep.subr.bf16.mxu0 0
    %1612 = vmatpush1.bf16.msra.mxu0 0
    %1613 = vmatprep.subr.bf16.mxu0 0
    %1614 = vmatpush1.bf16.msra.mxu0 0
    %1615 = vmatprep.mubr.bf16.mxu0 0
    %1616 = vmatmul.mubr.bf16.gmra.mrb[0].mxu0 %v1581
    %v1617 = vpop.f32.mrb[0].mxu0
    %v1618 = vadd.f32 0.0, %v1617
    %v1619 = vpop.f32.mrb[0].mxu0
    %v1620 = vpop.f32.mrb[0].mxu0
    %v1621 = vpop.f32.mrb[0].mxu0
    %1622 = vdwg.mxu0
    %v1623 = vadd.f32 %v1577, %v1618
    %v1624 = vxor.u32 %v1623, 2147483648
    %v1625 = vmul.f32 %v1624, 1.442695
    %v1626 = vpow.pop %v1625
    %v1627 = vadd.f32 %v1626, 1.0
    %v1628 = vrcp.pop %v1627
    %v1629 = vmul.f32 1.0, %v1628
    %v1630 = vtanh.pop %v1623
    %v1631 = vld [vmem:[#allocation5] sm:$0xff]
    %1633 = vrot.lane.b32.xlu0 %v1631, 32
    %v1634 = vpop.permute.xlu0 %1633
    %v1636 = vmul.f32 %v1629, %v1634
    %1638 = vrot.lane.b32.xlu0 %v1630, 64
    %v1639 = vpop.permute.xlu0 %1638
    %v1641 = vmul.f32 %v1629, %v1639
    %1643 = vrot.lane.b32.xlu0 %v1641, 32
    %v1644 = vpop.permute.xlu0 %1643
    %v1646 = vadd.f32 %v1636, %v1644
    %v1647 = vtanh.pop %v1646
    %1649 = vrot.lane.b32.xlu0 %v1647, 64
    %v1650 = vpop.permute.xlu0 %1649
    %v1652 = vmul.f32 %v1629, %v1650
    %1654 = vrot.lane.b32.xlu0 %v1646, 96
    %v1655 = vpop.permute.xlu0 %1654
    %1657 = vst.msk [vmem:[#allocation5] sm:$0xff] %vm171, %v1655
    %1659 = vrot.lane.b32.xlu0 %v1652, 32
    %v1660 = vpop.permute.xlu0 %1659
    %1662 = vst.msk [vmem:[#allocation4] sm:$0xff] %vm171, %v1660
    %v1663 = vld [vmem:[%s828] sm:$0xff]
    %v1664 = vld [vmem:[#allocation4] sm:$0xff]
    %v1665 = vpack.c.bf16 %v1664, %v1664
    %v1667 = vsel %vm171, %v1665, 0
    %1669 = vmatprep.subr.bf16.mxu0 0
    %1670 = vmatpush1.bf16.msra.mxu0 %v1232
    %1671 = vmatprep.subr.bf16.mxu0 0
    %1672 = vmatpush1.bf16.msra.mxu0 %v1233
    %1673 = vmatprep.subr.bf16.mxu0 0
    %1674 = vmatpush1.bf16.msra.mxu0 0
    %1675 = vmatprep.subr.bf16.mxu0 0
    %1676 = vmatpush1.bf16.msra.mxu0 0
    %1677 = vmatprep.subr.bf16.mxu0 0
    %1678 = vmatpush1.bf16.msra.mxu0 0
    %1679 = vmatprep.subr.bf16.mxu0 0
    %1680 = vmatpush1.bf16.msra.mxu0 0
    %1681 = vmatprep.subr.bf16.mxu0 0
    %1682 = vmatpush1.bf16.msra.mxu0 0
    %1683 = vmatprep.subr.bf16.mxu0 0
    %1684 = vmatpush1.bf16.msra.mxu0 0
    %1685 = vmatprep.subr.bf16.mxu0 0
    %1686 = vmatpush1.bf16.msra.mxu0 0
    %1687 = vmatprep.subr.bf16.mxu0 0
    %1688 = vmatpush1.bf16.msra.mxu0 0
    %1689 = vmatprep.subr.bf16.mxu0 0
    %1690 = vmatpush1.bf16.msra.mxu0 0
    %1691 = vmatprep.subr.bf16.mxu0 0
    %1692 = vmatpush1.bf16.msra.mxu0 0
    %1693 = vmatprep.subr.bf16.mxu0 0
    %1694 = vmatpush1.bf16.msra.mxu0 0
    %1695 = vmatprep.subr.bf16.mxu0 0
    %1696 = vmatpush1.bf16.msra.mxu0 0
    %1697 = vmatprep.subr.bf16.mxu0 0
    %1698 = vmatpush1.bf16.msra.mxu0 0
    %1699 = vmatprep.subr.bf16.mxu0 0
    %1700 = vmatpush1.bf16.msra.mxu0 0
    %1701 = vmatprep.mubr.bf16.mxu0 0
    %1702 = vmatmul.mubr.bf16.gmra.mrb[0].mxu0 %v1667
    %v1703 = vpop.f32.mrb[0].mxu0
    %v1704 = vadd.f32 0.0, %v1703
    %v1705 = vpop.f32.mrb[0].mxu0
    %v1706 = vpop.f32.mrb[0].mxu0
    %v1707 = vpop.f32.mrb[0].mxu0
    %1708 = vdwg.mxu0
    %v1709 = vadd.f32 %v1663, %v1704
    %v1710 = vxor.u32 %v1709, 2147483648
    %v1711 = vmul.f32 %v1710, 1.442695
    %v1712 = vpow.pop %v1711
    %v1713 = vadd.f32 %v1712, 1.0
    %v1714 = vrcp.pop %v1713
    %v1715 = vmul.f32 1.0, %v1714
    %v1716 = vtanh.pop %v1709
    %v1717 = vld [vmem:[#allocation5] sm:$0xff]
    %1719 = vrot.lane.b32.xlu0 %v1717, 32
    %v1720 = vpop.permute.xlu0 %1719
    %v1722 = vmul.f32 %v1715, %v1720
    %1724 = vrot.lane.b32.xlu0 %v1716, 64
    %v1725 = vpop.permute.xlu0 %1724
    %v1727 = vmul.f32 %v1715, %v1725
    %1729 = vrot.lane.b32.xlu0 %v1727, 32
    %v1730 = vpop.permute.xlu0 %1729
    %v1732 = vadd.f32 %v1722, %v1730
    %v1733 = vtanh.pop %v1732
    %1735 = vrot.lane.b32.xlu0 %v1733, 64
    %v1736 = vpop.permute.xlu0 %1735
    %v1738 = vmul.f32 %v1715, %v1736
    %1740 = vrot.lane.b32.xlu0 %v1732, 96
    %v1741 = vpop.permute.xlu0 %1740
    %1743 = vst.msk [vmem:[#allocation5] sm:$0xff] %vm171, %v1741
    %1745 = vrot.lane.b32.xlu0 %v1738, 32
    %v1746 = vpop.permute.xlu0 %1745
    %1748 = vst.msk [vmem:[#allocation4] sm:$0xff] %vm171, %v1746
    %v1749 = vld [vmem:[%s916] sm:$0xff]
    %v1750 = vld [vmem:[#allocation4] sm:$0xff]
    %v1751 = vpack.c.bf16 %v1750, %v1750
    %v1753 = vsel %vm171, %v1751, 0
    %1755 = vmatprep.subr.bf16.mxu0 0
    %1756 = vmatpush1.bf16.msra.mxu0 %v1232
    %1757 = vmatprep.subr.bf16.mxu0 0
    %1758 = vmatpush1.bf16.msra.mxu0 %v1233
    %1759 = vmatprep.subr.bf16.mxu0 0
    %1760 = vmatpush1.bf16.msra.mxu0 0
    %1761 = vmatprep.subr.bf16.mxu0 0
    %1762 = vmatpush1.bf16.msra.mxu0 0
    %1763 = vmatprep.subr.bf16.mxu0 0
    %1764 = vmatpush1.bf16.msra.mxu0 0
    %1765 = vmatprep.subr.bf16.mxu0 0
    %1766 = vmatpush1.bf16.msra.mxu0 0
    %1767 = vmatprep.subr.bf16.mxu0 0
    %1768 = vmatpush1.bf16.msra.mxu0 0
    %1769 = vmatprep.subr.bf16.mxu0 0
    %1770 = vmatpush1.bf16.msra.mxu0 0
    %1771 = vmatprep.subr.bf16.mxu0 0
    %1772 = vmatpush1.bf16.msra.mxu0 0
    %1773 = vmatprep.subr.bf16.mxu0 0
    %1774 = vmatpush1.bf16.msra.mxu0 0
    %1775 = vmatprep.subr.bf16.mxu0 0
    %1776 = vmatpush1.bf16.msra.mxu0 0
    %1777 = vmatprep.subr.bf16.mxu0 0
    %1778 = vmatpush1.bf16.msra.mxu0 0
    %1779 = vmatprep.subr.bf16.mxu0 0
    %1780 = vmatpush1.bf16.msra.mxu0 0
    %1781 = vmatprep.subr.bf16.mxu0 0
    %1782 = vmatpush1.bf16.msra.mxu0 0
    %1783 = vmatprep.subr.bf16.mxu0 0
    %1784 = vmatpush1.bf16.msra.mxu0 0
    %1785 = vmatprep.subr.bf16.mxu0 0
    %1786 = vmatpush1.bf16.msra.mxu0 0
    %1787 = vmatprep.mubr.bf16.mxu0 0
    %1788 = vmatmul.mubr.bf16.gmra.mrb[0].mxu0 %v1753
    %v1789 = vpop.f32.mrb[0].mxu0
    %v1790 = vadd.f32 0.0, %v1789
    %v1791 = vpop.f32.mrb[0].mxu0
    %v1792 = vpop.f32.mrb[0].mxu0
    %v1793 = vpop.f32.mrb[0].mxu0
    %1794 = vdwg.mxu0
    %v1795 = vadd.f32 %v1749, %v1790
    %v1796 = vxor.u32 %v1795, 2147483648
    %v1797 = vmul.f32 %v1796, 1.442695
    %v1798 = vpow.pop %v1797
    %v1799 = vadd.f32 %v1798, 1.0
    %v1800 = vrcp.pop %v1799
    %v1801 = vmul.f32 1.0, %v1800
    %v1802 = vtanh.pop %v1795
    %v1803 = vld [vmem:[#allocation5] sm:$0xff]
    %1805 = vrot.lane.b32.xlu0 %v1803, 32
    %v1806 = vpop.permute.xlu0 %1805
    %v1808 = vmul.f32 %v1801, %v1806
    %1810 = vrot.lane.b32.xlu0 %v1802, 64
    %v1811 = vpop.permute.xlu0 %1810
    %v1813 = vmul.f32 %v1801, %v1811
    %1815 = vrot.lane.b32.xlu0 %v1813, 32
    %v1816 = vpop.permute.xlu0 %1815
    %v1818 = vadd.f32 %v1808, %v1816
    %v1819 = vtanh.pop %v1818
    %1821 = vrot.lane.b32.xlu0 %v1819, 64
    %v1822 = vpop.permute.xlu0 %1821
    %v1824 = vmul.f32 %v1801, %v1822
    %1826 = vrot.lane.b32.xlu0 %v1818, 96
    %v1827 = vpop.permute.xlu0 %1826
    %1829 = vst.msk [vmem:[#allocation5] sm:$0xff] %vm171, %v1827
    %1831 = vrot.lane.b32.xlu0 %v1824, 32
    %v1832 = vpop.permute.xlu0 %1831
    %1834 = vst.msk [vmem:[#allocation4] sm:$0xff] %vm171, %v1832
    %v1835 = vld [vmem:[%s1004] sm:$0xff]
    %v1836 = vld [vmem:[#allocation4] sm:$0xff]
    %v1837 = vpack.c.bf16 %v1836, %v1836
    %v1839 = vsel %vm171, %v1837, 0
    %1841 = vmatprep.subr.bf16.mxu0 0
    %1842 = vmatpush1.bf16.msra.mxu0 %v1232
    %1843 = vmatprep.subr.bf16.mxu0 0
    %1844 = vmatpush1.bf16.msra.mxu0 %v1233
    %1845 = vmatprep.subr.bf16.mxu0 0
    %1846 = vmatpush1.bf16.msra.mxu0 0
    %1847 = vmatprep.subr.bf16.mxu0 0
    %1848 = vmatpush1.bf16.msra.mxu0 0
    %1849 = vmatprep.subr.bf16.mxu0 0
    %1850 = vmatpush1.bf16.msra.mxu0 0
    %1851 = vmatprep.subr.bf16.mxu0 0
    %1852 = vmatpush1.bf16.msra.mxu0 0
    %1853 = vmatprep.subr.bf16.mxu0 0
    %1854 = vmatpush1.bf16.msra.mxu0 0
    %1855 = vmatprep.subr.bf16.mxu0 0
    %1856 = vmatpush1.bf16.msra.mxu0 0
    %1857 = vmatprep.subr.bf16.mxu0 0
    %1858 = vmatpush1.bf16.msra.mxu0 0
    %1859 = vmatprep.subr.bf16.mxu0 0
    %1860 = vmatpush1.bf16.msra.mxu0 0
    %1861 = vmatprep.subr.bf16.mxu0 0
    %1862 = vmatpush1.bf16.msra.mxu0 0
    %1863 = vmatprep.subr.bf16.mxu0 0
    %1864 = vmatpush1.bf16.msra.mxu0 0
    %1865 = vmatprep.subr.bf16.mxu0 0
    %1866 = vmatpush1.bf16.msra.mxu0 0
    %1867 = vmatprep.subr.bf16.mxu0 0
    %1868 = vmatpush1.bf16.msra.mxu0 0
    %1869 = vmatprep.subr.bf16.mxu0 0
    %1870 = vmatpush1.bf16.msra.mxu0 0
    %1871 = vmatprep.subr.bf16.mxu0 0
    %1872 = vmatpush1.bf16.msra.mxu0 0
    %1873 = vmatprep.mubr.bf16.mxu0 0
    %1874 = vmatmul.mubr.bf16.gmra.mrb[0].mxu0 %v1839
    %v1875 = vpop.f32.mrb[0].mxu0
    %v1876 = vadd.f32 0.0, %v1875
    %v1877 = vpop.f32.mrb[0].mxu0
    %v1878 = vpop.f32.mrb[0].mxu0
    %v1879 = vpop.f32.mrb[0].mxu0
    %1880 = vdwg.mxu0
    %v1881 = vadd.f32 %v1835, %v1876
    %v1882 = vxor.u32 %v1881, 2147483648
    %v1883 = vmul.f32 %v1882, 1.442695
    %v1884 = vpow.pop %v1883
    %v1885 = vadd.f32 %v1884, 1.0
    %v1886 = vrcp.pop %v1885
    %v1887 = vmul.f32 1.0, %v1886
    %v1888 = vtanh.pop %v1881
    %v1889 = vld [vmem:[#allocation5] sm:$0xff]
    %1891 = vrot.lane.b32.xlu0 %v1889, 32
    %v1892 = vpop.permute.xlu0 %1891
    %v1894 = vmul.f32 %v1887, %v1892
    %1896 = vrot.lane.b32.xlu0 %v1888, 64
    %v1897 = vpop.permute.xlu0 %1896
    %v1899 = vmul.f32 %v1887, %v1897
    %1901 = vrot.lane.b32.xlu0 %v1899, 32
    %v1902 = vpop.permute.xlu0 %1901
    %v1904 = vadd.f32 %v1894, %v1902
    %v1905 = vtanh.pop %v1904
    %1907 = vrot.lane.b32.xlu0 %v1905, 64
    %v1908 = vpop.permute.xlu0 %1907
    %v1910 = vmul.f32 %v1887, %v1908
    %1912 = vrot.lane.b32.xlu0 %v1904, 96
    %v1913 = vpop.permute.xlu0 %1912
    %1915 = vst.msk [vmem:[#allocation5] sm:$0xff] %vm171, %v1913
    %1917 = vrot.lane.b32.xlu0 %v1910, 32
    %v1918 = vpop.permute.xlu0 %1917
    %1920 = vst.msk [vmem:[#allocation4] sm:$0xff] %vm171, %v1918
    %v1921 = vld [vmem:[#allocation4] sm:$0xff]
    %v1922 = vpack.c.bf16 %v1921, %v1921
    %v1923 = vld [vmem:[%s6] sm:$0xf]
    %v1924 = vld [vmem:[%s6 + $0x4] sm:$0xf]
    %v1925 = vld [vmem:[%s6 + $0x8] sm:$0xf]
    %v1926 = vld [vmem:[%s6 + $0xc] sm:$0xf]
    %v1927 = vld [vmem:[%s7] sm:$0x1]
    %v1929 = vlaneseq
    %v1930 = vshrl.u32 %v1929, 7
    %v1931 = vsub.s32 0, %v1930
    %v1932 = vrot.slane %v1927, %v1931
    %v1938 = vunpack.c.l.b16 %v1923
    %v1939 = vunpack.c.l.b16 %v1924
    %v1940 = vunpack.c.l.b16 %v1925
    %v1941 = vunpack.c.l.b16 %v1926
    %v1942 = vpack.c.b16 %v1939, %v1938
    %v1943 = vpack.c.b16 %v1941, %v1940
    %v1947 = vsel %vm171, %v1922, 0
    %1949 = vmatprep.subr.bf16.mxu0 0
    %1950 = vmatpush1.bf16.msra.mxu0 %v1942
    %1951 = vmatprep.subr.bf16.mxu0 0
    %1952 = vmatpush1.bf16.msra.mxu0 %v1943
    %1953 = vmatprep.subr.bf16.mxu0 0
    %1954 = vmatpush1.bf16.msra.mxu0 0
    %1955 = vmatprep.subr.bf16.mxu0 0
    %1956 = vmatpush1.bf16.msra.mxu0 0
    %1957 = vmatprep.subr.bf16.mxu0 0
    %1958 = vmatpush1.bf16.msra.mxu0 0
    %1959 = vmatprep.subr.bf16.mxu0 0
    %1960 = vmatpush1.bf16.msra.mxu0 0
    %1961 = vmatprep.subr.bf16.mxu0 0
    %1962 = vmatpush1.bf16.msra.mxu0 0
    %1963 = vmatprep.subr.bf16.mxu0 0
    %1964 = vmatpush1.bf16.msra.mxu0 0
    %1965 = vmatprep.subr.bf16.mxu0 0
    %1966 = vmatpush1.bf16.msra.mxu0 0
    %1967 = vmatprep.subr.bf16.mxu0 0
    %1968 = vmatpush1.bf16.msra.mxu0 0
    %1969 = vmatprep.subr.bf16.mxu0 0
    %1970 = vmatpush1.bf16.msra.mxu0 0
    %1971 = vmatprep.subr.bf16.mxu0 0
    %1972 = vmatpush1.bf16.msra.mxu0 0
    %1973 = vmatprep.subr.bf16.mxu0 0
    %1974 = vmatpush1.bf16.msra.mxu0 0
    %1975 = vmatprep.subr.bf16.mxu0 0
    %1976 = vmatpush1.bf16.msra.mxu0 0
    %1977 = vmatprep.subr.bf16.mxu0 0
    %1978 = vmatpush1.bf16.msra.mxu0 0
    %1979 = vmatprep.subr.bf16.mxu0 0
    %1980 = vmatpush1.bf16.msra.mxu0 0
    %1981 = vmatprep.mubr.bf16.mxu0 0
    %1982 = vmatmul.mubr.bf16.gmra.mrb[0].mxu0 %v1947
    %v1983 = vpop.f32.mrb[0].mxu0
    %v1984 = vadd.f32 %v1932, %v1983
    %v1985 = vpop.f32.mrb[0].mxu0
    %v1986 = vpop.f32.mrb[0].mxu0
    %v1987 = vpop.f32.mrb[0].mxu0
    %1988 = vdwg.mxu0
    %vm1989 = vcmask 64512
    %1990 = vst.msk [vmem:[#allocation11] sm:$0xff] %vm1989, %v1984
    // Predicated region
    $region42: #{tpu_custom_call.1} parent=1 // pred_check
      _
    $region43: #{tpu_custom_call.1} parent=1 // pred_check_branch
      %1992 = sbr.rel (0) target = $region45
    $region44: #{tpu_custom_call.1} parent=1 // pred_region
      %s1994 = ssub.s32 128, 128
      %1995 = vsyncadd [#allocation8], %s1994
      %s1997 = sshll.u32 [#allocation11], 4
      %s1998 = int_to_ptr.vmem [resolvable:$true] %s1997
      %2000 = dma.vmem_to_hbm [thread:$0]  %s1998, 128, %s8, [#allocation8]
    $region45: #{tpu_custom_call.1} parent=1 // pred_fallthru
      _
    // Predicated region
    $region46: #{tpu_custom_call.1} parent=1 // pred_check
      _
    $region47: #{tpu_custom_call.1} parent=1 // pred_check_branch
      %2002 = sbr.rel (0) target = $region49
    $region48: #{tpu_custom_call.1} parent=1 // pred_region
      %2003 = dma.done [#allocation8], 128
    $region49: #{tpu_custom_call.1} parent=1 // pred_fallthru
      _
    %2004 = vsyncpa [#allocation7], 1
    %2005 = vsyncpa [#allocation10], 1
    %2006 = vsyncpa [#allocation8], 1

</llo_original>
